<compile_context>
chip_gen: v6e
topology: v6e:2x2x1
jax: 0.10.0
libtpu: 0.0.40
codegen_flags: <defaults>
</compile_context>

<pallas_src>
import jax
import jax.numpy as jnp
import numpy as np
from jax import lax
from jax.experimental import pallas as pl
from jax.experimental.pallas import tpu as pltpu


# ----------------------------- layout helpers (host-side glue) -----------------------------
def _pixel_unshuffle(x, r):
    n, c, hr, wr = x.shape
    h, w = hr // r, wr // r
    x = x.reshape(n, c, h, r, w, r)
    x = jnp.transpose(x, (0, 1, 3, 5, 2, 4))
    return x.reshape(n, c * r * r, h, w)


def _nchw_to_slab(x):
    n, c, h, w = x.shape
    return jnp.transpose(x, (0, 2, 3, 1)).reshape(n, h, w * c)


def _slab_to_nchw(slab, c):
    n, h, wc = slab.shape
    w = wc // c
    return jnp.transpose(slab.reshape(n, h, w, c), (0, 3, 1, 2))


# ----------------------------- host-side weight preprocessing -----------------------------
def _prep_stage_weights(p, H, W, Cin, Ci, Co, nums_rb, down):
    """Fold 1x1 convs / avg-pool / 3x3 convs into slab-layout matmul operands."""
    f32 = np.float32
    WCi, WCo = W * Ci, W * Co
    Win = 2 * W if down else W

    # in_conv (and the avg-pool column-pair + 0.25 scale when down) as a
    # block-structured (Win*Cin, W*Ci) matrix.
    in_w = np.asarray(p["in_w"], f32)[:, :, 0, 0]          # (Ci, Cin)
    in_b = np.asarray(p["in_b"], f32)
    Qin = np.zeros((Win, Cin, W, Ci), f32)
    for x in range(W):
        if down:
            Qin[2 * x, :, x, :] = 0.25 * in_w.T
            Qin[2 * x + 1, :, x, :] = 0.25 * in_w.T
        else:
            Qin[x, :, x, :] = in_w.T
    Qin = Qin.reshape(Win * Cin, WCi)
    bin_row = np.tile(in_b, W)[None, :]                    # (1, W*Ci)

    # 3x3 conv weights as banded (3*W*Ci, W*Ci) matrices; K axis = (dy, xp, ci),
    # matching the in-kernel row-shifted im2col patch [h[y-1] | h[y] | h[y+1]].
    Mcat = np.zeros((nums_rb, 2, 3 * WCi, WCi), f32)
    brb = np.zeros((nums_rb, 2, 1, WCi), f32)
    for r in range(nums_rb):
        for j in range(2):
            w = np.asarray(p["rb"][r][f"w{j + 1}"], f32)   # (Ci, Ci, 3, 3) OIHW
            b = np.asarray(p["rb"][r][f"b{j + 1}"], f32)
            wt = np.transpose(w, (2, 3, 1, 0))             # (ky, kx, ci, co)
            M = np.zeros((3, W, Ci, W, Ci), f32)
            for dx in range(3):
                for x in range(W):
                    xp = x + dx - 1
                    if 0 <= xp < W:
                        M[:, xp, :, x, :] = wt[:, dx]
            Mcat[r, j] = M.reshape(3 * WCi, WCi)
            brb[r, j, 0] = np.tile(b, W)

    # out_conv 1x1 as a block-diagonal (W*Ci, W*Co) matrix.
    out_w = np.asarray(p["out_w"], f32)[:, :, 0, 0]        # (Co, Ci)
    out_b = np.asarray(p["out_b"], f32)
    Qout = np.zeros((W, Ci, W, Co), f32)
    for x in range(W):
        Qout[x, :, x, :] = out_w.T
    Qout = Qout.reshape(WCi, WCo)
    bout_row = np.tile(out_b, W)[None, :]                  # (1, W*Co)

    out = dict(qin=Qin, bin=bin_row, mcat=Mcat, brb=brb, qout=Qout, bout=bout_row)
    if down:
        # AvgPool2d row-pair sum as a constant (H, 2H) matrix (0.25 lives in Qin).
        S = np.zeros((H, 2 * H), f32)
        S[np.arange(H), 2 * np.arange(H)] = 1.0
        S[np.arange(H), 2 * np.arange(H) + 1] = 1.0
        out["srow"] = S
    return {k: jnp.asarray(v) for k, v in out.items()}


# ----------------------------- the fused per-stage kernel -----------------------------
def _make_stage_kernel(H, W, Ci, nums_rb, down):
    WC = W * Ci

    def _conv3x3(t, m_block, b_row, patch_ref):
        # Row-shifted, zero-bordered im2col patch -> one big-K MXU matmul:
        #   (H, 3*W*Ci) @ (3*W*Ci, W*Ci)
        patch_ref[0:1, 0:WC] = jnp.zeros((1, WC), jnp.float32)
        patch_ref[H - 1:H, 2 * WC:3 * WC] = jnp.zeros((1, WC), jnp.float32)
        if H > 1:
            patch_ref[1:H, 0:WC] = t[0:H - 1, :]
            patch_ref[0:H - 1, 2 * WC:3 * WC] = t[1:H, :]
        patch_ref[:, WC:2 * WC] = t
        return jnp.dot(patch_ref[...], m_block,
                       preferred_element_type=jnp.float32) + b_row

    def _body(pre, qin_ref, bin_ref, mcat_ref, brb_ref, qout_ref, bout_ref,
              o_ref, patch_ref):
        # in_conv (1x1, block-diagonal matmul)
        h = jnp.dot(pre, qin_ref[...],
                    preferred_element_type=jnp.float32) + bin_ref[...]
        # ResnetBlock_light x nums_rb
        for r in range(nums_rb):
            t = _conv3x3(h, mcat_ref[r, 0], brb_ref[r, 0], patch_ref)
            t = jnp.maximum(t, 0.0)                                   # ReLU
            t = _conv3x3(t, mcat_ref[r, 1], brb_ref[r, 1], patch_ref)
            h = h + t                                                 # residual
        # out_conv (1x1, block-diagonal matmul)
        o_ref[0] = jnp.dot(h, qout_ref[...],
                           preferred_element_type=jnp.float32) + bout_ref[...]

    if down:
        def kernel(x_ref, srow_ref, qin_ref, bin_ref, mcat_ref, brb_ref,
                   qout_ref, bout_ref, o_ref, patch_ref):
            # AvgPool2d(2,2): row-pair sum via a tiny constant matmul; the
            # column-pair sum and the 0.25 factor are folded into qin.
            pre = jnp.dot(srow_ref[...], x_ref[0],
                          preferred_element_type=jnp.float32)
            _body(pre, qin_ref, bin_ref, mcat_ref, brb_ref, qout_ref,
                  bout_ref, o_ref, patch_ref)
    else:
        def kernel(x_ref, qin_ref, bin_ref, mcat_ref, brb_ref,
                   qout_ref, bout_ref, o_ref, patch_ref):
            _body(x_ref[0], qin_ref, bin_ref, mcat_ref, brb_ref, qout_ref,
                  bout_ref, o_ref, patch_ref)

    return kernel


def _const_spec(shape):
    nd = len(shape)

    def imap(n):
        return (0,) * nd

    return pl.BlockSpec(shape, imap)


def _stage_pallas(x_slab, p, *, H, W, Cin, Ci, Co, nums_rb, down):
    N, Hin, XW = x_slab.shape
    Win = 2 * W if down else W
    assert Hin == (2 * H if down else H) and XW == Win * Cin
    WCi, WCo = W * Ci, W * Co

    wp = _prep_stage_weights(p, H, W, Cin, Ci, Co, nums_rb, down)
    kernel = _make_stage_kernel(H, W, Ci, nums_rb, down)

    in_specs = [pl.BlockSpec((1, Hin, Win * Cin), lambda n: (n, 0, 0))]
    args = [x_slab]
    if down:
        in_specs.append(_const_spec(wp["srow"].shape))
        args.append(wp["srow"])
    for k in ("qin", "bin", "mcat", "brb", "qout", "bout"):
        in_specs.append(_const_spec(wp[k].shape))
        args.append(wp[k])

    flops = 2 * N * H * (Win * Cin * WCi + nums_rb * 2 * 3 * WCi * WCi + WCi * WCo)
    bytes_accessed = 4 * (int(x_slab.size) + sum(int(v.size) for v in wp.values())
                          + N * H * WCo)

    grid_spec = pltpu.PrefetchScalarGridSpec(
        num_scalar_prefetch=0,
        grid=(N,),
        in_specs=in_specs,
        out_specs=pl.BlockSpec((1, H, WCo), lambda n: (n, 0, 0)),
        scratch_shapes=[pltpu.VMEM((H, 3 * WCi), jnp.float32)],
    )
    return pl.pallas_call(
        kernel,
        out_shape=jax.ShapeDtypeStruct((N, H, WCo), jnp.float32),
        grid_spec=grid_spec,
        compiler_params=pltpu.CompilerParams(dimension_semantics=("parallel",)),
        cost_estimate=pl.CostEstimate(flops=int(flops), transcendentals=0,
                                      bytes_accessed=int(bytes_accessed)),
    )(*args)


def adapter_light_pallas(x_nchw, params, channels, nums_rb, cin):
    x = _pixel_unshuffle(x_nchw, 8)
    assert x.shape[1] == cin
    slab = _nchw_to_slab(x)
    h, w = x.shape[2], x.shape[3]
    c_prev = cin
    feats = []
    for i, ch in enumerate(channels):
        down = i != 0
        hs, ws = (h // 2, w // 2) if down else (h, w)
        ci, co = ch // 4, ch
        slab = _stage_pallas(slab, params[i], H=hs, W=ws, Cin=c_prev, Ci=ci,
                             Co=co, nums_rb=nums_rb, down=down)
        feats.append(_slab_to_nchw(slab, co))
        c_prev, h, w = co, hs, ws
    return feats


# ----------------------------- pure-JAX reference -----------------------------
def _conv_ref(x, w, b, pad):
    y = lax.conv_general_dilated(x, w, window_strides=(1, 1),
                                 padding=[(pad, pad), (pad, pad)],
                                 dimension_numbers=("NCHW", "OIHW", "NCHW"))
    return y + b[None, :, None, None]


def _extractor_ref(x, p, nums_rb, down):
    if down:
        n, c, h, w = x.shape
        x = x.reshape(n, c, h // 2, 2, w // 2, 2).mean(axis=(3, 5))  # AvgPool2d(2,2)
    x = _conv_ref(x, p["in_w"], p["in_b"], 0)
    for r in range(nums_rb):
        h = _conv_ref(x, p["rb"][r]["w1"], p["rb"][r]["b1"], 1)
        h = jnp.maximum(h, 0.0)
        h = _conv_ref(h, p["rb"][r]["w2"], p["rb"][r]["b2"], 1)
        x = x + h
    return _conv_ref(x, p["out_w"], p["out_b"], 0)


def adapter_light_ref(x, params, nums_rb):
    x = _pixel_unshuffle(x, 8)
    feats = []
    for i, p in enumerate(params):
        x = _extractor_ref(x, p, nums_rb, down=(i != 0))
        feats.append(x)
    return feats


# ----------------------------- parameter construction -----------------------------
def _conv_init(key, co, ci, k):
    wk, bk = jax.random.split(key)
    fan_in = ci * k * k
    w = jax.random.normal(wk, (co, ci, k, k), jnp.float32) * (0.5 / np.sqrt(fan_in))
    b = 0.05 * jax.random.normal(bk, (co,), jnp.float32)
    return w, b


def _init_params(key, channels, nums_rb, cin):
    params = []
    c_prev = cin
    keys = jax.random.split(key, len(channels))
    for i, ch in enumerate(channels):
        ci, co = ch // 4, ch
        sk = jax.random.split(keys[i], 2 + nums_rb)
        in_w, in_b = _conv_init(sk[0], ci, c_prev, 1)
        out_w, out_b = _conv_init(sk[1], co, ci, 1)
        rb = []
        for r in range(nums_rb):
            k1, k2 = jax.random.split(sk[2 + r])
            w1, b1 = _conv_init(k1, ci, ci, 3)
            w2, b2 = _conv_init(k2, ci, ci, 3)
            rb.append({"w1": w1, "b1": b1, "w2": w2, "b2": b2})
        params.append({"in_w": in_w, "in_b": in_b, "rb": rb,
                       "out_w": out_w, "out_b": out_b})
        c_prev = co
    return params


if __name__ == "__main__":
    N = 2
    CIN = 64                           # channels after PixelUnshuffle(8) of a 1-channel input
    CHANNELS = [64, 128, 128, 128]     # small config consistent with Adapter_light
    NUMS_RB = 2

    key = jax.random.PRNGKey(0)
    kx, kp = jax.random.split(key)
    x = jax.random.normal(kx, (N, 1, 128, 128), jnp.float32)
    params = _init_params(kp, CHANNELS, NUMS_RB, CIN)

    feats = adapter_light_pallas(x, params, CHANNELS, NUMS_RB, CIN)
    for f in feats:
        f.block_until_ready()

    refs = adapter_light_ref(x, params, NUMS_RB)
    for f, r in zip(feats, refs):
        err = float(jnp.max(jnp.abs(f - r)))
        assert jnp.allclose(f, r, atol=2e-2, rtol=2e-2), \
            f"max abs err {err} at shape {tuple(f.shape)}"
    print("KERNEL_OK")
</pallas_src>

<mosaic_0001>
module attributes {stable_mosaic.version = 11 : i64} {
  func.func @kernel(%arg0: i32, %arg1: memref<1x16x1024xf32, #tpu.memory_space<vmem>>, %arg2: memref<1024x256xf32, #tpu.memory_space<vmem>>, %arg3: memref<1x256xf32, #tpu.memory_space<vmem>>, %arg4: memref<2x2x768x256xf32, #tpu.memory_space<vmem>>, %arg5: memref<2x2x1x256xf32, #tpu.memory_space<vmem>>, %arg6: memref<256x1024xf32, #tpu.memory_space<vmem>>, %arg7: memref<1x1024xf32, #tpu.memory_space<vmem>>, %arg8: memref<1x16x1024xf32, #tpu.memory_space<vmem>>, %arg9: memref<16x768xf32, #tpu.memory_space<vmem>>) attributes {dimension_semantics = [#tpu.dimension_semantics<parallel>], iteration_bounds = array<i64: 2>, scalar_prefetch = 0 : i64, scratch_operands = 1 : i64, tpu.core_type = #tpu.core_type<tc>, window_params = [{transform_indices = @transform_0, window_bounds = array<i64: 1, 16, 1024>}, {pipeline_mode = #tpu.pipeline_mode<synchronous>, transform_indices = @transform_1, window_bounds = array<i64: 1024, 256>}, {pipeline_mode = #tpu.pipeline_mode<synchronous>, transform_indices = @transform_2, window_bounds = array<i64: 1, 256>}, {pipeline_mode = #tpu.pipeline_mode<synchronous>, transform_indices = @transform_3, window_bounds = array<i64: 2, 2, 768, 256>}, {pipeline_mode = #tpu.pipeline_mode<synchronous>, transform_indices = @transform_4, window_bounds = array<i64: 2, 2, 1, 256>}, {pipeline_mode = #tpu.pipeline_mode<synchronous>, transform_indices = @transform_5, window_bounds = array<i64: 256, 1024>}, {pipeline_mode = #tpu.pipeline_mode<synchronous>, transform_indices = @transform_6, window_bounds = array<i64: 1, 1024>}, {transform_indices = @transform_7, window_bounds = array<i64: 1, 16, 1024>}]} {
    %c0 = arith.constant 0 : index
    %c0_0 = arith.constant 0 : index
    %c0_1 = arith.constant 0 : index
    %0 = vector.load %arg1[%c0, %c0_0, %c0_1] : memref<1x16x1024xf32, #tpu.memory_space<vmem>>, vector<1x16x1024xf32>
    %1 = vector.shape_cast %0 : vector<1x16x1024xf32> to vector<16x1024xf32>
    %c0_2 = arith.constant 0 : index
    %c0_3 = arith.constant 0 : index
    %2 = vector.load %arg2[%c0_2, %c0_3] : memref<1024x256xf32, #tpu.memory_space<vmem>>, vector<1024x256xf32>
    %cst = arith.constant dense<0.000000e+00> : vector<16x256xf32>
    %3 = tpu.matmul %1, %2, %cst {dimension_numbers = #tpu.dot_dimension_numbers<[1], [0], [0], [1], [0, 0, 1, 1], [], []>} : vector<16x1024xf32>, vector<1024x256xf32>, vector<16x256xf32> -> vector<16x256xf32>
    %c0_4 = arith.constant 0 : index
    %c0_5 = arith.constant 0 : index
    %4 = vector.load %arg3[%c0_4, %c0_5] : memref<1x256xf32, #tpu.memory_space<vmem>>, vector<1x256xf32>
    %5 = vector.broadcast %4 : vector<1x256xf32> to vector<16x256xf32>
    %6 = arith.addf %3, %5 : vector<16x256xf32>
    %c0_6 = arith.constant 0 : index
    %c0_7 = arith.constant 0 : index
    %c0_8 = arith.constant 0 : index
    %c0_9 = arith.constant 0 : index
    %7 = vector.load %arg4[%c0_6, %c0_7, %c0_8, %c0_9] : memref<2x2x768x256xf32, #tpu.memory_space<vmem>>, vector<1x1x768x256xf32>
    %8 = vector.shape_cast %7 : vector<1x1x768x256xf32> to vector<768x256xf32>
    %c0_10 = arith.constant 0 : index
    %c0_11 = arith.constant 0 : index
    %c0_12 = arith.constant 0 : index
    %c0_13 = arith.constant 0 : index
    %9 = vector.load %arg5[%c0_10, %c0_11, %c0_12, %c0_13] : memref<2x2x1x256xf32, #tpu.memory_space<vmem>>, vector<1x1x1x256xf32>
    %10 = vector.shape_cast %9 : vector<1x1x1x256xf32> to vector<1x256xf32>
    %cst_14 = arith.constant 0.000000e+00 : f32
    %11 = vector.broadcast %cst_14 : f32 to vector<1x256xf32>
    %c0_15 = arith.constant 0 : index
    %c0_16 = arith.constant 0 : index
    %12 = vector.load %arg9[%c0_15, %c0_16] : memref<16x768xf32, #tpu.memory_space<vmem>>, vector<1x256xf32>
    tpu.vector_store %arg9[%c0_15, %c0_16], %11 {strides = array<i32>} : memref<16x768xf32, #tpu.memory_space<vmem>>, vector<1x256xf32>,
    %cst_17 = arith.constant 0.000000e+00 : f32
    %13 = vector.broadcast %cst_17 : f32 to vector<1x256xf32>
    %c15 = arith.constant 15 : index
    %c512 = arith.constant 512 : index
    %14 = vector.load %arg9[%c15, %c512] : memref<16x768xf32, #tpu.memory_space<vmem>>, vector<1x256xf32>
    tpu.vector_store %arg9[%c15, %c512], %13 {strides = array<i32>} : memref<16x768xf32, #tpu.memory_space<vmem>>, vector<1x256xf32>,
    %15 = vector.extract_strided_slice %6 {offsets = [0, 0], sizes = [15, 256], strides = [1, 1]} : vector<16x256xf32> to vector<15x256xf32>
    %c1 = arith.constant 1 : index
    %c0_18 = arith.constant 0 : index
    %16 = vector.load %arg9[%c1, %c0_18] : memref<16x768xf32, #tpu.memory_space<vmem>>, vector<15x256xf32>
    tpu.vector_store %arg9[%c1, %c0_18], %15 {strides = array<i32>} : memref<16x768xf32, #tpu.memory_space<vmem>>, vector<15x256xf32>,
    %17 = vector.extract_strided_slice %6 {offsets = [1, 0], sizes = [15, 256], strides = [1, 1]} : vector<16x256xf32> to vector<15x256xf32>
    %c0_19 = arith.constant 0 : index
    %c512_20 = arith.constant 512 : index
    %18 = vector.load %arg9[%c0_19, %c512_20] : memref<16x768xf32, #tpu.memory_space<vmem>>, vector<15x256xf32>
    tpu.vector_store %arg9[%c0_19, %c512_20], %17 {strides = array<i32>} : memref<16x768xf32, #tpu.memory_space<vmem>>, vector<15x256xf32>,
    %c0_21 = arith.constant 0 : index
    %c256 = arith.constant 256 : index
    %19 = vector.load %arg9[%c0_21, %c256] : memref<16x768xf32, #tpu.memory_space<vmem>>, vector<16x256xf32>
    tpu.vector_store %arg9[%c0_21, %c256], %6 {strides = array<i32>} : memref<16x768xf32, #tpu.memory_space<vmem>>, vector<16x256xf32>,
    %c0_22 = arith.constant 0 : index
    %c0_23 = arith.constant 0 : index
    %20 = vector.load %arg9[%c0_22, %c0_23] : memref<16x768xf32, #tpu.memory_space<vmem>>, vector<16x768xf32>
    %cst_24 = arith.constant dense<0.000000e+00> : vector<16x256xf32>
    %21 = tpu.matmul %20, %8, %cst_24 {dimension_numbers = #tpu.dot_dimension_numbers<[1], [0], [0], [1], [0, 0, 1, 1], [], []>} : vector<16x768xf32>, vector<768x256xf32>, vector<16x256xf32> -> vector<16x256xf32>
    %22 = vector.broadcast %10 : vector<1x256xf32> to vector<16x256xf32>
    %23 = arith.addf %21, %22 : vector<16x256xf32>
    %cst_25 = arith.constant 0.000000e+00 : f32
    %24 = vector.broadcast %cst_25 : f32 to vector<16x256xf32>
    %25 = arith.maximumf %23, %24 : vector<16x256xf32>
    %c0_26 = arith.constant 0 : index
    %c1_27 = arith.constant 1 : index
    %c0_28 = arith.constant 0 : index
    %c0_29 = arith.constant 0 : index
    %26 = vector.load %arg4[%c0_26, %c1_27, %c0_28, %c0_29] : memref<2x2x768x256xf32, #tpu.memory_space<vmem>>, vector<1x1x768x256xf32>
    %27 = vector.shape_cast %26 : vector<1x1x768x256xf32> to vector<768x256xf32>
    %c0_30 = arith.constant 0 : index
    %c1_31 = arith.constant 1 : index
    %c0_32 = arith.constant 0 : index
    %c0_33 = arith.constant 0 : index
    %28 = vector.load %arg5[%c0_30, %c1_31, %c0_32, %c0_33] : memref<2x2x1x256xf32, #tpu.memory_space<vmem>>, vector<1x1x1x256xf32>
    %29 = vector.shape_cast %28 : vector<1x1x1x256xf32> to vector<1x256xf32>
    %cst_34 = arith.constant 0.000000e+00 : f32
    %30 = vector.broadcast %cst_34 : f32 to vector<1x256xf32>
    %c0_35 = arith.constant 0 : index
    %c0_36 = arith.constant 0 : index
    %31 = vector.load %arg9[%c0_35, %c0_36] : memref<16x768xf32, #tpu.memory_space<vmem>>, vector<1x256xf32>
    tpu.vector_store %arg9[%c0_35, %c0_36], %30 {strides = array<i32>} : memref<16x768xf32, #tpu.memory_space<vmem>>, vector<1x256xf32>,
    %cst_37 = arith.constant 0.000000e+00 : f32
    %32 = vector.broadcast %cst_37 : f32 to vector<1x256xf32>
    %c15_38 = arith.constant 15 : index
    %c512_39 = arith.constant 512 : index
    %33 = vector.load %arg9[%c15_38, %c512_39] : memref<16x768xf32, #tpu.memory_space<vmem>>, vector<1x256xf32>
    tpu.vector_store %arg9[%c15_38, %c512_39], %32 {strides = array<i32>} : memref<16x768xf32, #tpu.memory_space<vmem>>, vector<1x256xf32>,
    %34 = vector.extract_strided_slice %25 {offsets = [0, 0], sizes = [15, 256], strides = [1, 1]} : vector<16x256xf32> to vector<15x256xf32>
    %c1_40 = arith.constant 1 : index
    %c0_41 = arith.constant 0 : index
    %35 = vector.load %arg9[%c1_40, %c0_41] : memref<16x768xf32, #tpu.memory_space<vmem>>, vector<15x256xf32>
    tpu.vector_store %arg9[%c1_40, %c0_41], %34 {strides = array<i32>} : memref<16x768xf32, #tpu.memory_space<vmem>>, vector<15x256xf32>,
    %36 = vector.extract_strided_slice %25 {offsets = [1, 0], sizes = [15, 256], strides = [1, 1]} : vector<16x256xf32> to vector<15x256xf32>
    %c0_42 = arith.constant 0 : index
    %c512_43 = arith.constant 512 : index
    %37 = vector.load %arg9[%c0_42, %c512_43] : memref<16x768xf32, #tpu.memory_space<vmem>>, vector<15x256xf32>
    tpu.vector_store %arg9[%c0_42, %c512_43], %36 {strides = array<i32>} : memref<16x768xf32, #tpu.memory_space<vmem>>, vector<15x256xf32>,
    %c0_44 = arith.constant 0 : index
    %c256_45 = arith.constant 256 : index
    %38 = vector.load %arg9[%c0_44, %c256_45] : memref<16x768xf32, #tpu.memory_space<vmem>>, vector<16x256xf32>
    tpu.vector_store %arg9[%c0_44, %c256_45], %25 {strides = array<i32>} : memref<16x768xf32, #tpu.memory_space<vmem>>, vector<16x256xf32>,
    %c0_46 = arith.constant 0 : index
    %c0_47 = arith.constant 0 : index
    %39 = vector.load %arg9[%c0_46, %c0_47] : memref<16x768xf32, #tpu.memory_space<vmem>>, vector<16x768xf32>
    %cst_48 = arith.constant dense<0.000000e+00> : vector<16x256xf32>
    %40 = tpu.matmul %39, %27, %cst_48 {dimension_numbers = #tpu.dot_dimension_numbers<[1], [0], [0], [1], [0, 0, 1, 1], [], []>} : vector<16x768xf32>, vector<768x256xf32>, vector<16x256xf32> -> vector<16x256xf32>
    %41 = vector.broadcast %29 : vector<1x256xf32> to vector<16x256xf32>
    %42 = arith.addf %40, %41 : vector<16x256xf32>
    %43 = arith.addf %6, %42 : vector<16x256xf32>
    %c1_49 = arith.constant 1 : index
    %c0_50 = arith.constant 0 : index
    %c0_51 = arith.constant 0 : index
    %c0_52 = arith.constant 0 : index
    %44 = vector.load %arg4[%c1_49, %c0_50, %c0_51, %c0_52] : memref<2x2x768x256xf32, #tpu.memory_space<vmem>>, vector<1x1x768x256xf32>
    %45 = vector.shape_cast %44 : vector<1x1x768x256xf32> to vector<768x256xf32>
    %c1_53 = arith.constant 1 : index
    %c0_54 = arith.constant 0 : index
    %c0_55 = arith.constant 0 : index
    %c0_56 = arith.constant 0 : index
    %46 = vector.load %arg5[%c1_53, %c0_54, %c0_55, %c0_56] : memref<2x2x1x256xf32, #tpu.memory_space<vmem>>, vector<1x1x1x256xf32>
    %47 = vector.shape_cast %46 : vector<1x1x1x256xf32> to vector<1x256xf32>
    %cst_57 = arith.constant 0.000000e+00 : f32
    %48 = vector.broadcast %cst_57 : f32 to vector<1x256xf32>
    %c0_58 = arith.constant 0 : index
    %c0_59 = arith.constant 0 : index
    %49 = vector.load %arg9[%c0_58, %c0_59] : memref<16x768xf32, #tpu.memory_space<vmem>>, vector<1x256xf32>
    tpu.vector_store %arg9[%c0_58, %c0_59], %48 {strides = array<i32>} : memref<16x768xf32, #tpu.memory_space<vmem>>, vector<1x256xf32>,
    %cst_60 = arith.constant 0.000000e+00 : f32
    %50 = vector.broadcast %cst_60 : f32 to vector<1x256xf32>
    %c15_61 = arith.constant 15 : index
    %c512_62 = arith.constant 512 : index
    %51 = vector.load %arg9[%c15_61, %c512_62] : memref<16x768xf32, #tpu.memory_space<vmem>>, vector<1x256xf32>
    tpu.vector_store %arg9[%c15_61, %c512_62], %50 {strides = array<i32>} : memref<16x768xf32, #tpu.memory_space<vmem>>, vector<1x256xf32>,
    %52 = vector.extract_strided_slice %43 {offsets = [0, 0], sizes = [15, 256], strides = [1, 1]} : vector<16x256xf32> to vector<15x256xf32>
    %c1_63 = arith.constant 1 : index
    %c0_64 = arith.constant 0 : index
    %53 = vector.load %arg9[%c1_63, %c0_64] : memref<16x768xf32, #tpu.memory_space<vmem>>, vector<15x256xf32>
    tpu.vector_store %arg9[%c1_63, %c0_64], %52 {strides = array<i32>} : memref<16x768xf32, #tpu.memory_space<vmem>>, vector<15x256xf32>,
    %54 = vector.extract_strided_slice %43 {offsets = [1, 0], sizes = [15, 256], strides = [1, 1]} : vector<16x256xf32> to vector<15x256xf32>
    %c0_65 = arith.constant 0 : index
    %c512_66 = arith.constant 512 : index
    %55 = vector.load %arg9[%c0_65, %c512_66] : memref<16x768xf32, #tpu.memory_space<vmem>>, vector<15x256xf32>
    tpu.vector_store %arg9[%c0_65, %c512_66], %54 {strides = array<i32>} : memref<16x768xf32, #tpu.memory_space<vmem>>, vector<15x256xf32>,
    %c0_67 = arith.constant 0 : index
    %c256_68 = arith.constant 256 : index
    %56 = vector.load %arg9[%c0_67, %c256_68] : memref<16x768xf32, #tpu.memory_space<vmem>>, vector<16x256xf32>
    tpu.vector_store %arg9[%c0_67, %c256_68], %43 {strides = array<i32>} : memref<16x768xf32, #tpu.memory_space<vmem>>, vector<16x256xf32>,
    %c0_69 = arith.constant 0 : index
    %c0_70 = arith.constant 0 : index
    %57 = vector.load %arg9[%c0_69, %c0_70] : memref<16x768xf32, #tpu.memory_space<vmem>>, vector<16x768xf32>
    %cst_71 = arith.constant dense<0.000000e+00> : vector<16x256xf32>
    %58 = tpu.matmul %57, %45, %cst_71 {dimension_numbers = #tpu.dot_dimension_numbers<[1], [0], [0], [1], [0, 0, 1, 1], [], []>} : vector<16x768xf32>, vector<768x256xf32>, vector<16x256xf32> -> vector<16x256xf32>
    %59 = vector.broadcast %47 : vector<1x256xf32> to vector<16x256xf32>
    %60 = arith.addf %58, %59 : vector<16x256xf32>
    %cst_72 = arith.constant 0.000000e+00 : f32
    %61 = vector.broadcast %cst_72 : f32 to vector<16x256xf32>
    %62 = arith.maximumf %60, %61 : vector<16x256xf32>
    %c1_73 = arith.constant 1 : index
    %c1_74 = arith.constant 1 : index
    %c0_75 = arith.constant 0 : index
    %c0_76 = arith.constant 0 : index
    %63 = vector.load %arg4[%c1_73, %c1_74, %c0_75, %c0_76] : memref<2x2x768x256xf32, #tpu.memory_space<vmem>>, vector<1x1x768x256xf32>
    %64 = vector.shape_cast %63 : vector<1x1x768x256xf32> to vector<768x256xf32>
    %c1_77 = arith.constant 1 : index
    %c1_78 = arith.constant 1 : index
    %c0_79 = arith.constant 0 : index
    %c0_80 = arith.constant 0 : index
    %65 = vector.load %arg5[%c1_77, %c1_78, %c0_79, %c0_80] : memref<2x2x1x256xf32, #tpu.memory_space<vmem>>, vector<1x1x1x256xf32>
    %66 = vector.shape_cast %65 : vector<1x1x1x256xf32> to vector<1x256xf32>
    %cst_81 = arith.constant 0.000000e+00 : f32
    %67 = vector.broadcast %cst_81 : f32 to vector<1x256xf32>
    %c0_82 = arith.constant 0 : index
    %c0_83 = arith.constant 0 : index
    %68 = vector.load %arg9[%c0_82, %c0_83] : memref<16x768xf32, #tpu.memory_space<vmem>>, vector<1x256xf32>
    tpu.vector_store %arg9[%c0_82, %c0_83], %67 {strides = array<i32>} : memref<16x768xf32, #tpu.memory_space<vmem>>, vector<1x256xf32>,
    %cst_84 = arith.constant 0.000000e+00 : f32
    %69 = vector.broadcast %cst_84 : f32 to vector<1x256xf32>
    %c15_85 = arith.constant 15 : index
    %c512_86 = arith.constant 512 : index
    %70 = vector.load %arg9[%c15_85, %c512_86] : memref<16x768xf32, #tpu.memory_space<vmem>>, vector<1x256xf32>
    tpu.vector_store %arg9[%c15_85, %c512_86], %69 {strides = array<i32>} : memref<16x768xf32, #tpu.memory_space<vmem>>, vector<1x256xf32>,
    %71 = vector.extract_strided_slice %62 {offsets = [0, 0], sizes = [15, 256], strides = [1, 1]} : vector<16x256xf32> to vector<15x256xf32>
    %c1_87 = arith.constant 1 : index
    %c0_88 = arith.constant 0 : index
    %72 = vector.load %arg9[%c1_87, %c0_88] : memref<16x768xf32, #tpu.memory_space<vmem>>, vector<15x256xf32>
    tpu.vector_store %arg9[%c1_87, %c0_88], %71 {strides = array<i32>} : memref<16x768xf32, #tpu.memory_space<vmem>>, vector<15x256xf32>,
    %73 = vector.extract_strided_slice %62 {offsets = [1, 0], sizes = [15, 256], strides = [1, 1]} : vector<16x256xf32> to vector<15x256xf32>
    %c0_89 = arith.constant 0 : index
    %c512_90 = arith.constant 512 : index
    %74 = vector.load %arg9[%c0_89, %c512_90] : memref<16x768xf32, #tpu.memory_space<vmem>>, vector<15x256xf32>
    tpu.vector_store %arg9[%c0_89, %c512_90], %73 {strides = array<i32>} : memref<16x768xf32, #tpu.memory_space<vmem>>, vector<15x256xf32>,
    %c0_91 = arith.constant 0 : index
    %c256_92 = arith.constant 256 : index
    %75 = vector.load %arg9[%c0_91, %c256_92] : memref<16x768xf32, #tpu.memory_space<vmem>>, vector<16x256xf32>
    tpu.vector_store %arg9[%c0_91, %c256_92], %62 {strides = array<i32>} : memref<16x768xf32, #tpu.memory_space<vmem>>, vector<16x256xf32>,
    %c0_93 = arith.constant 0 : index
    %c0_94 = arith.constant 0 : index
    %76 = vector.load %arg9[%c0_93, %c0_94] : memref<16x768xf32, #tpu.memory_space<vmem>>, vector<16x768xf32>
    %cst_95 = arith.constant dense<0.000000e+00> : vector<16x256xf32>
    %77 = tpu.matmul %76, %64, %cst_95 {dimension_numbers = #tpu.dot_dimension_numbers<[1], [0], [0], [1], [0, 0, 1, 1], [], []>} : vector<16x768xf32>, vector<768x256xf32>, vector<16x256xf32> -> vector<16x256xf32>
    %78 = vector.broadcast %66 : vector<1x256xf32> to vector<16x256xf32>
    %79 = arith.addf %77, %78 : vector<16x256xf32>
    %80 = arith.addf %43, %79 : vector<16x256xf32>
    %c0_96 = arith.constant 0 : index
    %c0_97 = arith.constant 0 : index
    %81 = vector.load %arg6[%c0_96, %c0_97] : memref<256x1024xf32, #tpu.memory_space<vmem>>, vector<256x1024xf32>
    %cst_98 = arith.constant dense<0.000000e+00> : vector<16x1024xf32>
    %82 = tpu.matmul %80, %81, %cst_98 {dimension_numbers = #tpu.dot_dimension_numbers<[1], [0], [0], [1], [0, 0, 1, 1], [], []>} : vector<16x256xf32>, vector<256x1024xf32>, vector<16x1024xf32> -> vector<16x1024xf32>
    %c0_99 = arith.constant 0 : index
    %c0_100 = arith.constant 0 : index
    %83 = vector.load %arg7[%c0_99, %c0_100] : memref<1x1024xf32, #tpu.memory_space<vmem>>, vector<1x1024xf32>
    %84 = vector.broadcast %83 : vector<1x1024xf32> to vector<16x1024xf32>
    %85 = arith.addf %82, %84 : vector<16x1024xf32>
    %c0_101 = arith.constant 0 : index
    %c0_102 = arith.constant 0 : index
    %c0_103 = arith.constant 0 : index
    %86 = vector.load %arg8[%c0_101, %c0_102, %c0_103] : memref<1x16x1024xf32, #tpu.memory_space<vmem>>, vector<1x16x1024xf32>
    %87 = vector.shape_cast %86 : vector<1x16x1024xf32> to vector<16x1024xf32>
    %88 = vector.shape_cast %85 : vector<16x1024xf32> to vector<1x16x1024xf32>
    tpu.vector_store %arg8[%c0_101, %c0_102, %c0_103], %88 {strides = array<i32>} : memref<1x16x1024xf32, #tpu.memory_space<vmem>>, vector<1x16x1024xf32>,
    return
  }
  func.func @transform_0(%arg0: i32) -> (i32, i32, i32) {
    %c0_i32 = arith.constant 0 : i32
    %c0_i32_0 = arith.constant 0 : i32
    %c0_i32_1 = arith.constant 0 : i32
    return %arg0, %c0_i32, %c0_i32_0 : i32, i32, i32
  }
  func.func @transform_1(%arg0: i32) -> (i32, i32) {
    %c0_i32 = arith.constant 0 : i32
    %c0_i32_0 = arith.constant 0 : i32
    %c0_i32_1 = arith.constant 0 : i32
    return %c0_i32, %c0_i32_0 : i32, i32
  }
  func.func @transform_2(%arg0: i32) -> (i32, i32) {
    %c0_i32 = arith.constant 0 : i32
    %c0_i32_0 = arith.constant 0 : i32
    %c0_i32_1 = arith.constant 0 : i32
    return %c0_i32, %c0_i32_0 : i32, i32
  }
  func.func @transform_3(%arg0: i32) -> (i32, i32, i32, i32) {
    %c0_i32 = arith.constant 0 : i32
    %c0_i32_0 = arith.constant 0 : i32
    %c0_i32_1 = arith.constant 0 : i32
    %c0_i32_2 = arith.constant 0 : i32
    %c0_i32_3 = arith.constant 0 : i32
    return %c0_i32, %c0_i32_0, %c0_i32_1, %c0_i32_2 : i32, i32, i32, i32
  }
  func.func @transform_4(%arg0: i32) -> (i32, i32, i32, i32) {
    %c0_i32 = arith.constant 0 : i32
    %c0_i32_0 = arith.constant 0 : i32
    %c0_i32_1 = arith.constant 0 : i32
    %c0_i32_2 = arith.constant 0 : i32
    %c0_i32_3 = arith.constant 0 : i32
    return %c0_i32, %c0_i32_0, %c0_i32_1, %c0_i32_2 : i32, i32, i32, i32
  }
  func.func @transform_5(%arg0: i32) -> (i32, i32) {
    %c0_i32 = arith.constant 0 : i32
    %c0_i32_0 = arith.constant 0 : i32
    %c0_i32_1 = arith.constant 0 : i32
    return %c0_i32, %c0_i32_0 : i32, i32
  }
  func.func @transform_6(%arg0: i32) -> (i32, i32) {
    %c0_i32 = arith.constant 0 : i32
    %c0_i32_0 = arith.constant 0 : i32
    %c0_i32_1 = arith.constant 0 : i32
    return %c0_i32, %c0_i32_0 : i32, i32
  }
  func.func @transform_7(%arg0: i32) -> (i32, i32, i32) {
    %c0_i32 = arith.constant 0 : i32
    %c0_i32_0 = arith.constant 0 : i32
    %c0_i32_1 = arith.constant 0 : i32
    return %arg0, %c0_i32, %c0_i32_0 : i32, i32, i32
  }
}

</mosaic_0001>

<llo_original>
// kernel: tpu_custom_call.1
$region0: #{tpu_custom_call.1}
  #allocation0 [shape = 'u32[]', space=smem, size = 0x4, offset = 0x4, fixed_abs, tag = 'smem constant byte address 0x4 - core index']
  #allocation1 [shape = 'u32[144,128]{1,0:T(1,128)}', space=vmem, size = 0x12000, scoped, tag = 'internal scratch']
  #allocation2 [shape = 'f32[16,768]{1,0:T(8,128)}', space=vmem, size = 0xc000, scoped, tag = 'scratch operand']
  %s0 = inlined_call_operand.hbm [shape: f32[2,16,1024], index: 0, kind: input, shape index: {}]
  %s1 = inlined_call_operand.hbm [shape: f32[1024,256], index: 1, kind: input, shape index: {}]
  %s2 = inlined_call_operand.hbm [shape: f32[1,256], index: 2, kind: input, shape index: {}]
  %s3 = inlined_call_operand.hbm [shape: f32[2,2,768,256], index: 3, kind: input, shape index: {}]
  %s4 = inlined_call_operand.hbm [shape: f32[2,2,1,256], index: 4, kind: input, shape index: {}]
  %s5 = inlined_call_operand.hbm [shape: f32[256,1024], index: 5, kind: input, shape index: {}]
  %s6 = inlined_call_operand.hbm [shape: f32[1,1024], index: 6, kind: input, shape index: {}]
  %s7 = inlined_call_operand.hbm [shape: f32[2,16,1024], index: 7, kind: output, shape index: {}]
  %s8 = sld [smem:[#allocation0]]
  $region89: #{tpu_custom_call.1} parent=0
    _
  %s10 = ssub.s32 1, %s8
  %s11 = scalar_select 0, %s10, %s8
  $region1: #{tpu_custom_call.1} parent=0
    #allocation3 [shape = 'u8[131072]{0}', space=vmem, size = 0x20000, scoped, tag = 'input window, operand 0']
    #allocation4 [shape = 's32[2]{0}', space=sflag, size = 0x8, scoped, tag = 'scoped memory for tpu_custom_call.1']
    #allocation5 [shape = 's32[2]{0}', space=sflag, size = 0x8, scoped, tag = 'scoped memory for tpu_custom_call.1']
    #allocation6 [shape = 'u8[1048576]{0}', space=vmem, size = 0x100000, scoped, tag = 'input window, operand 1, single buffered']
    #allocation7 [shape = 's32[1]{0}', space=sflag, size = 0x4, scoped, tag = 'scoped memory for tpu_custom_call.1']
    #allocation8 [shape = 'u8[1024]{0}', space=vmem, size = 0x400, scoped, tag = 'input window, operand 2, single buffered']
    #allocation9 [shape = 'u8[3145728]{0}', space=vmem, size = 0x300000, scoped, tag = 'input window, operand 3, single buffered']
    #allocation10 [shape = 's32[1]{0}', space=sflag, size = 0x4, scoped, tag = 'scoped memory for tpu_custom_call.1']
    #allocation11 [shape = 'u8[4096]{0}', space=vmem, size = 0x1000, scoped, tag = 'input window, operand 4, single buffered']
    #allocation12 [shape = 'u8[1048576]{0}', space=vmem, size = 0x100000, scoped, tag = 'input window, operand 5, single buffered']
    #allocation13 [shape = 's32[1]{0}', space=sflag, size = 0x4, scoped, tag = 'scoped memory for tpu_custom_call.1']
    #allocation14 [shape = 'u8[4096]{0}', space=vmem, size = 0x1000, scoped, tag = 'input window, operand 6, single buffered']
    #allocation15 [shape = 'u8[131072]{0}', space=vmem, size = 0x20000, scoped, tag = 'output window, operand 0']
    %12 = vsyncpa [#allocation4], 0
    %s13 = scalar_lea.sflag [#allocation4], 1
    %14 = vsyncpa %s13, 0
    %15 = vsyncpa [#allocation7], 0
    %16 = vsyncpa [#allocation10], 0
    %17 = vsyncpa [#allocation13], 0
    %18 = vsyncpa [#allocation5], 0
    %s19 = scalar_lea.sflag [#allocation5], 1
    %20 = vsyncpa %s19, 0
    loop: start=0, step=1, limit=4
    $region2: #{tpu_custom_call.1} parent=1 // loop_pre_header
      _
    $region3: #{tpu_custom_call.1} parent=1 // loop_header
      %s22 = sphi 0, %s26
      %p23 = scmp.ge.s32.totalorder %s22, 4
      %s32 = sphi 0, %s34
      %s35 = sphi 0, %s32
      %s36 = sphi 0, %s35
      %s52 = sphi 0, %s36
      %s56 = sphi 0, %s56
      %s58 = sphi 0, %s56
      %s59 = sphi 0, %s58
      %s73 = sphi 0, %s59
      %s77 = sphi 0, %s77
      %s79 = sphi 0, %s77
      %s80 = sphi 0, %s79
      %s94 = sphi 0, %s80
      %s98 = sphi 0, %s98
      %s100 = sphi 0, %s98
      %s101 = sphi 0, %s100
      %s115 = sphi 0, %s101
      %s119 = sphi 0, %s119
      %s121 = sphi 0, %s119
      %s122 = sphi 0, %s121
      %s136 = sphi 0, %s122
      %s140 = sphi 0, %s140
      %s142 = sphi 0, %s140
      %s143 = sphi 0, %s142
      %s157 = sphi 0, %s143
      %s161 = sphi 0, %s161
      %s163 = sphi 0, %s161
      %s164 = sphi 0, %s163
      %s178 = sphi 0, %s164
      %s184 = sphi 0, %s186
      %s187 = sphi 0, %s184
      %s188 = sphi 0, %s187
      %s204 = sphi 0, %s188
    $region4: #{tpu_custom_call.1} parent=1 // loop_header_branch
      %25 = sbr.rel (%p23) target = $region8
    $region5: #{tpu_custom_call.1} parent=1 // loop_body
      %s27 = ssub.s32 %s22, 1
      %s28 = ssub.s32 %s22, 2
      %s29 = sadd.s32 %s22, 1
      %s30 = ssub.s32 %s22, %s29
      %p31 = scmp.eq.s32.totalorder %s30, 0
      %s33 = sadd.s32 %s32, 1
      %s34 = scalar_select %p31, %s32, %s33
      %p37 = pneg %p31
      %p38 = scmp.eq.s32.totalorder %s22, 1
      %p39 = por %p37, %p38
      %p40 = scmp.ne.s32.totalorder %s32, %s35
      %p41 = scmp.eq.s32.totalorder %s22, 0
      %p42 = por %p40, %p41
      %p43 = scmp.ne.s32.totalorder %s32, %s35
      %p44 = scmp.eq.s32.totalorder %s27, 1
      %p45 = por %p43, %p44
      %p46 = scmp.ne.s32.totalorder %s35, %s36
      %p47 = scmp.eq.s32.totalorder %s27, 0
      %p48 = por %p46, %p47
      %p49 = scmp.ne.s32.totalorder %s35, %s36
      %p50 = scmp.eq.s32.totalorder %s28, 1
      %p51 = por %p49, %p50
      %p53 = scmp.ne.s32.totalorder %s36, %s52
      %p54 = scmp.eq.s32.totalorder %s28, 0
      %p55 = por %p53, %p54
      %s57 = sadd.s32 %s56, 1
      %p60 = scmp.eq.s32.totalorder %s22, 1
      %p61 = scmp.ne.s32.totalorder %s56, %s58
      %p62 = scmp.eq.s32.totalorder %s22, 0
      %p63 = por %p61, %p62
      %p64 = scmp.ne.s32.totalorder %s56, %s58
      %p65 = scmp.eq.s32.totalorder %s27, 1
      %p66 = por %p64, %p65
      %p67 = scmp.ne.s32.totalorder %s58, %s59
      %p68 = scmp.eq.s32.totalorder %s27, 0
      %p69 = por %p67, %p68
      %p70 = scmp.ne.s32.totalorder %s58, %s59
      %p71 = scmp.eq.s32.totalorder %s28, 1
      %p72 = por %p70, %p71
      %p74 = scmp.ne.s32.totalorder %s59, %s73
      %p75 = scmp.eq.s32.totalorder %s28, 0
      %p76 = por %p74, %p75
      %s78 = sadd.s32 %s77, 1
      %p81 = scmp.eq.s32.totalorder %s22, 1
      %p82 = scmp.ne.s32.totalorder %s77, %s79
      %p83 = scmp.eq.s32.totalorder %s22, 0
      %p84 = por %p82, %p83
      %p85 = scmp.ne.s32.totalorder %s77, %s79
      %p86 = scmp.eq.s32.totalorder %s27, 1
      %p87 = por %p85, %p86
      %p88 = scmp.ne.s32.totalorder %s79, %s80
      %p89 = scmp.eq.s32.totalorder %s27, 0
      %p90 = por %p88, %p89
      %p91 = scmp.ne.s32.totalorder %s79, %s80
      %p92 = scmp.eq.s32.totalorder %s28, 1
      %p93 = por %p91, %p92
      %p95 = scmp.ne.s32.totalorder %s80, %s94
      %p96 = scmp.eq.s32.totalorder %s28, 0
      %p97 = por %p95, %p96
      %s99 = sadd.s32 %s98, 1
      %p102 = scmp.eq.s32.totalorder %s22, 1
      %p103 = scmp.ne.s32.totalorder %s98, %s100
      %p104 = scmp.eq.s32.totalorder %s22, 0
      %p105 = por %p103, %p104
      %p106 = scmp.ne.s32.totalorder %s98, %s100
      %p107 = scmp.eq.s32.totalorder %s27, 1
      %p108 = por %p106, %p107
      %p109 = scmp.ne.s32.totalorder %s100, %s101
      %p110 = scmp.eq.s32.totalorder %s27, 0
      %p111 = por %p109, %p110
      %p112 = scmp.ne.s32.totalorder %s100, %s101
      %p113 = scmp.eq.s32.totalorder %s28, 1
      %p114 = por %p112, %p113
      %p116 = scmp.ne.s32.totalorder %s101, %s115
      %p117 = scmp.eq.s32.totalorder %s28, 0
      %p118 = por %p116, %p117
      %s120 = sadd.s32 %s119, 1
      %p123 = scmp.eq.s32.totalorder %s22, 1
      %p124 = scmp.ne.s32.totalorder %s119, %s121
      %p125 = scmp.eq.s32.totalorder %s22, 0
      %p126 = por %p124, %p125
      %p127 = scmp.ne.s32.totalorder %s119, %s121
      %p128 = scmp.eq.s32.totalorder %s27, 1
      %p129 = por %p127, %p128
      %p130 = scmp.ne.s32.totalorder %s121, %s122
      %p131 = scmp.eq.s32.totalorder %s27, 0
      %p132 = por %p130, %p131
      %p133 = scmp.ne.s32.totalorder %s121, %s122
      %p134 = scmp.eq.s32.totalorder %s28, 1
      %p135 = por %p133, %p134
      %p137 = scmp.ne.s32.totalorder %s122, %s136
      %p138 = scmp.eq.s32.totalorder %s28, 0
      %p139 = por %p137, %p138
      %s141 = sadd.s32 %s140, 1
      %p144 = scmp.eq.s32.totalorder %s22, 1
      %p145 = scmp.ne.s32.totalorder %s140, %s142
      %p146 = scmp.eq.s32.totalorder %s22, 0
      %p147 = por %p145, %p146
      %p148 = scmp.ne.s32.totalorder %s140, %s142
      %p149 = scmp.eq.s32.totalorder %s27, 1
      %p150 = por %p148, %p149
      %p151 = scmp.ne.s32.totalorder %s142, %s143
      %p152 = scmp.eq.s32.totalorder %s27, 0
      %p153 = por %p151, %p152
      %p154 = scmp.ne.s32.totalorder %s142, %s143
      %p155 = scmp.eq.s32.totalorder %s28, 1
      %p156 = por %p154, %p155
      %p158 = scmp.ne.s32.totalorder %s143, %s157
      %p159 = scmp.eq.s32.totalorder %s28, 0
      %p160 = por %p158, %p159
      %s162 = sadd.s32 %s161, 1
      %p165 = scmp.eq.s32.totalorder %s22, 1
      %p166 = scmp.ne.s32.totalorder %s161, %s163
      %p167 = scmp.eq.s32.totalorder %s22, 0
      %p168 = por %p166, %p167
      %p169 = scmp.ne.s32.totalorder %s161, %s163
      %p170 = scmp.eq.s32.totalorder %s27, 1
      %p171 = por %p169, %p170
      %p172 = scmp.ne.s32.totalorder %s163, %s164
      %p173 = scmp.eq.s32.totalorder %s27, 0
      %p174 = por %p172, %p173
      %p175 = scmp.ne.s32.totalorder %s163, %s164
      %p176 = scmp.eq.s32.totalorder %s28, 1
      %p177 = por %p175, %p176
      %p179 = scmp.ne.s32.totalorder %s164, %s178
      %p180 = scmp.eq.s32.totalorder %s28, 0
      %p181 = por %p179, %p180
      %s182 = ssub.s32 %s22, %s29
      %p183 = scmp.eq.s32.totalorder %s182, 0
      %s185 = sadd.s32 %s184, 1
      %s186 = scalar_select %p183, %s184, %s185
      %p189 = pneg %p183
      %p190 = scmp.eq.s32.totalorder %s22, 1
      %p191 = por %p189, %p190
      %p192 = scmp.ne.s32.totalorder %s184, %s187
      %p193 = scmp.eq.s32.totalorder %s22, 0
      %p194 = por %p192, %p193
      %p195 = scmp.ne.s32.totalorder %s184, %s187
      %p196 = scmp.eq.s32.totalorder %s27, 1
      %p197 = por %p195, %p196
      %p198 = scmp.ne.s32.totalorder %s187, %s188
      %p199 = scmp.eq.s32.totalorder %s27, 0
      %p200 = por %p198, %p199
      %p201 = scmp.ne.s32.totalorder %s187, %s188
      %p202 = scmp.eq.s32.totalorder %s28, 1
      %p203 = por %p201, %p202
      %p205 = scmp.ne.s32.totalorder %s188, %s204
      %p206 = scmp.eq.s32.totalorder %s28, 0
      %p207 = por %p205, %p206
      %p208 = scmp.le.s32.totalorder 1, %s22
      %p209 = scmp.lt.s32.totalorder %s22, 3
      %p210 = pnand %p208, %p209
      %p211 = pneg %p210
      // Predicated region
      $region9: #{tpu_custom_call.1} parent=5 // pred_check
        _
      $region10: #{tpu_custom_call.1} parent=5 // pred_check_branch
        %213 = sbr.rel (%p210) target = $region12
      $region11: #{tpu_custom_call.1} parent=5 // pred_region
        %s214 = ssub.s32 %s22, 1
        // Predicated region
        $region13: #{tpu_custom_call.1} parent=11 // pred_check
          %p215 = pneg %p69
        $region14: #{tpu_custom_call.1} parent=11 // pred_check_branch
          %217 = sbr.rel (%p215) target = $region16
        $region15: #{tpu_custom_call.1} parent=11 // pred_region
          %s219 = ssub.s32 32768, 32768
          %220 = vsyncadd [#allocation7], %s219
          %s221 = sshll.u32 [#allocation6], 4
          %s222 = int_to_ptr.vmem [resolvable:$true] %s221
          %227 = dma.hbm_to_vmem [thread:$0]  %s1, 32768, %s222, [#allocation7], 256, 256, 16
        $region16: #{tpu_custom_call.1} parent=11 // pred_fallthru
          _
        // Predicated region
        $region17: #{tpu_custom_call.1} parent=11 // pred_check
          %p228 = pneg %p90
        $region18: #{tpu_custom_call.1} parent=11 // pred_check_branch
          %230 = sbr.rel (%p228) target = $region20
        $region19: #{tpu_custom_call.1} parent=11 // pred_region
          %s232 = ssub.s32 32, 32
          %233 = vsyncadd [#allocation7], %s232
          %s235 = sshll.u32 [#allocation8], 4
          %s236 = int_to_ptr.vmem [resolvable:$true] %s235
          %238 = dma.hbm_to_vmem [thread:$0]  %s2, 32, %s236, [#allocation7]
        $region20: #{tpu_custom_call.1} parent=11 // pred_fallthru
          _
        // Predicated region
        $region21: #{tpu_custom_call.1} parent=11 // pred_check
          %p239 = pneg %p111
        $region22: #{tpu_custom_call.1} parent=11 // pred_check_branch
          %241 = sbr.rel (%p239) target = $region24
        $region23: #{tpu_custom_call.1} parent=11 // pred_region
          %s243 = ssub.s32 98304, 98304
          %244 = vsyncadd [#allocation10], %s243
          %s245 = sshll.u32 [#allocation9], 4
          %s246 = int_to_ptr.vmem [resolvable:$true] %s245
          %251 = dma.hbm_to_vmem [thread:$0]  %s3, 98304, %s246, [#allocation10], 256, 256, 16
        $region24: #{tpu_custom_call.1} parent=11 // pred_fallthru
          _
        // Predicated region
        $region25: #{tpu_custom_call.1} parent=11 // pred_check
          %p252 = pneg %p132
        $region26: #{tpu_custom_call.1} parent=11 // pred_check_branch
          %254 = sbr.rel (%p252) target = $region28
        $region27: #{tpu_custom_call.1} parent=11 // pred_region
          %s256 = ssub.s32 128, 128
          %257 = vsyncadd [#allocation10], %s256
          %s258 = sshll.u32 [#allocation11], 4
          %s259 = int_to_ptr.vmem [resolvable:$true] %s258
          %264 = dma.hbm_to_vmem [thread:$0]  %s4, 128, %s259, [#allocation10], 32, 32, 2
        $region28: #{tpu_custom_call.1} parent=11 // pred_fallthru
          _
        // Predicated region
        $region29: #{tpu_custom_call.1} parent=11 // pred_check
          %p265 = pneg %p153
        $region30: #{tpu_custom_call.1} parent=11 // pred_check_branch
          %267 = sbr.rel (%p265) target = $region32
        $region31: #{tpu_custom_call.1} parent=11 // pred_region
          %s269 = ssub.s32 32768, 32768
          %270 = vsyncadd [#allocation13], %s269
          %s271 = sshll.u32 [#allocation12], 4
          %s272 = int_to_ptr.vmem [resolvable:$true] %s271
          %277 = dma.hbm_to_vmem [thread:$0]  %s5, 32768, %s272, [#allocation13], 1024, 1024, 64
        $region32: #{tpu_custom_call.1} parent=11 // pred_fallthru
          _
        // Predicated region
        $region33: #{tpu_custom_call.1} parent=11 // pred_check
          %p278 = pneg %p174
        $region34: #{tpu_custom_call.1} parent=11 // pred_check_branch
          %280 = sbr.rel (%p278) target = $region36
        $region35: #{tpu_custom_call.1} parent=11 // pred_region
          %s282 = ssub.s32 128, 128
          %283 = vsyncadd [#allocation13], %s282
          %s285 = sshll.u32 [#allocation14], 4
          %s286 = int_to_ptr.vmem [resolvable:$true] %s285
          %288 = dma.hbm_to_vmem [thread:$0]  %s6, 128, %s286, [#allocation13]
        $region36: #{tpu_custom_call.1} parent=11 // pred_fallthru
          _
      $region12: #{tpu_custom_call.1} parent=5 // pred_fallthru
        _
      %p289 = scmp.lt.s32.totalorder %s22, 2
      // Predicated region
      $region37: #{tpu_custom_call.1} parent=5 // pred_check
        %p290 = pneg %p289
      $region38: #{tpu_custom_call.1} parent=5 // pred_check_branch
        %292 = sbr.rel (%p290) target = $region40
      $region39: #{tpu_custom_call.1} parent=5 // pred_region
        // Predicated region
        $region41: #{tpu_custom_call.1} parent=39 // pred_check
          %p293 = pneg %p42
        $region42: #{tpu_custom_call.1} parent=39 // pred_check_branch
          %295 = sbr.rel (%p293) target = $region44
        $region43: #{tpu_custom_call.1} parent=39 // pred_region
          %s296 = sand.u32 %s32, 1
          %s297 = scalar_lea.sflag [#allocation4], %s296
          %s298 = sand.u32 %s32, 1
          %s299 = smul.addr %s298, 128
          %s300 = scalar_lea.vmem [#allocation3], %s299
          %s302 = ssub.s32 2048, 2048
          %303 = vsyncadd %s297, %s302
          %s304 = smul.addr %s22, 16
          %s305 = smul.addr %s304, 128
          %s306 = scalar_lea.hbm %s0, %s305
          %s307 = sshll.u32 %s300, 4
          %s308 = int_to_ptr.vmem [resolvable:$true] %s307
          %313 = dma.hbm_to_vmem [thread:$0]  %s306, 2048, %s308, %s297, 1024, 1024, 64
        $region44: #{tpu_custom_call.1} parent=39 // pred_fallthru
          _
      $region40: #{tpu_custom_call.1} parent=5 // pred_fallthru
        _
      %p314 = scmp.le.s32.totalorder 1, %s22
      %p315 = scmp.lt.s32.totalorder %s22, 3
      %p316 = pnand %p314, %p315
      %p317 = pneg %p316
      // Predicated region
      $region45: #{tpu_custom_call.1} parent=5 // pred_check
        _
      $region46: #{tpu_custom_call.1} parent=5 // pred_check_branch
        %319 = sbr.rel (%p316) target = $region48
      $region47: #{tpu_custom_call.1} parent=5 // pred_region
        %s320 = ssub.s32 %s22, 1
        %s321 = sand.u32 %s35, 1
        %s322 = scalar_lea.sflag [#allocation4], %s321
        %s323 = sand.u32 %s35, 1
        %s324 = smul.addr %s323, 128
        %s325 = scalar_lea.vmem [#allocation3], %s324
        // Predicated region
        $region49: #{tpu_custom_call.1} parent=47 // pred_check
          %p326 = pneg %p48
        $region50: #{tpu_custom_call.1} parent=47 // pred_check_branch
          %328 = sbr.rel (%p326) target = $region52
        $region51: #{tpu_custom_call.1} parent=47 // pred_region
          %329 = dma.done %s322, 2048
        $region52: #{tpu_custom_call.1} parent=47 // pred_fallthru
          _
        // Predicated region
        $region53: #{tpu_custom_call.1} parent=47 // pred_check
          %p330 = pneg %p69
        $region54: #{tpu_custom_call.1} parent=47 // pred_check_branch
          %332 = sbr.rel (%p330) target = $region56
        $region55: #{tpu_custom_call.1} parent=47 // pred_region
          %333 = dma.done [#allocation7], 32768
        $region56: #{tpu_custom_call.1} parent=47 // pred_fallthru
          _
        // Predicated region
        $region57: #{tpu_custom_call.1} parent=47 // pred_check
          %p334 = pneg %p90
        $region58: #{tpu_custom_call.1} parent=47 // pred_check_branch
          %336 = sbr.rel (%p334) target = $region60
        $region59: #{tpu_custom_call.1} parent=47 // pred_region
          %337 = dma.done [#allocation7], 32
        $region60: #{tpu_custom_call.1} parent=47 // pred_fallthru
          _
        // Predicated region
        $region61: #{tpu_custom_call.1} parent=47 // pred_check
          %p338 = pneg %p111
        $region62: #{tpu_custom_call.1} parent=47 // pred_check_branch
          %340 = sbr.rel (%p338) target = $region64
        $region63: #{tpu_custom_call.1} parent=47 // pred_region
          %341 = dma.done [#allocation10], 98304
        $region64: #{tpu_custom_call.1} parent=47 // pred_fallthru
          _
        // Predicated region
        $region65: #{tpu_custom_call.1} parent=47 // pred_check
          %p342 = pneg %p132
        $region66: #{tpu_custom_call.1} parent=47 // pred_check_branch
          %344 = sbr.rel (%p342) target = $region68
        $region67: #{tpu_custom_call.1} parent=47 // pred_region
          %345 = dma.done [#allocation10], 128
        $region68: #{tpu_custom_call.1} parent=47 // pred_fallthru
          _
        // Predicated region
        $region69: #{tpu_custom_call.1} parent=47 // pred_check
          %p346 = pneg %p153
        $region70: #{tpu_custom_call.1} parent=47 // pred_check_branch
          %348 = sbr.rel (%p346) target = $region72
        $region71: #{tpu_custom_call.1} parent=47 // pred_region
          %349 = dma.done [#allocation13], 32768
        $region72: #{tpu_custom_call.1} parent=47 // pred_fallthru
          _
        // Predicated region
        $region73: #{tpu_custom_call.1} parent=47 // pred_check
          %p350 = pneg %p174
        $region74: #{tpu_custom_call.1} parent=47 // pred_check_branch
          %352 = sbr.rel (%p350) target = $region76
        $region75: #{tpu_custom_call.1} parent=47 // pred_region
          %353 = dma.done [#allocation13], 128
        $region76: #{tpu_custom_call.1} parent=47 // pred_fallthru
          _
        %s354 = sand.u32 %s35, 1
        %s355 = scalar_lea.sflag [#allocation4], %s354
        %s356 = sand.u32 %s35, 1
        %s357 = smul.addr %s356, 128
        %s358 = scalar_lea.vmem [#allocation3], %s357
        %p359 = pneg %p48
        %p360 = pneg %p45
        %p361 = pneg %p69
        %p362 = pneg %p66
        %p363 = pneg %p90
        %p364 = pneg %p87
        %p365 = pneg %p111
        %p366 = pneg %p108
        %p367 = pneg %p132
        %p368 = pneg %p129
        %p369 = pneg %p153
        %p370 = pneg %p150
        %p371 = pneg %p174
        %p372 = pneg %p171
        %p373 = pneg %p200
        %p374 = pneg %p197
        %s375 = sand.u32 %s187, 1
        %s376 = scalar_lea.sflag [#allocation5], %s375
        %s377 = sand.u32 %s187, 1
        %s378 = smul.addr %s377, 128
        %s379 = scalar_lea.vmem [#allocation15], %s378
        %v380 = vld [vmem:[%s325] sm:$0xff]
        %v381 = vld [vmem:[%s325 + $0x8] sm:$0xff]
        %v382 = vld [vmem:[%s325 + $0x10] sm:$0xff]
        %v383 = vld [vmem:[%s325 + $0x18] sm:$0xff]
        %v384 = vld [vmem:[%s325 + $0x20] sm:$0xff]
        %v385 = vld [vmem:[%s325 + $0x28] sm:$0xff]
        %v386 = vld [vmem:[%s325 + $0x30] sm:$0xff]
        %v387 = vld [vmem:[%s325 + $0x38] sm:$0xff]
        %v388 = vld [vmem:[%s325 + $0x40] sm:$0xff]
        %v389 = vld [vmem:[%s325 + $0x48] sm:$0xff]
        %v390 = vld [vmem:[%s325 + $0x50] sm:$0xff]
        %v391 = vld [vmem:[%s325 + $0x58] sm:$0xff]
        %v392 = vld [vmem:[%s325 + $0x60] sm:$0xff]
        %v393 = vld [vmem:[%s325 + $0x68] sm:$0xff]
        %v394 = vld [vmem:[%s325 + $0x70] sm:$0xff]
        %v395 = vld [vmem:[%s325 + $0x78] sm:$0xff]
        %v396 = vld [vmem:[#allocation6] sm:$0xff]
        %v397 = vld [vmem:[#allocation6 + $0x8] sm:$0xff]
        %v398 = vld [vmem:[#allocation6 + $0x10] sm:$0xff]
        %v399 = vld [vmem:[#allocation6 + $0x18] sm:$0xff]
        %v400 = vld [vmem:[#allocation6 + $0x20] sm:$0xff]
        %v401 = vld [vmem:[#allocation6 + $0x28] sm:$0xff]
        %v402 = vld [vmem:[#allocation6 + $0x30] sm:$0xff]
        %v403 = vld [vmem:[#allocation6 + $0x38] sm:$0xff]
        %v404 = vld [vmem:[#allocation6 + $0x40] sm:$0xff]
        %v405 = vld [vmem:[#allocation6 + $0x48] sm:$0xff]
        %v406 = vld [vmem:[#allocation6 + $0x50] sm:$0xff]
        %v407 = vld [vmem:[#allocation6 + $0x58] sm:$0xff]
        %v408 = vld [vmem:[#allocation6 + $0x60] sm:$0xff]
        %v409 = vld [vmem:[#allocation6 + $0x68] sm:$0xff]
        %v410 = vld [vmem:[#allocation6 + $0x70] sm:$0xff]
        %v411 = vld [vmem:[#allocation6 + $0x78] sm:$0xff]
        %v412 = vld [vmem:[#allocation6 + $0x80] sm:$0xff]
        %v413 = vld [vmem:[#allocation6 + $0x88] sm:$0xff]
        %v414 = vld [vmem:[#allocation6 + $0x90] sm:$0xff]
        %v415 = vld [vmem:[#allocation6 + $0x98] sm:$0xff]
        %v416 = vld [vmem:[#allocation6 + $0xa0] sm:$0xff]
        %v417 = vld [vmem:[#allocation6 + $0xa8] sm:$0xff]
        %v418 = vld [vmem:[#allocation6 + $0xb0] sm:$0xff]
        %v419 = vld [vmem:[#allocation6 + $0xb8] sm:$0xff]
        %v420 = vld [vmem:[#allocation6 + $0xc0] sm:$0xff]
        %v421 = vld [vmem:[#allocation6 + $0xc8] sm:$0xff]
        %v422 = vld [vmem:[#allocation6 + $0xd0] sm:$0xff]
        %v423 = vld [vmem:[#allocation6 + $0xd8] sm:$0xff]
        %v424 = vld [vmem:[#allocation6 + $0xe0] sm:$0xff]
        %v425 = vld [vmem:[#allocation6 + $0xe8] sm:$0xff]
        %v426 = vld [vmem:[#allocation6 + $0xf0] sm:$0xff]
        %v427 = vld [vmem:[#allocation6 + $0xf8] sm:$0xff]
        %v428 = vld [vmem:[#allocation6 + $0x100] sm:$0xff]
        %v429 = vld [vmem:[#allocation6 + $0x108] sm:$0xff]
        %v430 = vld [vmem:[#allocation6 + $0x110] sm:$0xff]
        %v431 = vld [vmem:[#allocation6 + $0x118] sm:$0xff]
        %v432 = vld [vmem:[#allocation6 + $0x120] sm:$0xff]
        %v433 = vld [vmem:[#allocation6 + $0x128] sm:$0xff]
        %v434 = vld [vmem:[#allocation6 + $0x130] sm:$0xff]
        %v435 = vld [vmem:[#allocation6 + $0x138] sm:$0xff]
        %v436 = vld [vmem:[#allocation6 + $0x140] sm:$0xff]
        %v437 = vld [vmem:[#allocation6 + $0x148] sm:$0xff]
        %v438 = vld [vmem:[#allocation6 + $0x150] sm:$0xff]
        %v439 = vld [vmem:[#allocation6 + $0x158] sm:$0xff]
        %v440 = vld [vmem:[#allocation6 + $0x160] sm:$0xff]
        %v441 = vld [vmem:[#allocation6 + $0x168] sm:$0xff]
        %v442 = vld [vmem:[#allocation6 + $0x170] sm:$0xff]
        %v443 = vld [vmem:[#allocation6 + $0x178] sm:$0xff]
        %v444 = vld [vmem:[#allocation6 + $0x180] sm:$0xff]
        %v445 = vld [vmem:[#allocation6 + $0x188] sm:$0xff]
        %v446 = vld [vmem:[#allocation6 + $0x190] sm:$0xff]
        %v447 = vld [vmem:[#allocation6 + $0x198] sm:$0xff]
        %v448 = vld [vmem:[#allocation6 + $0x1a0] sm:$0xff]
        %v449 = vld [vmem:[#allocation6 + $0x1a8] sm:$0xff]
        %v450 = vld [vmem:[#allocation6 + $0x1b0] sm:$0xff]
        %v451 = vld [vmem:[#allocation6 + $0x1b8] sm:$0xff]
        %v452 = vld [vmem:[#allocation6 + $0x1c0] sm:$0xff]
        %v453 = vld [vmem:[#allocation6 + $0x1c8] sm:$0xff]
        %v454 = vld [vmem:[#allocation6 + $0x1d0] sm:$0xff]
        %v455 = vld [vmem:[#allocation6 + $0x1d8] sm:$0xff]
        %v456 = vld [vmem:[#allocation6 + $0x1e0] sm:$0xff]
        %v457 = vld [vmem:[#allocation6 + $0x1e8] sm:$0xff]
        %v458 = vld [vmem:[#allocation6 + $0x1f0] sm:$0xff]
        %v459 = vld [vmem:[#allocation6 + $0x1f8] sm:$0xff]
        %v460 = vld [vmem:[#allocation6 + $0x200] sm:$0xff]
        %v461 = vld [vmem:[#allocation6 + $0x208] sm:$0xff]
        %v462 = vld [vmem:[#allocation6 + $0x210] sm:$0xff]
        %v463 = vld [vmem:[#allocation6 + $0x218] sm:$0xff]
        %v464 = vld [vmem:[#allocation6 + $0x220] sm:$0xff]
        %v465 = vld [vmem:[#allocation6 + $0x228] sm:$0xff]
        %v466 = vld [vmem:[#allocation6 + $0x230] sm:$0xff]
        %v467 = vld [vmem:[#allocation6 + $0x238] sm:$0xff]
        %v468 = vld [vmem:[#allocation6 + $0x240] sm:$0xff]
        %v469 = vld [vmem:[#allocation6 + $0x248] sm:$0xff]
        %v470 = vld [vmem:[#allocation6 + $0x250] sm:$0xff]
        %v471 = vld [vmem:[#allocation6 + $0x258] sm:$0xff]
        %v472 = vld [vmem:[#allocation6 + $0x260] sm:$0xff]
        %v473 = vld [vmem:[#allocation6 + $0x268] sm:$0xff]
        %v474 = vld [vmem:[#allocation6 + $0x270] sm:$0xff]
        %v475 = vld [vmem:[#allocation6 + $0x278] sm:$0xff]
        %v476 = vld [vmem:[#allocation6 + $0x280] sm:$0xff]
        %v477 = vld [vmem:[#allocation6 + $0x288] sm:$0xff]
        %v478 = vld [vmem:[#allocation6 + $0x290] sm:$0xff]
        %v479 = vld [vmem:[#allocation6 + $0x298] sm:$0xff]
        %v480 = vld [vmem:[#allocation6 + $0x2a0] sm:$0xff]
        %v481 = vld [vmem:[#allocation6 + $0x2a8] sm:$0xff]
        %v482 = vld [vmem:[#allocation6 + $0x2b0] sm:$0xff]
        %v483 = vld [vmem:[#allocation6 + $0x2b8] sm:$0xff]
        %v484 = vld [vmem:[#allocation6 + $0x2c0] sm:$0xff]
        %v485 = vld [vmem:[#allocation6 + $0x2c8] sm:$0xff]
        %v486 = vld [vmem:[#allocation6 + $0x2d0] sm:$0xff]
        %v487 = vld [vmem:[#allocation6 + $0x2d8] sm:$0xff]
        %v488 = vld [vmem:[#allocation6 + $0x2e0] sm:$0xff]
        %v489 = vld [vmem:[#allocation6 + $0x2e8] sm:$0xff]
        %v490 = vld [vmem:[#allocation6 + $0x2f0] sm:$0xff]
        %v491 = vld [vmem:[#allocation6 + $0x2f8] sm:$0xff]
        %v492 = vld [vmem:[#allocation6 + $0x300] sm:$0xff]
        %v493 = vld [vmem:[#allocation6 + $0x308] sm:$0xff]
        %v494 = vld [vmem:[#allocation6 + $0x310] sm:$0xff]
        %v495 = vld [vmem:[#allocation6 + $0x318] sm:$0xff]
        %v496 = vld [vmem:[#allocation6 + $0x320] sm:$0xff]
        %v497 = vld [vmem:[#allocation6 + $0x328] sm:$0xff]
        %v498 = vld [vmem:[#allocation6 + $0x330] sm:$0xff]
        %v499 = vld [vmem:[#allocation6 + $0x338] sm:$0xff]
        %v500 = vld [vmem:[#allocation6 + $0x340] sm:$0xff]
        %v501 = vld [vmem:[#allocation6 + $0x348] sm:$0xff]
        %v502 = vld [vmem:[#allocation6 + $0x350] sm:$0xff]
        %v503 = vld [vmem:[#allocation6 + $0x358] sm:$0xff]
        %v504 = vld [vmem:[#allocation6 + $0x360] sm:$0xff]
        %v505 = vld [vmem:[#allocation6 + $0x368] sm:$0xff]
        %v506 = vld [vmem:[#allocation6 + $0x370] sm:$0xff]
        %v507 = vld [vmem:[#allocation6 + $0x378] sm:$0xff]
        %v508 = vld [vmem:[#allocation6 + $0x380] sm:$0xff]
        %v509 = vld [vmem:[#allocation6 + $0x388] sm:$0xff]
        %v510 = vld [vmem:[#allocation6 + $0x390] sm:$0xff]
        %v511 = vld [vmem:[#allocation6 + $0x398] sm:$0xff]
        %v512 = vld [vmem:[#allocation6 + $0x3a0] sm:$0xff]
        %v513 = vld [vmem:[#allocation6 + $0x3a8] sm:$0xff]
        %v514 = vld [vmem:[#allocation6 + $0x3b0] sm:$0xff]
        %v515 = vld [vmem:[#allocation6 + $0x3b8] sm:$0xff]
        %v516 = vld [vmem:[#allocation6 + $0x3c0] sm:$0xff]
        %v517 = vld [vmem:[#allocation6 + $0x3c8] sm:$0xff]
        %v518 = vld [vmem:[#allocation6 + $0x3d0] sm:$0xff]
        %v519 = vld [vmem:[#allocation6 + $0x3d8] sm:$0xff]
        %v520 = vld [vmem:[#allocation6 + $0x3e0] sm:$0xff]
        %v521 = vld [vmem:[#allocation6 + $0x3e8] sm:$0xff]
        %v522 = vld [vmem:[#allocation6 + $0x3f0] sm:$0xff]
        %v523 = vld [vmem:[#allocation6 + $0x3f8] sm:$0xff]
        %v524 = vld [vmem:[#allocation6 + $0x400] sm:$0xff]
        %v525 = vld [vmem:[#allocation6 + $0x408] sm:$0xff]
        %v526 = vld [vmem:[#allocation6 + $0x410] sm:$0xff]
        %v527 = vld [vmem:[#allocation6 + $0x418] sm:$0xff]
        %v528 = vld [vmem:[#allocation6 + $0x420] sm:$0xff]
        %v529 = vld [vmem:[#allocation6 + $0x428] sm:$0xff]
        %v530 = vld [vmem:[#allocation6 + $0x430] sm:$0xff]
        %v531 = vld [vmem:[#allocation6 + $0x438] sm:$0xff]
        %v532 = vld [vmem:[#allocation6 + $0x440] sm:$0xff]
        %v533 = vld [vmem:[#allocation6 + $0x448] sm:$0xff]
        %v534 = vld [vmem:[#allocation6 + $0x450] sm:$0xff]
        %v535 = vld [vmem:[#allocation6 + $0x458] sm:$0xff]
        %v536 = vld [vmem:[#allocation6 + $0x460] sm:$0xff]
        %v537 = vld [vmem:[#allocation6 + $0x468] sm:$0xff]
        %v538 = vld [vmem:[#allocation6 + $0x470] sm:$0xff]
        %v539 = vld [vmem:[#allocation6 + $0x478] sm:$0xff]
        %v540 = vld [vmem:[#allocation6 + $0x480] sm:$0xff]
        %v541 = vld [vmem:[#allocation6 + $0x488] sm:$0xff]
        %v542 = vld [vmem:[#allocation6 + $0x490] sm:$0xff]
        %v543 = vld [vmem:[#allocation6 + $0x498] sm:$0xff]
        %v544 = vld [vmem:[#allocation6 + $0x4a0] sm:$0xff]
        %v545 = vld [vmem:[#allocation6 + $0x4a8] sm:$0xff]
        %v546 = vld [vmem:[#allocation6 + $0x4b0] sm:$0xff]
        %v547 = vld [vmem:[#allocation6 + $0x4b8] sm:$0xff]
        %v548 = vld [vmem:[#allocation6 + $0x4c0] sm:$0xff]
        %v549 = vld [vmem:[#allocation6 + $0x4c8] sm:$0xff]
        %v550 = vld [vmem:[#allocation6 + $0x4d0] sm:$0xff]
        %v551 = vld [vmem:[#allocation6 + $0x4d8] sm:$0xff]
        %v552 = vld [vmem:[#allocation6 + $0x4e0] sm:$0xff]
        %v553 = vld [vmem:[#allocation6 + $0x4e8] sm:$0xff]
        %v554 = vld [vmem:[#allocation6 + $0x4f0] sm:$0xff]
        %v555 = vld [vmem:[#allocation6 + $0x4f8] sm:$0xff]
        %v556 = vld [vmem:[#allocation6 + $0x500] sm:$0xff]
        %v557 = vld [vmem:[#allocation6 + $0x508] sm:$0xff]
        %v558 = vld [vmem:[#allocation6 + $0x510] sm:$0xff]
        %v559 = vld [vmem:[#allocation6 + $0x518] sm:$0xff]
        %v560 = vld [vmem:[#allocation6 + $0x520] sm:$0xff]
        %v561 = vld [vmem:[#allocation6 + $0x528] sm:$0xff]
        %v562 = vld [vmem:[#allocation6 + $0x530] sm:$0xff]
        %v563 = vld [vmem:[#allocation6 + $0x538] sm:$0xff]
        %v564 = vld [vmem:[#allocation6 + $0x540] sm:$0xff]
        %v565 = vld [vmem:[#allocation6 + $0x548] sm:$0xff]
        %v566 = vld [vmem:[#allocation6 + $0x550] sm:$0xff]
        %v567 = vld [vmem:[#allocation6 + $0x558] sm:$0xff]
        %v568 = vld [vmem:[#allocation6 + $0x560] sm:$0xff]
        %v569 = vld [vmem:[#allocation6 + $0x568] sm:$0xff]
        %v570 = vld [vmem:[#allocation6 + $0x570] sm:$0xff]
        %v571 = vld [vmem:[#allocation6 + $0x578] sm:$0xff]
        %v572 = vld [vmem:[#allocation6 + $0x580] sm:$0xff]
        %v573 = vld [vmem:[#allocation6 + $0x588] sm:$0xff]
        %v574 = vld [vmem:[#allocation6 + $0x590] sm:$0xff]
        %v575 = vld [vmem:[#allocation6 + $0x598] sm:$0xff]
        %v576 = vld [vmem:[#allocation6 + $0x5a0] sm:$0xff]
        %v577 = vld [vmem:[#allocation6 + $0x5a8] sm:$0xff]
        %v578 = vld [vmem:[#allocation6 + $0x5b0] sm:$0xff]
        %v579 = vld [vmem:[#allocation6 + $0x5b8] sm:$0xff]
        %v580 = vld [vmem:[#allocation6 + $0x5c0] sm:$0xff]
        %v581 = vld [vmem:[#allocation6 + $0x5c8] sm:$0xff]
        %v582 = vld [vmem:[#allocation6 + $0x5d0] sm:$0xff]
        %v583 = vld [vmem:[#allocation6 + $0x5d8] sm:$0xff]
        %v584 = vld [vmem:[#allocation6 + $0x5e0] sm:$0xff]
        %v585 = vld [vmem:[#allocation6 + $0x5e8] sm:$0xff]
        %v586 = vld [vmem:[#allocation6 + $0x5f0] sm:$0xff]
        %v587 = vld [vmem:[#allocation6 + $0x5f8] sm:$0xff]
        %v588 = vld [vmem:[#allocation6 + $0x600] sm:$0xff]
        %v589 = vld [vmem:[#allocation6 + $0x608] sm:$0xff]
        %v590 = vld [vmem:[#allocation6 + $0x610] sm:$0xff]
        %v591 = vld [vmem:[#allocation6 + $0x618] sm:$0xff]
        %v592 = vld [vmem:[#allocation6 + $0x620] sm:$0xff]
        %v593 = vld [vmem:[#allocation6 + $0x628] sm:$0xff]
        %v594 = vld [vmem:[#allocation6 + $0x630] sm:$0xff]
        %v595 = vld [vmem:[#allocation6 + $0x638] sm:$0xff]
        %v596 = vld [vmem:[#allocation6 + $0x640] sm:$0xff]
        %v597 = vld [vmem:[#allocation6 + $0x648] sm:$0xff]
        %v598 = vld [vmem:[#allocation6 + $0x650] sm:$0xff]
        %v599 = vld [vmem:[#allocation6 + $0x658] sm:$0xff]
        %v600 = vld [vmem:[#allocation6 + $0x660] sm:$0xff]
        %v601 = vld [vmem:[#allocation6 + $0x668] sm:$0xff]
        %v602 = vld [vmem:[#allocation6 + $0x670] sm:$0xff]
        %v603 = vld [vmem:[#allocation6 + $0x678] sm:$0xff]
        %v604 = vld [vmem:[#allocation6 + $0x680] sm:$0xff]
        %v605 = vld [vmem:[#allocation6 + $0x688] sm:$0xff]
        %v606 = vld [vmem:[#allocation6 + $0x690] sm:$0xff]
        %v607 = vld [vmem:[#allocation6 + $0x698] sm:$0xff]
        %v608 = vld [vmem:[#allocation6 + $0x6a0] sm:$0xff]
        %v609 = vld [vmem:[#allocation6 + $0x6a8] sm:$0xff]
        %v610 = vld [vmem:[#allocation6 + $0x6b0] sm:$0xff]
        %v611 = vld [vmem:[#allocation6 + $0x6b8] sm:$0xff]
        %v612 = vld [vmem:[#allocation6 + $0x6c0] sm:$0xff]
        %v613 = vld [vmem:[#allocation6 + $0x6c8] sm:$0xff]
        %v614 = vld [vmem:[#allocation6 + $0x6d0] sm:$0xff]
        %v615 = vld [vmem:[#allocation6 + $0x6d8] sm:$0xff]
        %v616 = vld [vmem:[#allocation6 + $0x6e0] sm:$0xff]
        %v617 = vld [vmem:[#allocation6 + $0x6e8] sm:$0xff]
        %v618 = vld [vmem:[#allocation6 + $0x6f0] sm:$0xff]
        %v619 = vld [vmem:[#allocation6 + $0x6f8] sm:$0xff]
        %v620 = vld [vmem:[#allocation6 + $0x700] sm:$0xff]
        %v621 = vld [vmem:[#allocation6 + $0x708] sm:$0xff]
        %v622 = vld [vmem:[#allocation6 + $0x710] sm:$0xff]
        %v623 = vld [vmem:[#allocation6 + $0x718] sm:$0xff]
        %v624 = vld [vmem:[#allocation6 + $0x720] sm:$0xff]
        %v625 = vld [vmem:[#allocation6 + $0x728] sm:$0xff]
        %v626 = vld [vmem:[#allocation6 + $0x730] sm:$0xff]
        %v627 = vld [vmem:[#allocation6 + $0x738] sm:$0xff]
        %v628 = vld [vmem:[#allocation6 + $0x740] sm:$0xff]
        %v629 = vld [vmem:[#allocation6 + $0x748] sm:$0xff]
        %v630 = vld [vmem:[#allocation6 + $0x750] sm:$0xff]
        %v631 = vld [vmem:[#allocation6 + $0x758] sm:$0xff]
        %v632 = vld [vmem:[#allocation6 + $0x760] sm:$0xff]
        %v633 = vld [vmem:[#allocation6 + $0x768] sm:$0xff]
        %v634 = vld [vmem:[#allocation6 + $0x770] sm:$0xff]
        %v635 = vld [vmem:[#allocation6 + $0x778] sm:$0xff]
        %v636 = vld [vmem:[#allocation6 + $0x780] sm:$0xff]
        %v637 = vld [vmem:[#allocation6 + $0x788] sm:$0xff]
        %v638 = vld [vmem:[#allocation6 + $0x790] sm:$0xff]
        %v639 = vld [vmem:[#allocation6 + $0x798] sm:$0xff]
        %v640 = vld [vmem:[#allocation6 + $0x7a0] sm:$0xff]
        %v641 = vld [vmem:[#allocation6 + $0x7a8] sm:$0xff]
        %v642 = vld [vmem:[#allocation6 + $0x7b0] sm:$0xff]
        %v643 = vld [vmem:[#allocation6 + $0x7b8] sm:$0xff]
        %v644 = vld [vmem:[#allocation6 + $0x7c0] sm:$0xff]
        %v645 = vld [vmem:[#allocation6 + $0x7c8] sm:$0xff]
        %v646 = vld [vmem:[#allocation6 + $0x7d0] sm:$0xff]
        %v647 = vld [vmem:[#allocation6 + $0x7d8] sm:$0xff]
        %v648 = vld [vmem:[#allocation6 + $0x7e0] sm:$0xff]
        %v649 = vld [vmem:[#allocation6 + $0x7e8] sm:$0xff]
        %v650 = vld [vmem:[#allocation6 + $0x7f0] sm:$0xff]
        %v651 = vld [vmem:[#allocation6 + $0x7f8] sm:$0xff]
        %v652 = vld [vmem:[#allocation8] sm:$0x3]
        %v654 = vlaneseq
        %v655 = vshrl.u32 %v654, 7
        %v656 = vsub.s32 0, %v655
        %v657 = vrot.slane %v652, %v656
        %v658 = vlaneseq
        %v659 = vshrl.u32 %v658, 7
        %v660 = vsub.s32 1, %v659
        %v661 = vrot.slane %v652, %v660
        %664 = vmatprep.subr.mxu0 %v427
        %665 = vmatpush1.msra.mxu0 %v426
        %666 = vmatprep.subr.mxu0 %v425
        %667 = vmatpush1.msra.mxu0 %v424
        %668 = vmatprep.subr.mxu0 %v423
        %669 = vmatpush1.msra.mxu0 %v422
        %670 = vmatprep.subr.mxu0 %v421
        %671 = vmatpush1.msra.mxu0 %v420
        %672 = vmatprep.subr.mxu0 %v419
        %673 = vmatpush1.msra.mxu0 %v418
        %674 = vmatprep.subr.mxu0 %v417
        %675 = vmatpush1.msra.mxu0 %v416
        %676 = vmatprep.subr.mxu0 %v415
        %677 = vmatpush1.msra.mxu0 %v414
        %678 = vmatprep.subr.mxu0 %v413
        %679 = vmatpush1.msra.mxu0 %v412
        %680 = vmatprep.subr.mxu0 %v411
        %681 = vmatpush1.msra.mxu0 %v410
        %682 = vmatprep.subr.mxu0 %v409
        %683 = vmatpush1.msra.mxu0 %v408
        %684 = vmatprep.subr.mxu0 %v407
        %685 = vmatpush1.msra.mxu0 %v406
        %686 = vmatprep.subr.mxu0 %v405
        %687 = vmatpush1.msra.mxu0 %v404
        %688 = vmatprep.subr.mxu0 %v403
        %689 = vmatpush1.msra.mxu0 %v402
        %690 = vmatprep.subr.mxu0 %v401
        %691 = vmatpush1.msra.mxu0 %v400
        %692 = vmatprep.subr.mxu0 %v399
        %693 = vmatpush1.msra.mxu0 %v398
        %694 = vmatprep.subr.mxu0 %v397
        %695 = vmatpush1.msra.mxu0 %v396
        %696 = vmatprep.subr.mxu0 %v459
        %697 = vmatpush2.msra.mxu0 %v458
        %698 = vmatprep.subr.mxu0 %v457
        %699 = vmatpush2.msra.mxu0 %v456
        %700 = vmatprep.subr.mxu0 %v455
        %701 = vmatpush2.msra.mxu0 %v454
        %702 = vmatprep.subr.mxu0 %v453
        %703 = vmatpush2.msra.mxu0 %v452
        %704 = vmatprep.subr.mxu0 %v451
        %705 = vmatpush2.msra.mxu0 %v450
        %706 = vmatprep.subr.mxu0 %v449
        %707 = vmatpush2.msra.mxu0 %v448
        %708 = vmatprep.subr.mxu0 %v447
        %709 = vmatpush2.msra.mxu0 %v446
        %710 = vmatprep.subr.mxu0 %v445
        %711 = vmatpush2.msra.mxu0 %v444
        %712 = vmatprep.subr.mxu0 %v443
        %713 = vmatpush2.msra.mxu0 %v442
        %714 = vmatprep.subr.mxu0 %v441
        %715 = vmatpush2.msra.mxu0 %v440
        %716 = vmatprep.subr.mxu0 %v439
        %717 = vmatpush2.msra.mxu0 %v438
        %718 = vmatprep.subr.mxu0 %v437
        %719 = vmatpush2.msra.mxu0 %v436
        %720 = vmatprep.subr.mxu0 %v435
        %721 = vmatpush2.msra.mxu0 %v434
        %722 = vmatprep.subr.mxu0 %v433
        %723 = vmatpush2.msra.mxu0 %v432
        %724 = vmatprep.subr.mxu0 %v431
        %725 = vmatpush2.msra.mxu0 %v430
        %726 = vmatprep.subr.mxu0 %v429
        %727 = vmatpush2.msra.mxu0 %v428
        %728 = vmatprep.mubr.f32.mxu0 %v381
        %729 = vmatmul.mubr.f32.gmra.mxu0 %v380
        %v730 = vpop.f32.mrf.mxu0
        %v731 = vadd.f32 %v657, %v730
        %v732 = vpop.f32.mrf.mxu0
        %v733 = vadd.f32 %v661, %v732
        %734 = vmatprep.mubr.f32.mxu0 %v389
        %735 = vmatmul.mubr.f32.gmra.mxu0 %v388
        %v736 = vpop.f32.mrf.mxu0
        %v737 = vadd.f32 %v657, %v736
        %v738 = vpop.f32.mrf.mxu0
        %v739 = vadd.f32 %v661, %v738
        %740 = vdwg.mxu0
        %741 = vmatprep.subr.mxu0 %v491
        %742 = vmatpush1.msra.mxu0 %v490
        %743 = vmatprep.subr.mxu0 %v489
        %744 = vmatpush1.msra.mxu0 %v488
        %745 = vmatprep.subr.mxu0 %v487
        %746 = vmatpush1.msra.mxu0 %v486
        %747 = vmatprep.subr.mxu0 %v485
        %748 = vmatpush1.msra.mxu0 %v484
        %749 = vmatprep.subr.mxu0 %v483
        %750 = vmatpush1.msra.mxu0 %v482
        %751 = vmatprep.subr.mxu0 %v481
        %752 = vmatpush1.msra.mxu0 %v480
        %753 = vmatprep.subr.mxu0 %v479
        %754 = vmatpush1.msra.mxu0 %v478
        %755 = vmatprep.subr.mxu0 %v477
        %756 = vmatpush1.msra.mxu0 %v476
        %757 = vmatprep.subr.mxu0 %v475
        %758 = vmatpush1.msra.mxu0 %v474
        %759 = vmatprep.subr.mxu0 %v473
        %760 = vmatpush1.msra.mxu0 %v472
        %761 = vmatprep.subr.mxu0 %v471
        %762 = vmatpush1.msra.mxu0 %v470
        %763 = vmatprep.subr.mxu0 %v469
        %764 = vmatpush1.msra.mxu0 %v468
        %765 = vmatprep.subr.mxu0 %v467
        %766 = vmatpush1.msra.mxu0 %v466
        %767 = vmatprep.subr.mxu0 %v465
        %768 = vmatpush1.msra.mxu0 %v464
        %769 = vmatprep.subr.mxu0 %v463
        %770 = vmatpush1.msra.mxu0 %v462
        %771 = vmatprep.subr.mxu0 %v461
        %772 = vmatpush1.msra.mxu0 %v460
        %773 = vmatprep.subr.mxu0 %v523
        %774 = vmatpush2.msra.mxu0 %v522
        %775 = vmatprep.subr.mxu0 %v521
        %776 = vmatpush2.msra.mxu0 %v520
        %777 = vmatprep.subr.mxu0 %v519
        %778 = vmatpush2.msra.mxu0 %v518
        %779 = vmatprep.subr.mxu0 %v517
        %780 = vmatpush2.msra.mxu0 %v516
        %781 = vmatprep.subr.mxu0 %v515
        %782 = vmatpush2.msra.mxu0 %v514
        %783 = vmatprep.subr.mxu0 %v513
        %784 = vmatpush2.msra.mxu0 %v512
        %785 = vmatprep.subr.mxu0 %v511
        %786 = vmatpush2.msra.mxu0 %v510
        %787 = vmatprep.subr.mxu0 %v509
        %788 = vmatpush2.msra.mxu0 %v508
        %789 = vmatprep.subr.mxu0 %v507
        %790 = vmatpush2.msra.mxu0 %v506
        %791 = vmatprep.subr.mxu0 %v505
        %792 = vmatpush2.msra.mxu0 %v504
        %793 = vmatprep.subr.mxu0 %v503
        %794 = vmatpush2.msra.mxu0 %v502
        %795 = vmatprep.subr.mxu0 %v501
        %796 = vmatpush2.msra.mxu0 %v500
        %797 = vmatprep.subr.mxu0 %v499
        %798 = vmatpush2.msra.mxu0 %v498
        %799 = vmatprep.subr.mxu0 %v497
        %800 = vmatpush2.msra.mxu0 %v496
        %801 = vmatprep.subr.mxu0 %v495
        %802 = vmatpush2.msra.mxu0 %v494
        %803 = vmatprep.subr.mxu0 %v493
        %804 = vmatpush2.msra.mxu0 %v492
        %805 = vmatprep.mubr.f32.mxu0 %v383
        %806 = vmatmul.mubr.f32.gmra.mxu0 %v382
        %v807 = vpop.f32.mrf.mxu0
        %v808 = vadd.f32 %v731, %v807
        %v809 = vpop.f32.mrf.mxu0
        %v810 = vadd.f32 %v733, %v809
        %811 = vmatprep.mubr.f32.mxu0 %v391
        %812 = vmatmul.mubr.f32.gmra.mxu0 %v390
        %v813 = vpop.f32.mrf.mxu0
        %v814 = vadd.f32 %v737, %v813
        %v815 = vpop.f32.mrf.mxu0
        %v816 = vadd.f32 %v739, %v815
        %817 = vdwg.mxu0
        %818 = vmatprep.subr.mxu0 %v555
        %819 = vmatpush1.msra.mxu0 %v554
        %820 = vmatprep.subr.mxu0 %v553
        %821 = vmatpush1.msra.mxu0 %v552
        %822 = vmatprep.subr.mxu0 %v551
        %823 = vmatpush1.msra.mxu0 %v550
        %824 = vmatprep.subr.mxu0 %v549
        %825 = vmatpush1.msra.mxu0 %v548
        %826 = vmatprep.subr.mxu0 %v547
        %827 = vmatpush1.msra.mxu0 %v546
        %828 = vmatprep.subr.mxu0 %v545
        %829 = vmatpush1.msra.mxu0 %v544
        %830 = vmatprep.subr.mxu0 %v543
        %831 = vmatpush1.msra.mxu0 %v542
        %832 = vmatprep.subr.mxu0 %v541
        %833 = vmatpush1.msra.mxu0 %v540
        %834 = vmatprep.subr.mxu0 %v539
        %835 = vmatpush1.msra.mxu0 %v538
        %836 = vmatprep.subr.mxu0 %v537
        %837 = vmatpush1.msra.mxu0 %v536
        %838 = vmatprep.subr.mxu0 %v535
        %839 = vmatpush1.msra.mxu0 %v534
        %840 = vmatprep.subr.mxu0 %v533
        %841 = vmatpush1.msra.mxu0 %v532
        %842 = vmatprep.subr.mxu0 %v531
        %843 = vmatpush1.msra.mxu0 %v530
        %844 = vmatprep.subr.mxu0 %v529
        %845 = vmatpush1.msra.mxu0 %v528
        %846 = vmatprep.subr.mxu0 %v527
        %847 = vmatpush1.msra.mxu0 %v526
        %848 = vmatprep.subr.mxu0 %v525
        %849 = vmatpush1.msra.mxu0 %v524
        %850 = vmatprep.subr.mxu0 %v587
        %851 = vmatpush2.msra.mxu0 %v586
        %852 = vmatprep.subr.mxu0 %v585
        %853 = vmatpush2.msra.mxu0 %v584
        %854 = vmatprep.subr.mxu0 %v583
        %855 = vmatpush2.msra.mxu0 %v582
        %856 = vmatprep.subr.mxu0 %v581
        %857 = vmatpush2.msra.mxu0 %v580
        %858 = vmatprep.subr.mxu0 %v579
        %859 = vmatpush2.msra.mxu0 %v578
        %860 = vmatprep.subr.mxu0 %v577
        %861 = vmatpush2.msra.mxu0 %v576
        %862 = vmatprep.subr.mxu0 %v575
        %863 = vmatpush2.msra.mxu0 %v574
        %864 = vmatprep.subr.mxu0 %v573
        %865 = vmatpush2.msra.mxu0 %v572
        %866 = vmatprep.subr.mxu0 %v571
        %867 = vmatpush2.msra.mxu0 %v570
        %868 = vmatprep.subr.mxu0 %v569
        %869 = vmatpush2.msra.mxu0 %v568
        %870 = vmatprep.subr.mxu0 %v567
        %871 = vmatpush2.msra.mxu0 %v566
        %872 = vmatprep.subr.mxu0 %v565
        %873 = vmatpush2.msra.mxu0 %v564
        %874 = vmatprep.subr.mxu0 %v563
        %875 = vmatpush2.msra.mxu0 %v562
        %876 = vmatprep.subr.mxu0 %v561
        %877 = vmatpush2.msra.mxu0 %v560
        %878 = vmatprep.subr.mxu0 %v559
        %879 = vmatpush2.msra.mxu0 %v558
        %880 = vmatprep.subr.mxu0 %v557
        %881 = vmatpush2.msra.mxu0 %v556
        %882 = vmatprep.mubr.f32.mxu0 %v385
        %883 = vmatmul.mubr.f32.gmra.mxu0 %v384
        %v884 = vpop.f32.mrf.mxu0
        %v885 = vadd.f32 %v808, %v884
        %v886 = vpop.f32.mrf.mxu0
        %v887 = vadd.f32 %v810, %v886
        %888 = vmatprep.mubr.f32.mxu0 %v393
        %889 = vmatmul.mubr.f32.gmra.mxu0 %v392
        %v890 = vpop.f32.mrf.mxu0
        %v891 = vadd.f32 %v814, %v890
        %v892 = vpop.f32.mrf.mxu0
        %v893 = vadd.f32 %v816, %v892
        %894 = vdwg.mxu0
        %895 = vmatprep.subr.mxu0 %v619
        %896 = vmatpush1.msra.mxu0 %v618
        %897 = vmatprep.subr.mxu0 %v617
        %898 = vmatpush1.msra.mxu0 %v616
        %899 = vmatprep.subr.mxu0 %v615
        %900 = vmatpush1.msra.mxu0 %v614
        %901 = vmatprep.subr.mxu0 %v613
        %902 = vmatpush1.msra.mxu0 %v612
        %903 = vmatprep.subr.mxu0 %v611
        %904 = vmatpush1.msra.mxu0 %v610
        %905 = vmatprep.subr.mxu0 %v609
        %906 = vmatpush1.msra.mxu0 %v608
        %907 = vmatprep.subr.mxu0 %v607
        %908 = vmatpush1.msra.mxu0 %v606
        %909 = vmatprep.subr.mxu0 %v605
        %910 = vmatpush1.msra.mxu0 %v604
        %911 = vmatprep.subr.mxu0 %v603
        %912 = vmatpush1.msra.mxu0 %v602
        %913 = vmatprep.subr.mxu0 %v601
        %914 = vmatpush1.msra.mxu0 %v600
        %915 = vmatprep.subr.mxu0 %v599
        %916 = vmatpush1.msra.mxu0 %v598
        %917 = vmatprep.subr.mxu0 %v597
        %918 = vmatpush1.msra.mxu0 %v596
        %919 = vmatprep.subr.mxu0 %v595
        %920 = vmatpush1.msra.mxu0 %v594
        %921 = vmatprep.subr.mxu0 %v593
        %922 = vmatpush1.msra.mxu0 %v592
        %923 = vmatprep.subr.mxu0 %v591
        %924 = vmatpush1.msra.mxu0 %v590
        %925 = vmatprep.subr.mxu0 %v589
        %926 = vmatpush1.msra.mxu0 %v588
        %927 = vmatprep.subr.mxu0 %v651
        %928 = vmatpush2.msra.mxu0 %v650
        %929 = vmatprep.subr.mxu0 %v649
        %930 = vmatpush2.msra.mxu0 %v648
        %931 = vmatprep.subr.mxu0 %v647
        %932 = vmatpush2.msra.mxu0 %v646
        %933 = vmatprep.subr.mxu0 %v645
        %934 = vmatpush2.msra.mxu0 %v644
        %935 = vmatprep.subr.mxu0 %v643
        %936 = vmatpush2.msra.mxu0 %v642
        %937 = vmatprep.subr.mxu0 %v641
        %938 = vmatpush2.msra.mxu0 %v640
        %939 = vmatprep.subr.mxu0 %v639
        %940 = vmatpush2.msra.mxu0 %v638
        %941 = vmatprep.subr.mxu0 %v637
        %942 = vmatpush2.msra.mxu0 %v636
        %943 = vmatprep.subr.mxu0 %v635
        %944 = vmatpush2.msra.mxu0 %v634
        %945 = vmatprep.subr.mxu0 %v633
        %946 = vmatpush2.msra.mxu0 %v632
        %947 = vmatprep.subr.mxu0 %v631
        %948 = vmatpush2.msra.mxu0 %v630
        %949 = vmatprep.subr.mxu0 %v629
        %950 = vmatpush2.msra.mxu0 %v628
        %951 = vmatprep.subr.mxu0 %v627
        %952 = vmatpush2.msra.mxu0 %v626
        %953 = vmatprep.subr.mxu0 %v625
        %954 = vmatpush2.msra.mxu0 %v624
        %955 = vmatprep.subr.mxu0 %v623
        %956 = vmatpush2.msra.mxu0 %v622
        %957 = vmatprep.subr.mxu0 %v621
        %958 = vmatpush2.msra.mxu0 %v620
        %959 = vmatprep.mubr.f32.mxu0 %v387
        %960 = vmatmul.mubr.f32.gmra.mxu0 %v386
        %v961 = vpop.f32.mrf.mxu0
        %v962 = vadd.f32 %v885, %v961
        %v963 = vpop.f32.mrf.mxu0
        %v964 = vadd.f32 %v887, %v963
        %965 = vmatprep.mubr.f32.mxu0 %v395
        %966 = vmatmul.mubr.f32.gmra.mxu0 %v394
        %v967 = vpop.f32.mrf.mxu0
        %v968 = vadd.f32 %v891, %v967
        %v969 = vpop.f32.mrf.mxu0
        %v970 = vadd.f32 %v893, %v969
        %971 = vdwg.mxu0
        %v972 = vld [vmem:[#allocation9] sm:$0xff]
        %v973 = vld [vmem:[#allocation9 + $0x8] sm:$0xff]
        %v974 = vld [vmem:[#allocation9 + $0x10] sm:$0xff]
        %v975 = vld [vmem:[#allocation9 + $0x18] sm:$0xff]
        %v976 = vld [vmem:[#allocation9 + $0x20] sm:$0xff]
        %v977 = vld [vmem:[#allocation9 + $0x28] sm:$0xff]
        %v978 = vld [vmem:[#allocation9 + $0x30] sm:$0xff]
        %v979 = vld [vmem:[#allocation9 + $0x38] sm:$0xff]
        %v980 = vld [vmem:[#allocation9 + $0x40] sm:$0xff]
        %v981 = vld [vmem:[#allocation9 + $0x48] sm:$0xff]
        %v982 = vld [vmem:[#allocation9 + $0x50] sm:$0xff]
        %v983 = vld [vmem:[#allocation9 + $0x58] sm:$0xff]
        %v984 = vld [vmem:[#allocation9 + $0x60] sm:$0xff]
        %v985 = vld [vmem:[#allocation9 + $0x68] sm:$0xff]
        %v986 = vld [vmem:[#allocation9 + $0x70] sm:$0xff]
        %v987 = vld [vmem:[#allocation9 + $0x78] sm:$0xff]
        %v988 = vld [vmem:[#allocation9 + $0x80] sm:$0xff]
        %v989 = vld [vmem:[#allocation9 + $0x88] sm:$0xff]
        %v990 = vld [vmem:[#allocation9 + $0x90] sm:$0xff]
        %v991 = vld [vmem:[#allocation9 + $0x98] sm:$0xff]
        %v992 = vld [vmem:[#allocation9 + $0xa0] sm:$0xff]
        %v993 = vld [vmem:[#allocation9 + $0xa8] sm:$0xff]
        %v994 = vld [vmem:[#allocation9 + $0xb0] sm:$0xff]
        %v995 = vld [vmem:[#allocation9 + $0xb8] sm:$0xff]
        %v996 = vld [vmem:[#allocation9 + $0xc0] sm:$0xff]
        %v997 = vld [vmem:[#allocation9 + $0xc8] sm:$0xff]
        %v998 = vld [vmem:[#allocation9 + $0xd0] sm:$0xff]
        %v999 = vld [vmem:[#allocation9 + $0xd8] sm:$0xff]
        %v1000 = vld [vmem:[#allocation9 + $0xe0] sm:$0xff]
        %v1001 = vld [vmem:[#allocation9 + $0xe8] sm:$0xff]
        %v1002 = vld [vmem:[#allocation9 + $0xf0] sm:$0xff]
        %v1003 = vld [vmem:[#allocation9 + $0xf8] sm:$0xff]
        %v1004 = vld [vmem:[#allocation9 + $0x100] sm:$0xff]
        %v1005 = vld [vmem:[#allocation9 + $0x108] sm:$0xff]
        %v1006 = vld [vmem:[#allocation9 + $0x110] sm:$0xff]
        %v1007 = vld [vmem:[#allocation9 + $0x118] sm:$0xff]
        %v1008 = vld [vmem:[#allocation9 + $0x120] sm:$0xff]
        %v1009 = vld [vmem:[#allocation9 + $0x128] sm:$0xff]
        %v1010 = vld [vmem:[#allocation9 + $0x130] sm:$0xff]
        %v1011 = vld [vmem:[#allocation9 + $0x138] sm:$0xff]
        %v1012 = vld [vmem:[#allocation9 + $0x140] sm:$0xff]
        %v1013 = vld [vmem:[#allocation9 + $0x148] sm:$0xff]
        %v1014 = vld [vmem:[#allocation9 + $0x150] sm:$0xff]
        %v1015 = vld [vmem:[#allocation9 + $0x158] sm:$0xff]
        %v1016 = vld [vmem:[#allocation9 + $0x160] sm:$0xff]
        %v1017 = vld [vmem:[#allocation9 + $0x168] sm:$0xff]
        %v1018 = vld [vmem:[#allocation9 + $0x170] sm:$0xff]
        %v1019 = vld [vmem:[#allocation9 + $0x178] sm:$0xff]
        %v1020 = vld [vmem:[#allocation9 + $0x180] sm:$0xff]
        %v1021 = vld [vmem:[#allocation9 + $0x188] sm:$0xff]
        %v1022 = vld [vmem:[#allocation9 + $0x190] sm:$0xff]
        %v1023 = vld [vmem:[#allocation9 + $0x198] sm:$0xff]
        %v1024 = vld [vmem:[#allocation9 + $0x1a0] sm:$0xff]
        %v1025 = vld [vmem:[#allocation9 + $0x1a8] sm:$0xff]
        %v1026 = vld [vmem:[#allocation9 + $0x1b0] sm:$0xff]
        %v1027 = vld [vmem:[#allocation9 + $0x1b8] sm:$0xff]
        %v1028 = vld [vmem:[#allocation9 + $0x1c0] sm:$0xff]
        %v1029 = vld [vmem:[#allocation9 + $0x1c8] sm:$0xff]
        %v1030 = vld [vmem:[#allocation9 + $0x1d0] sm:$0xff]
        %v1031 = vld [vmem:[#allocation9 + $0x1d8] sm:$0xff]
        %v1032 = vld [vmem:[#allocation9 + $0x1e0] sm:$0xff]
        %v1033 = vld [vmem:[#allocation9 + $0x1e8] sm:$0xff]
        %v1034 = vld [vmem:[#allocation9 + $0x1f0] sm:$0xff]
        %v1035 = vld [vmem:[#allocation9 + $0x1f8] sm:$0xff]
        %v1036 = vld [vmem:[#allocation9 + $0x200] sm:$0xff]
        %v1037 = vld [vmem:[#allocation9 + $0x208] sm:$0xff]
        %v1038 = vld [vmem:[#allocation9 + $0x210] sm:$0xff]
        %v1039 = vld [vmem:[#allocation9 + $0x218] sm:$0xff]
        %v1040 = vld [vmem:[#allocation9 + $0x220] sm:$0xff]
        %v1041 = vld [vmem:[#allocation9 + $0x228] sm:$0xff]
        %v1042 = vld [vmem:[#allocation9 + $0x230] sm:$0xff]
        %v1043 = vld [vmem:[#allocation9 + $0x238] sm:$0xff]
        %v1044 = vld [vmem:[#allocation9 + $0x240] sm:$0xff]
        %v1045 = vld [vmem:[#allocation9 + $0x248] sm:$0xff]
        %v1046 = vld [vmem:[#allocation9 + $0x250] sm:$0xff]
        %v1047 = vld [vmem:[#allocation9 + $0x258] sm:$0xff]
        %v1048 = vld [vmem:[#allocation9 + $0x260] sm:$0xff]
        %v1049 = vld [vmem:[#allocation9 + $0x268] sm:$0xff]
        %v1050 = vld [vmem:[#allocation9 + $0x270] sm:$0xff]
        %v1051 = vld [vmem:[#allocation9 + $0x278] sm:$0xff]
        %v1052 = vld [vmem:[#allocation9 + $0x280] sm:$0xff]
        %v1053 = vld [vmem:[#allocation9 + $0x288] sm:$0xff]
        %v1054 = vld [vmem:[#allocation9 + $0x290] sm:$0xff]
        %v1055 = vld [vmem:[#allocation9 + $0x298] sm:$0xff]
        %v1056 = vld [vmem:[#allocation9 + $0x2a0] sm:$0xff]
        %v1057 = vld [vmem:[#allocation9 + $0x2a8] sm:$0xff]
        %v1058 = vld [vmem:[#allocation9 + $0x2b0] sm:$0xff]
        %v1059 = vld [vmem:[#allocation9 + $0x2b8] sm:$0xff]
        %v1060 = vld [vmem:[#allocation9 + $0x2c0] sm:$0xff]
        %v1061 = vld [vmem:[#allocation9 + $0x2c8] sm:$0xff]
        %v1062 = vld [vmem:[#allocation9 + $0x2d0] sm:$0xff]
        %v1063 = vld [vmem:[#allocation9 + $0x2d8] sm:$0xff]
        %v1064 = vld [vmem:[#allocation9 + $0x2e0] sm:$0xff]
        %v1065 = vld [vmem:[#allocation9 + $0x2e8] sm:$0xff]
        %v1066 = vld [vmem:[#allocation9 + $0x2f0] sm:$0xff]
        %v1067 = vld [vmem:[#allocation9 + $0x2f8] sm:$0xff]
        %v1068 = vld [vmem:[#allocation9 + $0x300] sm:$0xff]
        %v1069 = vld [vmem:[#allocation9 + $0x308] sm:$0xff]
        %v1070 = vld [vmem:[#allocation9 + $0x310] sm:$0xff]
        %v1071 = vld [vmem:[#allocation9 + $0x318] sm:$0xff]
        %v1072 = vld [vmem:[#allocation9 + $0x320] sm:$0xff]
        %v1073 = vld [vmem:[#allocation9 + $0x328] sm:$0xff]
        %v1074 = vld [vmem:[#allocation9 + $0x330] sm:$0xff]
        %v1075 = vld [vmem:[#allocation9 + $0x338] sm:$0xff]
        %v1076 = vld [vmem:[#allocation9 + $0x340] sm:$0xff]
        %v1077 = vld [vmem:[#allocation9 + $0x348] sm:$0xff]
        %v1078 = vld [vmem:[#allocation9 + $0x350] sm:$0xff]
        %v1079 = vld [vmem:[#allocation9 + $0x358] sm:$0xff]
        %v1080 = vld [vmem:[#allocation9 + $0x360] sm:$0xff]
        %v1081 = vld [vmem:[#allocation9 + $0x368] sm:$0xff]
        %v1082 = vld [vmem:[#allocation9 + $0x370] sm:$0xff]
        %v1083 = vld [vmem:[#allocation9 + $0x378] sm:$0xff]
        %v1084 = vld [vmem:[#allocation9 + $0x380] sm:$0xff]
        %v1085 = vld [vmem:[#allocation9 + $0x388] sm:$0xff]
        %v1086 = vld [vmem:[#allocation9 + $0x390] sm:$0xff]
        %v1087 = vld [vmem:[#allocation9 + $0x398] sm:$0xff]
        %v1088 = vld [vmem:[#allocation9 + $0x3a0] sm:$0xff]
        %v1089 = vld [vmem:[#allocation9 + $0x3a8] sm:$0xff]
        %v1090 = vld [vmem:[#allocation9 + $0x3b0] sm:$0xff]
        %v1091 = vld [vmem:[#allocation9 + $0x3b8] sm:$0xff]
        %v1092 = vld [vmem:[#allocation9 + $0x3c0] sm:$0xff]
        %v1093 = vld [vmem:[#allocation9 + $0x3c8] sm:$0xff]
        %v1094 = vld [vmem:[#allocation9 + $0x3d0] sm:$0xff]
        %v1095 = vld [vmem:[#allocation9 + $0x3d8] sm:$0xff]
        %v1096 = vld [vmem:[#allocation9 + $0x3e0] sm:$0xff]
        %v1097 = vld [vmem:[#allocation9 + $0x3e8] sm:$0xff]
        %v1098 = vld [vmem:[#allocation9 + $0x3f0] sm:$0xff]
        %v1099 = vld [vmem:[#allocation9 + $0x3f8] sm:$0xff]
        %v1100 = vld [vmem:[#allocation9 + $0x400] sm:$0xff]
        %v1101 = vld [vmem:[#allocation9 + $0x408] sm:$0xff]
        %v1102 = vld [vmem:[#allocation9 + $0x410] sm:$0xff]
        %v1103 = vld [vmem:[#allocation9 + $0x418] sm:$0xff]
        %v1104 = vld [vmem:[#allocation9 + $0x420] sm:$0xff]
        %v1105 = vld [vmem:[#allocation9 + $0x428] sm:$0xff]
        %v1106 = vld [vmem:[#allocation9 + $0x430] sm:$0xff]
        %v1107 = vld [vmem:[#allocation9 + $0x438] sm:$0xff]
        %v1108 = vld [vmem:[#allocation9 + $0x440] sm:$0xff]
        %v1109 = vld [vmem:[#allocation9 + $0x448] sm:$0xff]
        %v1110 = vld [vmem:[#allocation9 + $0x450] sm:$0xff]
        %v1111 = vld [vmem:[#allocation9 + $0x458] sm:$0xff]
        %v1112 = vld [vmem:[#allocation9 + $0x460] sm:$0xff]
        %v1113 = vld [vmem:[#allocation9 + $0x468] sm:$0xff]
        %v1114 = vld [vmem:[#allocation9 + $0x470] sm:$0xff]
        %v1115 = vld [vmem:[#allocation9 + $0x478] sm:$0xff]
        %v1116 = vld [vmem:[#allocation9 + $0x480] sm:$0xff]
        %v1117 = vld [vmem:[#allocation9 + $0x488] sm:$0xff]
        %v1118 = vld [vmem:[#allocation9 + $0x490] sm:$0xff]
        %v1119 = vld [vmem:[#allocation9 + $0x498] sm:$0xff]
        %v1120 = vld [vmem:[#allocation9 + $0x4a0] sm:$0xff]
        %v1121 = vld [vmem:[#allocation9 + $0x4a8] sm:$0xff]
        %v1122 = vld [vmem:[#allocation9 + $0x4b0] sm:$0xff]
        %v1123 = vld [vmem:[#allocation9 + $0x4b8] sm:$0xff]
        %v1124 = vld [vmem:[#allocation9 + $0x4c0] sm:$0xff]
        %v1125 = vld [vmem:[#allocation9 + $0x4c8] sm:$0xff]
        %v1126 = vld [vmem:[#allocation9 + $0x4d0] sm:$0xff]
        %v1127 = vld [vmem:[#allocation9 + $0x4d8] sm:$0xff]
        %v1128 = vld [vmem:[#allocation9 + $0x4e0] sm:$0xff]
        %v1129 = vld [vmem:[#allocation9 + $0x4e8] sm:$0xff]
        %v1130 = vld [vmem:[#allocation9 + $0x4f0] sm:$0xff]
        %v1131 = vld [vmem:[#allocation9 + $0x4f8] sm:$0xff]
        %v1132 = vld [vmem:[#allocation9 + $0x500] sm:$0xff]
        %v1133 = vld [vmem:[#allocation9 + $0x508] sm:$0xff]
        %v1134 = vld [vmem:[#allocation9 + $0x510] sm:$0xff]
        %v1135 = vld [vmem:[#allocation9 + $0x518] sm:$0xff]
        %v1136 = vld [vmem:[#allocation9 + $0x520] sm:$0xff]
        %v1137 = vld [vmem:[#allocation9 + $0x528] sm:$0xff]
        %v1138 = vld [vmem:[#allocation9 + $0x530] sm:$0xff]
        %v1139 = vld [vmem:[#allocation9 + $0x538] sm:$0xff]
        %v1140 = vld [vmem:[#allocation9 + $0x540] sm:$0xff]
        %v1141 = vld [vmem:[#allocation9 + $0x548] sm:$0xff]
        %v1142 = vld [vmem:[#allocation9 + $0x550] sm:$0xff]
        %v1143 = vld [vmem:[#allocation9 + $0x558] sm:$0xff]
        %v1144 = vld [vmem:[#allocation9 + $0x560] sm:$0xff]
        %v1145 = vld [vmem:[#allocation9 + $0x568] sm:$0xff]
        %v1146 = vld [vmem:[#allocation9 + $0x570] sm:$0xff]
        %v1147 = vld [vmem:[#allocation9 + $0x578] sm:$0xff]
        %v1148 = vld [vmem:[#allocation9 + $0x580] sm:$0xff]
        %v1149 = vld [vmem:[#allocation9 + $0x588] sm:$0xff]
        %v1150 = vld [vmem:[#allocation9 + $0x590] sm:$0xff]
        %v1151 = vld [vmem:[#allocation9 + $0x598] sm:$0xff]
        %v1152 = vld [vmem:[#allocation9 + $0x5a0] sm:$0xff]
        %v1153 = vld [vmem:[#allocation9 + $0x5a8] sm:$0xff]
        %v1154 = vld [vmem:[#allocation9 + $0x5b0] sm:$0xff]
        %v1155 = vld [vmem:[#allocation9 + $0x5b8] sm:$0xff]
        %v1156 = vld [vmem:[#allocation9 + $0x5c0] sm:$0xff]
        %v1157 = vld [vmem:[#allocation9 + $0x5c8] sm:$0xff]
        %v1158 = vld [vmem:[#allocation9 + $0x5d0] sm:$0xff]
        %v1159 = vld [vmem:[#allocation9 + $0x5d8] sm:$0xff]
        %v1160 = vld [vmem:[#allocation9 + $0x5e0] sm:$0xff]
        %v1161 = vld [vmem:[#allocation9 + $0x5e8] sm:$0xff]
        %v1162 = vld [vmem:[#allocation9 + $0x5f0] sm:$0xff]
        %v1163 = vld [vmem:[#allocation9 + $0x5f8] sm:$0xff]
        %v1164 = vld [vmem:[#allocation11] sm:$0x3]
        %v1165 = vlaneseq
        %vm1166 = vcmp.ge.s32.totalorder %v1165, 0
        %vm1167 = vcmp.lt.s32.totalorder %v1165, 256
        %vm1168 = vmand %vm1166, %vm1167
        %1169 = vst.msk [vmem:[#allocation2] ss:$8 sm:$0x3] %vm1168, 0.0
        %1170 = vst.msk [vmem:[#allocation2] ss:$8 sm:$0x0] %vm1168, 0.0
        %s1171 = scalar_lea.vmem [#allocation2], 87
        %1172 = vst.msk [vmem:[%s1171] ss:$8 sm:$0x3] %vm1168, 0.0
        %1173 = vst.msk [vmem:[%s1171] ss:$8 sm:$0x0] %vm1168, 0.0
        %vm1178 = vcmask 1040384
        %v1179 = vrot.slane %v962, 7
        %v1180 = vrot.slane %v964, 7
        %v1181 = vrot.slane %v968, 7
        %v1182 = vsel %vm1178, %v1179, %v1181
        %v1183 = vrot.slane %v970, 7
        %v1184 = vsel %vm1178, %v1180, %v1183
        %1189 = vst [vmem:[#allocation2] sm:$0xfe] %v1179
        %1190 = vst [vmem:[#allocation2 + $0x8] sm:$0xfe] %v1180
        %1191 = vst [vmem:[#allocation2 + $0x30] sm:$0xff] %v1182
        %1192 = vst [vmem:[#allocation2 + $0x38] sm:$0xff] %v1184
        %vm1193 = vcmask 1046528
        %v1194 = vrot.slane %v962, 1
        %v1195 = vrot.slane %v968, 1
        %v1196 = vsel %vm1193, %v1194, %v1195
        %v1197 = vrot.slane %v964, 1
        %v1198 = vrot.slane %v970, 1
        %v1199 = vsel %vm1193, %v1197, %v1198
        %1204 = vst [vmem:[#allocation2 + $0x20] sm:$0xff] %v1196
        %1205 = vst [vmem:[#allocation2 + $0x28] sm:$0xff] %v1199
        %1206 = vst [vmem:[#allocation2 + $0x50] sm:$0x7f] %v1195
        %1207 = vst [vmem:[#allocation2 + $0x58] sm:$0x7f] %v1198
        %1208 = vst [vmem:[#allocation2 + $0x10] sm:$0xff] %v962
        %1209 = vst [vmem:[#allocation2 + $0x18] sm:$0xff] %v964
        %1210 = vst [vmem:[#allocation2 + $0x40] sm:$0xff] %v968
        %1211 = vst [vmem:[#allocation2 + $0x48] sm:$0xff] %v970
        %v1212 = vld [vmem:[#allocation2] sm:$0xff]
        %v1213 = vld [vmem:[#allocation2 + $0x8] sm:$0xff]
        %v1214 = vld [vmem:[#allocation2 + $0x10] sm:$0xff]
        %v1215 = vld [vmem:[#allocation2 + $0x18] sm:$0xff]
        %v1216 = vld [vmem:[#allocation2 + $0x20] sm:$0xff]
        %v1217 = vld [vmem:[#allocation2 + $0x28] sm:$0xff]
        %v1218 = vld [vmem:[#allocation2 + $0x30] sm:$0xff]
        %v1219 = vld [vmem:[#allocation2 + $0x38] sm:$0xff]
        %v1220 = vld [vmem:[#allocation2 + $0x40] sm:$0xff]
        %v1221 = vld [vmem:[#allocation2 + $0x48] sm:$0xff]
        %v1222 = vld [vmem:[#allocation2 + $0x50] sm:$0xff]
        %v1223 = vld [vmem:[#allocation2 + $0x58] sm:$0xff]
        %v1225 = vlaneseq
        %v1226 = vshrl.u32 %v1225, 7
        %v1227 = vsub.s32 0, %v1226
        %v1228 = vrot.slane %v1164, %v1227
        %v1229 = vlaneseq
        %v1230 = vshrl.u32 %v1229, 7
        %v1231 = vsub.s32 1, %v1230
        %v1232 = vrot.slane %v1164, %v1231
        %1235 = vmatprep.subr.mxu0 %v1003
        %1236 = vmatpush1.msra.mxu0 %v1002
        %1237 = vmatprep.subr.mxu0 %v1001
        %1238 = vmatpush1.msra.mxu0 %v1000
        %1239 = vmatprep.subr.mxu0 %v999
        %1240 = vmatpush1.msra.mxu0 %v998
        %1241 = vmatprep.subr.mxu0 %v997
        %1242 = vmatpush1.msra.mxu0 %v996
        %1243 = vmatprep.subr.mxu0 %v995
        %1244 = vmatpush1.msra.mxu0 %v994
        %1245 = vmatprep.subr.mxu0 %v993
        %1246 = vmatpush1.msra.mxu0 %v992
        %1247 = vmatprep.subr.mxu0 %v991
        %1248 = vmatpush1.msra.mxu0 %v990
        %1249 = vmatprep.subr.mxu0 %v989
        %1250 = vmatpush1.msra.mxu0 %v988
        %1251 = vmatprep.subr.mxu0 %v987
        %1252 = vmatpush1.msra.mxu0 %v986
        %1253 = vmatprep.subr.mxu0 %v985
        %1254 = vmatpush1.msra.mxu0 %v984
        %1255 = vmatprep.subr.mxu0 %v983
        %1256 = vmatpush1.msra.mxu0 %v982
        %1257 = vmatprep.subr.mxu0 %v981
        %1258 = vmatpush1.msra.mxu0 %v980
        %1259 = vmatprep.subr.mxu0 %v979
        %1260 = vmatpush1.msra.mxu0 %v978
        %1261 = vmatprep.subr.mxu0 %v977
        %1262 = vmatpush1.msra.mxu0 %v976
        %1263 = vmatprep.subr.mxu0 %v975
        %1264 = vmatpush1.msra.mxu0 %v974
        %1265 = vmatprep.subr.mxu0 %v973
        %1266 = vmatpush1.msra.mxu0 %v972
        %1267 = vmatprep.subr.mxu0 %v1035
        %1268 = vmatpush2.msra.mxu0 %v1034
        %1269 = vmatprep.subr.mxu0 %v1033
        %1270 = vmatpush2.msra.mxu0 %v1032
        %1271 = vmatprep.subr.mxu0 %v1031
        %1272 = vmatpush2.msra.mxu0 %v1030
        %1273 = vmatprep.subr.mxu0 %v1029
        %1274 = vmatpush2.msra.mxu0 %v1028
        %1275 = vmatprep.subr.mxu0 %v1027
        %1276 = vmatpush2.msra.mxu0 %v1026
        %1277 = vmatprep.subr.mxu0 %v1025
        %1278 = vmatpush2.msra.mxu0 %v1024
        %1279 = vmatprep.subr.mxu0 %v1023
        %1280 = vmatpush2.msra.mxu0 %v1022
        %1281 = vmatprep.subr.mxu0 %v1021
        %1282 = vmatpush2.msra.mxu0 %v1020
        %1283 = vmatprep.subr.mxu0 %v1019
        %1284 = vmatpush2.msra.mxu0 %v1018
        %1285 = vmatprep.subr.mxu0 %v1017
        %1286 = vmatpush2.msra.mxu0 %v1016
        %1287 = vmatprep.subr.mxu0 %v1015
        %1288 = vmatpush2.msra.mxu0 %v1014
        %1289 = vmatprep.subr.mxu0 %v1013
        %1290 = vmatpush2.msra.mxu0 %v1012
        %1291 = vmatprep.subr.mxu0 %v1011
        %1292 = vmatpush2.msra.mxu0 %v1010
        %1293 = vmatprep.subr.mxu0 %v1009
        %1294 = vmatpush2.msra.mxu0 %v1008
        %1295 = vmatprep.subr.mxu0 %v1007
        %1296 = vmatpush2.msra.mxu0 %v1006
        %1297 = vmatprep.subr.mxu0 %v1005
        %1298 = vmatpush2.msra.mxu0 %v1004
        %1299 = vmatprep.mubr.f32.mxu0 %v1213
        %1300 = vmatmul.mubr.f32.gmra.mxu0 %v1212
        %v1301 = vpop.f32.mrf.mxu0
        %v1302 = vadd.f32 %v1228, %v1301
        %v1303 = vpop.f32.mrf.mxu0
        %v1304 = vadd.f32 %v1232, %v1303
        %1305 = vmatprep.mubr.f32.mxu0 %v1219
        %1306 = vmatmul.mubr.f32.gmra.mxu0 %v1218
        %v1307 = vpop.f32.mrf.mxu0
        %v1308 = vadd.f32 %v1228, %v1307
        %v1309 = vpop.f32.mrf.mxu0
        %v1310 = vadd.f32 %v1232, %v1309
        %1311 = vdwg.mxu0
        %1312 = vmatprep.subr.mxu0 %v1067
        %1313 = vmatpush1.msra.mxu0 %v1066
        %1314 = vmatprep.subr.mxu0 %v1065
        %1315 = vmatpush1.msra.mxu0 %v1064
        %1316 = vmatprep.subr.mxu0 %v1063
        %1317 = vmatpush1.msra.mxu0 %v1062
        %1318 = vmatprep.subr.mxu0 %v1061
        %1319 = vmatpush1.msra.mxu0 %v1060
        %1320 = vmatprep.subr.mxu0 %v1059
        %1321 = vmatpush1.msra.mxu0 %v1058
        %1322 = vmatprep.subr.mxu0 %v1057
        %1323 = vmatpush1.msra.mxu0 %v1056
        %1324 = vmatprep.subr.mxu0 %v1055
        %1325 = vmatpush1.msra.mxu0 %v1054
        %1326 = vmatprep.subr.mxu0 %v1053
        %1327 = vmatpush1.msra.mxu0 %v1052
        %1328 = vmatprep.subr.mxu0 %v1051
        %1329 = vmatpush1.msra.mxu0 %v1050
        %1330 = vmatprep.subr.mxu0 %v1049
        %1331 = vmatpush1.msra.mxu0 %v1048
        %1332 = vmatprep.subr.mxu0 %v1047
        %1333 = vmatpush1.msra.mxu0 %v1046
        %1334 = vmatprep.subr.mxu0 %v1045
        %1335 = vmatpush1.msra.mxu0 %v1044
        %1336 = vmatprep.subr.mxu0 %v1043
        %1337 = vmatpush1.msra.mxu0 %v1042
        %1338 = vmatprep.subr.mxu0 %v1041
        %1339 = vmatpush1.msra.mxu0 %v1040
        %1340 = vmatprep.subr.mxu0 %v1039
        %1341 = vmatpush1.msra.mxu0 %v1038
        %1342 = vmatprep.subr.mxu0 %v1037
        %1343 = vmatpush1.msra.mxu0 %v1036
        %1344 = vmatprep.subr.mxu0 %v1099
        %1345 = vmatpush2.msra.mxu0 %v1098
        %1346 = vmatprep.subr.mxu0 %v1097
        %1347 = vmatpush2.msra.mxu0 %v1096
        %1348 = vmatprep.subr.mxu0 %v1095
        %1349 = vmatpush2.msra.mxu0 %v1094
        %1350 = vmatprep.subr.mxu0 %v1093
        %1351 = vmatpush2.msra.mxu0 %v1092
        %1352 = vmatprep.subr.mxu0 %v1091
        %1353 = vmatpush2.msra.mxu0 %v1090
        %1354 = vmatprep.subr.mxu0 %v1089
        %1355 = vmatpush2.msra.mxu0 %v1088
        %1356 = vmatprep.subr.mxu0 %v1087
        %1357 = vmatpush2.msra.mxu0 %v1086
        %1358 = vmatprep.subr.mxu0 %v1085
        %1359 = vmatpush2.msra.mxu0 %v1084
        %1360 = vmatprep.subr.mxu0 %v1083
        %1361 = vmatpush2.msra.mxu0 %v1082
        %1362 = vmatprep.subr.mxu0 %v1081
        %1363 = vmatpush2.msra.mxu0 %v1080
        %1364 = vmatprep.subr.mxu0 %v1079
        %1365 = vmatpush2.msra.mxu0 %v1078
        %1366 = vmatprep.subr.mxu0 %v1077
        %1367 = vmatpush2.msra.mxu0 %v1076
        %1368 = vmatprep.subr.mxu0 %v1075
        %1369 = vmatpush2.msra.mxu0 %v1074
        %1370 = vmatprep.subr.mxu0 %v1073
        %1371 = vmatpush2.msra.mxu0 %v1072
        %1372 = vmatprep.subr.mxu0 %v1071
        %1373 = vmatpush2.msra.mxu0 %v1070
        %1374 = vmatprep.subr.mxu0 %v1069
        %1375 = vmatpush2.msra.mxu0 %v1068
        %1376 = vmatprep.mubr.f32.mxu0 %v1215
        %1377 = vmatmul.mubr.f32.gmra.mxu0 %v1214
        %v1378 = vpop.f32.mrf.mxu0
        %v1379 = vadd.f32 %v1302, %v1378
        %v1380 = vpop.f32.mrf.mxu0
        %v1381 = vadd.f32 %v1304, %v1380
        %1382 = vmatprep.mubr.f32.mxu0 %v1221
        %1383 = vmatmul.mubr.f32.gmra.mxu0 %v1220
        %v1384 = vpop.f32.mrf.mxu0
        %v1385 = vadd.f32 %v1308, %v1384
        %v1386 = vpop.f32.mrf.mxu0
        %v1387 = vadd.f32 %v1310, %v1386
        %1388 = vdwg.mxu0
        %1389 = vmatprep.subr.mxu0 %v1131
        %1390 = vmatpush1.msra.mxu0 %v1130
        %1391 = vmatprep.subr.mxu0 %v1129
        %1392 = vmatpush1.msra.mxu0 %v1128
        %1393 = vmatprep.subr.mxu0 %v1127
        %1394 = vmatpush1.msra.mxu0 %v1126
        %1395 = vmatprep.subr.mxu0 %v1125
        %1396 = vmatpush1.msra.mxu0 %v1124
        %1397 = vmatprep.subr.mxu0 %v1123
        %1398 = vmatpush1.msra.mxu0 %v1122
        %1399 = vmatprep.subr.mxu0 %v1121
        %1400 = vmatpush1.msra.mxu0 %v1120
        %1401 = vmatprep.subr.mxu0 %v1119
        %1402 = vmatpush1.msra.mxu0 %v1118
        %1403 = vmatprep.subr.mxu0 %v1117
        %1404 = vmatpush1.msra.mxu0 %v1116
        %1405 = vmatprep.subr.mxu0 %v1115
        %1406 = vmatpush1.msra.mxu0 %v1114
        %1407 = vmatprep.subr.mxu0 %v1113
        %1408 = vmatpush1.msra.mxu0 %v1112
        %1409 = vmatprep.subr.mxu0 %v1111
        %1410 = vmatpush1.msra.mxu0 %v1110
        %1411 = vmatprep.subr.mxu0 %v1109
        %1412 = vmatpush1.msra.mxu0 %v1108
        %1413 = vmatprep.subr.mxu0 %v1107
        %1414 = vmatpush1.msra.mxu0 %v1106
        %1415 = vmatprep.subr.mxu0 %v1105
        %1416 = vmatpush1.msra.mxu0 %v1104
        %1417 = vmatprep.subr.mxu0 %v1103
        %1418 = vmatpush1.msra.mxu0 %v1102
        %1419 = vmatprep.subr.mxu0 %v1101
        %1420 = vmatpush1.msra.mxu0 %v1100
        %1421 = vmatprep.subr.mxu0 %v1163
        %1422 = vmatpush2.msra.mxu0 %v1162
        %1423 = vmatprep.subr.mxu0 %v1161
        %1424 = vmatpush2.msra.mxu0 %v1160
        %1425 = vmatprep.subr.mxu0 %v1159
        %1426 = vmatpush2.msra.mxu0 %v1158
        %1427 = vmatprep.subr.mxu0 %v1157
        %1428 = vmatpush2.msra.mxu0 %v1156
        %1429 = vmatprep.subr.mxu0 %v1155
        %1430 = vmatpush2.msra.mxu0 %v1154
        %1431 = vmatprep.subr.mxu0 %v1153
        %1432 = vmatpush2.msra.mxu0 %v1152
        %1433 = vmatprep.subr.mxu0 %v1151
        %1434 = vmatpush2.msra.mxu0 %v1150
        %1435 = vmatprep.subr.mxu0 %v1149
        %1436 = vmatpush2.msra.mxu0 %v1148
        %1437 = vmatprep.subr.mxu0 %v1147
        %1438 = vmatpush2.msra.mxu0 %v1146
        %1439 = vmatprep.subr.mxu0 %v1145
        %1440 = vmatpush2.msra.mxu0 %v1144
        %1441 = vmatprep.subr.mxu0 %v1143
        %1442 = vmatpush2.msra.mxu0 %v1142
        %1443 = vmatprep.subr.mxu0 %v1141
        %1444 = vmatpush2.msra.mxu0 %v1140
        %1445 = vmatprep.subr.mxu0 %v1139
        %1446 = vmatpush2.msra.mxu0 %v1138
        %1447 = vmatprep.subr.mxu0 %v1137
        %1448 = vmatpush2.msra.mxu0 %v1136
        %1449 = vmatprep.subr.mxu0 %v1135
        %1450 = vmatpush2.msra.mxu0 %v1134
        %1451 = vmatprep.subr.mxu0 %v1133
        %1452 = vmatpush2.msra.mxu0 %v1132
        %1453 = vmatprep.mubr.f32.mxu0 %v1217
        %1454 = vmatmul.mubr.f32.gmra.mxu0 %v1216
        %v1455 = vpop.f32.mrf.mxu0
        %v1456 = vadd.f32 %v1379, %v1455
        %v1457 = vpop.f32.mrf.mxu0
        %v1458 = vadd.f32 %v1381, %v1457
        %1459 = vmatprep.mubr.f32.mxu0 %v1223
        %1460 = vmatmul.mubr.f32.gmra.mxu0 %v1222
        %v1461 = vpop.f32.mrf.mxu0
        %v1462 = vadd.f32 %v1385, %v1461
        %v1463 = vpop.f32.mrf.mxu0
        %v1464 = vadd.f32 %v1387, %v1463
        %1465 = vdwg.mxu0
        %v1466 = vmax.f32 %v1456, 0.0
        %v1467 = vmax.f32 %v1458, 0.0
        %v1468 = vmax.f32 %v1462, 0.0
        %v1469 = vmax.f32 %v1464, 0.0
        %s1470 = scalar_lea.vmem [#allocation9], 1536
        %v1471 = vld [vmem:[%s1470] sm:$0xff]
        %v1472 = vld [vmem:[%s1470 + $0x8] sm:$0xff]
        %v1473 = vld [vmem:[%s1470 + $0x10] sm:$0xff]
        %v1474 = vld [vmem:[%s1470 + $0x18] sm:$0xff]
        %v1475 = vld [vmem:[%s1470 + $0x20] sm:$0xff]
        %v1476 = vld [vmem:[%s1470 + $0x28] sm:$0xff]
        %v1477 = vld [vmem:[%s1470 + $0x30] sm:$0xff]
        %v1478 = vld [vmem:[%s1470 + $0x38] sm:$0xff]
        %v1479 = vld [vmem:[%s1470 + $0x40] sm:$0xff]
        %v1480 = vld [vmem:[%s1470 + $0x48] sm:$0xff]
        %v1481 = vld [vmem:[%s1470 + $0x50] sm:$0xff]
        %v1482 = vld [vmem:[%s1470 + $0x58] sm:$0xff]
        %v1483 = vld [vmem:[%s1470 + $0x60] sm:$0xff]
        %v1484 = vld [vmem:[%s1470 + $0x68] sm:$0xff]
        %v1485 = vld [vmem:[%s1470 + $0x70] sm:$0xff]
        %v1486 = vld [vmem:[%s1470 + $0x78] sm:$0xff]
        %v1487 = vld [vmem:[%s1470 + $0x80] sm:$0xff]
        %v1488 = vld [vmem:[%s1470 + $0x88] sm:$0xff]
        %v1489 = vld [vmem:[%s1470 + $0x90] sm:$0xff]
        %v1490 = vld [vmem:[%s1470 + $0x98] sm:$0xff]
        %v1491 = vld [vmem:[%s1470 + $0xa0] sm:$0xff]
        %v1492 = vld [vmem:[%s1470 + $0xa8] sm:$0xff]
        %v1493 = vld [vmem:[%s1470 + $0xb0] sm:$0xff]
        %v1494 = vld [vmem:[%s1470 + $0xb8] sm:$0xff]
        %v1495 = vld [vmem:[%s1470 + $0xc0] sm:$0xff]
        %v1496 = vld [vmem:[%s1470 + $0xc8] sm:$0xff]
        %v1497 = vld [vmem:[%s1470 + $0xd0] sm:$0xff]
        %v1498 = vld [vmem:[%s1470 + $0xd8] sm:$0xff]
        %v1499 = vld [vmem:[%s1470 + $0xe0] sm:$0xff]
        %v1500 = vld [vmem:[%s1470 + $0xe8] sm:$0xff]
        %v1501 = vld [vmem:[%s1470 + $0xf0] sm:$0xff]
        %v1502 = vld [vmem:[%s1470 + $0xf8] sm:$0xff]
        %v1503 = vld [vmem:[%s1470 + $0x100] sm:$0xff]
        %v1504 = vld [vmem:[%s1470 + $0x108] sm:$0xff]
        %v1505 = vld [vmem:[%s1470 + $0x110] sm:$0xff]
        %v1506 = vld [vmem:[%s1470 + $0x118] sm:$0xff]
        %v1507 = vld [vmem:[%s1470 + $0x120] sm:$0xff]
        %v1508 = vld [vmem:[%s1470 + $0x128] sm:$0xff]
        %v1509 = vld [vmem:[%s1470 + $0x130] sm:$0xff]
        %v1510 = vld [vmem:[%s1470 + $0x138] sm:$0xff]
        %v1511 = vld [vmem:[%s1470 + $0x140] sm:$0xff]
        %v1512 = vld [vmem:[%s1470 + $0x148] sm:$0xff]
        %v1513 = vld [vmem:[%s1470 + $0x150] sm:$0xff]
        %v1514 = vld [vmem:[%s1470 + $0x158] sm:$0xff]
        %v1515 = vld [vmem:[%s1470 + $0x160] sm:$0xff]
        %v1516 = vld [vmem:[%s1470 + $0x168] sm:$0xff]
        %v1517 = vld [vmem:[%s1470 + $0x170] sm:$0xff]
        %v1518 = vld [vmem:[%s1470 + $0x178] sm:$0xff]
        %v1519 = vld [vmem:[%s1470 + $0x180] sm:$0xff]
        %v1520 = vld [vmem:[%s1470 + $0x188] sm:$0xff]
        %v1521 = vld [vmem:[%s1470 + $0x190] sm:$0xff]
        %v1522 = vld [vmem:[%s1470 + $0x198] sm:$0xff]
        %v1523 = vld [vmem:[%s1470 + $0x1a0] sm:$0xff]
        %v1524 = vld [vmem:[%s1470 + $0x1a8] sm:$0xff]
        %v1525 = vld [vmem:[%s1470 + $0x1b0] sm:$0xff]
        %v1526 = vld [vmem:[%s1470 + $0x1b8] sm:$0xff]
        %v1527 = vld [vmem:[%s1470 + $0x1c0] sm:$0xff]
        %v1528 = vld [vmem:[%s1470 + $0x1c8] sm:$0xff]
        %v1529 = vld [vmem:[%s1470 + $0x1d0] sm:$0xff]
        %v1530 = vld [vmem:[%s1470 + $0x1d8] sm:$0xff]
        %v1531 = vld [vmem:[%s1470 + $0x1e0] sm:$0xff]
        %v1532 = vld [vmem:[%s1470 + $0x1e8] sm:$0xff]
        %v1533 = vld [vmem:[%s1470 + $0x1f0] sm:$0xff]
        %v1534 = vld [vmem:[%s1470 + $0x1f8] sm:$0xff]
        %v1535 = vld [vmem:[%s1470 + $0x200] sm:$0xff]
        %v1536 = vld [vmem:[%s1470 + $0x208] sm:$0xff]
        %v1537 = vld [vmem:[%s1470 + $0x210] sm:$0xff]
        %v1538 = vld [vmem:[%s1470 + $0x218] sm:$0xff]
        %v1539 = vld [vmem:[%s1470 + $0x220] sm:$0xff]
        %v1540 = vld [vmem:[%s1470 + $0x228] sm:$0xff]
        %v1541 = vld [vmem:[%s1470 + $0x230] sm:$0xff]
        %v1542 = vld [vmem:[%s1470 + $0x238] sm:$0xff]
        %v1543 = vld [vmem:[%s1470 + $0x240] sm:$0xff]
        %v1544 = vld [vmem:[%s1470 + $0x248] sm:$0xff]
        %v1545 = vld [vmem:[%s1470 + $0x250] sm:$0xff]
        %v1546 = vld [vmem:[%s1470 + $0x258] sm:$0xff]
        %v1547 = vld [vmem:[%s1470 + $0x260] sm:$0xff]
        %v1548 = vld [vmem:[%s1470 + $0x268] sm:$0xff]
        %v1549 = vld [vmem:[%s1470 + $0x270] sm:$0xff]
        %v1550 = vld [vmem:[%s1470 + $0x278] sm:$0xff]
        %v1551 = vld [vmem:[%s1470 + $0x280] sm:$0xff]
        %v1552 = vld [vmem:[%s1470 + $0x288] sm:$0xff]
        %v1553 = vld [vmem:[%s1470 + $0x290] sm:$0xff]
        %v1554 = vld [vmem:[%s1470 + $0x298] sm:$0xff]
        %v1555 = vld [vmem:[%s1470 + $0x2a0] sm:$0xff]
        %v1556 = vld [vmem:[%s1470 + $0x2a8] sm:$0xff]
        %v1557 = vld [vmem:[%s1470 + $0x2b0] sm:$0xff]
        %v1558 = vld [vmem:[%s1470 + $0x2b8] sm:$0xff]
        %v1559 = vld [vmem:[%s1470 + $0x2c0] sm:$0xff]
        %v1560 = vld [vmem:[%s1470 + $0x2c8] sm:$0xff]
        %v1561 = vld [vmem:[%s1470 + $0x2d0] sm:$0xff]
        %v1562 = vld [vmem:[%s1470 + $0x2d8] sm:$0xff]
        %v1563 = vld [vmem:[%s1470 + $0x2e0] sm:$0xff]
        %v1564 = vld [vmem:[%s1470 + $0x2e8] sm:$0xff]
        %v1565 = vld [vmem:[%s1470 + $0x2f0] sm:$0xff]
        %v1566 = vld [vmem:[%s1470 + $0x2f8] sm:$0xff]
        %v1567 = vld [vmem:[%s1470 + $0x300] sm:$0xff]
        %v1568 = vld [vmem:[%s1470 + $0x308] sm:$0xff]
        %v1569 = vld [vmem:[%s1470 + $0x310] sm:$0xff]
        %v1570 = vld [vmem:[%s1470 + $0x318] sm:$0xff]
        %v1571 = vld [vmem:[%s1470 + $0x320] sm:$0xff]
        %v1572 = vld [vmem:[%s1470 + $0x328] sm:$0xff]
        %v1573 = vld [vmem:[%s1470 + $0x330] sm:$0xff]
        %v1574 = vld [vmem:[%s1470 + $0x338] sm:$0xff]
        %v1575 = vld [vmem:[%s1470 + $0x340] sm:$0xff]
        %v1576 = vld [vmem:[%s1470 + $0x348] sm:$0xff]
        %v1577 = vld [vmem:[%s1470 + $0x350] sm:$0xff]
        %v1578 = vld [vmem:[%s1470 + $0x358] sm:$0xff]
        %v1579 = vld [vmem:[%s1470 + $0x360] sm:$0xff]
        %v1580 = vld [vmem:[%s1470 + $0x368] sm:$0xff]
        %v1581 = vld [vmem:[%s1470 + $0x370] sm:$0xff]
        %v1582 = vld [vmem:[%s1470 + $0x378] sm:$0xff]
        %v1583 = vld [vmem:[%s1470 + $0x380] sm:$0xff]
        %v1584 = vld [vmem:[%s1470 + $0x388] sm:$0xff]
        %v1585 = vld [vmem:[%s1470 + $0x390] sm:$0xff]
        %v1586 = vld [vmem:[%s1470 + $0x398] sm:$0xff]
        %v1587 = vld [vmem:[%s1470 + $0x3a0] sm:$0xff]
        %v1588 = vld [vmem:[%s1470 + $0x3a8] sm:$0xff]
        %v1589 = vld [vmem:[%s1470 + $0x3b0] sm:$0xff]
        %v1590 = vld [vmem:[%s1470 + $0x3b8] sm:$0xff]
        %v1591 = vld [vmem:[%s1470 + $0x3c0] sm:$0xff]
        %v1592 = vld [vmem:[%s1470 + $0x3c8] sm:$0xff]
        %v1593 = vld [vmem:[%s1470 + $0x3d0] sm:$0xff]
        %v1594 = vld [vmem:[%s1470 + $0x3d8] sm:$0xff]
        %v1595 = vld [vmem:[%s1470 + $0x3e0] sm:$0xff]
        %v1596 = vld [vmem:[%s1470 + $0x3e8] sm:$0xff]
        %v1597 = vld [vmem:[%s1470 + $0x3f0] sm:$0xff]
        %v1598 = vld [vmem:[%s1470 + $0x3f8] sm:$0xff]
        %v1599 = vld [vmem:[%s1470 + $0x400] sm:$0xff]
        %v1600 = vld [vmem:[%s1470 + $0x408] sm:$0xff]
        %v1601 = vld [vmem:[%s1470 + $0x410] sm:$0xff]
        %v1602 = vld [vmem:[%s1470 + $0x418] sm:$0xff]
        %v1603 = vld [vmem:[%s1470 + $0x420] sm:$0xff]
        %v1604 = vld [vmem:[%s1470 + $0x428] sm:$0xff]
        %v1605 = vld [vmem:[%s1470 + $0x430] sm:$0xff]
        %v1606 = vld [vmem:[%s1470 + $0x438] sm:$0xff]
        %v1607 = vld [vmem:[%s1470 + $0x440] sm:$0xff]
        %v1608 = vld [vmem:[%s1470 + $0x448] sm:$0xff]
        %v1609 = vld [vmem:[%s1470 + $0x450] sm:$0xff]
        %v1610 = vld [vmem:[%s1470 + $0x458] sm:$0xff]
        %v1611 = vld [vmem:[%s1470 + $0x460] sm:$0xff]
        %v1612 = vld [vmem:[%s1470 + $0x468] sm:$0xff]
        %v1613 = vld [vmem:[%s1470 + $0x470] sm:$0xff]
        %v1614 = vld [vmem:[%s1470 + $0x478] sm:$0xff]
        %v1615 = vld [vmem:[%s1470 + $0x480] sm:$0xff]
        %v1616 = vld [vmem:[%s1470 + $0x488] sm:$0xff]
        %v1617 = vld [vmem:[%s1470 + $0x490] sm:$0xff]
        %v1618 = vld [vmem:[%s1470 + $0x498] sm:$0xff]
        %v1619 = vld [vmem:[%s1470 + $0x4a0] sm:$0xff]
        %v1620 = vld [vmem:[%s1470 + $0x4a8] sm:$0xff]
        %v1621 = vld [vmem:[%s1470 + $0x4b0] sm:$0xff]
        %v1622 = vld [vmem:[%s1470 + $0x4b8] sm:$0xff]
        %v1623 = vld [vmem:[%s1470 + $0x4c0] sm:$0xff]
        %v1624 = vld [vmem:[%s1470 + $0x4c8] sm:$0xff]
        %v1625 = vld [vmem:[%s1470 + $0x4d0] sm:$0xff]
        %v1626 = vld [vmem:[%s1470 + $0x4d8] sm:$0xff]
        %v1627 = vld [vmem:[%s1470 + $0x4e0] sm:$0xff]
        %v1628 = vld [vmem:[%s1470 + $0x4e8] sm:$0xff]
        %v1629 = vld [vmem:[%s1470 + $0x4f0] sm:$0xff]
        %v1630 = vld [vmem:[%s1470 + $0x4f8] sm:$0xff]
        %v1631 = vld [vmem:[%s1470 + $0x500] sm:$0xff]
        %v1632 = vld [vmem:[%s1470 + $0x508] sm:$0xff]
        %v1633 = vld [vmem:[%s1470 + $0x510] sm:$0xff]
        %v1634 = vld [vmem:[%s1470 + $0x518] sm:$0xff]
        %v1635 = vld [vmem:[%s1470 + $0x520] sm:$0xff]
        %v1636 = vld [vmem:[%s1470 + $0x528] sm:$0xff]
        %v1637 = vld [vmem:[%s1470 + $0x530] sm:$0xff]
        %v1638 = vld [vmem:[%s1470 + $0x538] sm:$0xff]
        %v1639 = vld [vmem:[%s1470 + $0x540] sm:$0xff]
        %v1640 = vld [vmem:[%s1470 + $0x548] sm:$0xff]
        %v1641 = vld [vmem:[%s1470 + $0x550] sm:$0xff]
        %v1642 = vld [vmem:[%s1470 + $0x558] sm:$0xff]
        %v1643 = vld [vmem:[%s1470 + $0x560] sm:$0xff]
        %v1644 = vld [vmem:[%s1470 + $0x568] sm:$0xff]
        %v1645 = vld [vmem:[%s1470 + $0x570] sm:$0xff]
        %v1646 = vld [vmem:[%s1470 + $0x578] sm:$0xff]
        %v1647 = vld [vmem:[%s1470 + $0x580] sm:$0xff]
        %v1648 = vld [vmem:[%s1470 + $0x588] sm:$0xff]
        %v1649 = vld [vmem:[%s1470 + $0x590] sm:$0xff]
        %v1650 = vld [vmem:[%s1470 + $0x598] sm:$0xff]
        %v1651 = vld [vmem:[%s1470 + $0x5a0] sm:$0xff]
        %v1652 = vld [vmem:[%s1470 + $0x5a8] sm:$0xff]
        %v1653 = vld [vmem:[%s1470 + $0x5b0] sm:$0xff]
        %v1654 = vld [vmem:[%s1470 + $0x5b8] sm:$0xff]
        %v1655 = vld [vmem:[%s1470 + $0x5c0] sm:$0xff]
        %v1656 = vld [vmem:[%s1470 + $0x5c8] sm:$0xff]
        %v1657 = vld [vmem:[%s1470 + $0x5d0] sm:$0xff]
        %v1658 = vld [vmem:[%s1470 + $0x5d8] sm:$0xff]
        %v1659 = vld [vmem:[%s1470 + $0x5e0] sm:$0xff]
        %v1660 = vld [vmem:[%s1470 + $0x5e8] sm:$0xff]
        %v1661 = vld [vmem:[%s1470 + $0x5f0] sm:$0xff]
        %v1662 = vld [vmem:[%s1470 + $0x5f8] sm:$0xff]
        %s1663 = scalar_lea.vmem [#allocation11], 2
        %v1664 = vld [vmem:[%s1663] sm:$0x3]
        %1665 = vst.msk [vmem:[#allocation2] ss:$8 sm:$0x3] %vm1168, 0.0
        %1666 = vst.msk [vmem:[#allocation2] ss:$8 sm:$0x0] %vm1168, 0.0
        %1667 = vst.msk [vmem:[%s1171] ss:$8 sm:$0x3] %vm1168, 0.0
        %1668 = vst.msk [vmem:[%s1171] ss:$8 sm:$0x0] %vm1168, 0.0
        %v1673 = vrot.slane %v1466, 7
        %v1674 = vrot.slane %v1467, 7
        %v1675 = vrot.slane %v1468, 7
        %v1676 = vsel %vm1178, %v1673, %v1675
        %v1677 = vrot.slane %v1469, 7
        %v1678 = vsel %vm1178, %v1674, %v1677
        %1683 = vst [vmem:[#allocation2] sm:$0xfe] %v1673
        %1684 = vst [vmem:[#allocation2 + $0x8] sm:$0xfe] %v1674
        %1685 = vst [vmem:[#allocation2 + $0x30] sm:$0xff] %v1676
        %1686 = vst [vmem:[#allocation2 + $0x38] sm:$0xff] %v1678
        %v1687 = vrot.slane %v1466, 1
        %v1688 = vrot.slane %v1468, 1
        %v1689 = vsel %vm1193, %v1687, %v1688
        %v1690 = vrot.slane %v1467, 1
        %v1691 = vrot.slane %v1469, 1
        %v1692 = vsel %vm1193, %v1690, %v1691
        %1697 = vst [vmem:[#allocation2 + $0x20] sm:$0xff] %v1689
        %1698 = vst [vmem:[#allocation2 + $0x28] sm:$0xff] %v1692
        %1699 = vst [vmem:[#allocation2 + $0x50] sm:$0x7f] %v1688
        %1700 = vst [vmem:[#allocation2 + $0x58] sm:$0x7f] %v1691
        %1701 = vst [vmem:[#allocation2 + $0x10] sm:$0xff] %v1466
        %1702 = vst [vmem:[#allocation2 + $0x18] sm:$0xff] %v1467
        %1703 = vst [vmem:[#allocation2 + $0x40] sm:$0xff] %v1468
        %1704 = vst [vmem:[#allocation2 + $0x48] sm:$0xff] %v1469
        %v1705 = vld [vmem:[#allocation2] sm:$0xff]
        %v1706 = vld [vmem:[#allocation2 + $0x8] sm:$0xff]
        %v1707 = vld [vmem:[#allocation2 + $0x10] sm:$0xff]
        %v1708 = vld [vmem:[#allocation2 + $0x18] sm:$0xff]
        %v1709 = vld [vmem:[#allocation2 + $0x20] sm:$0xff]
        %v1710 = vld [vmem:[#allocation2 + $0x28] sm:$0xff]
        %v1711 = vld [vmem:[#allocation2 + $0x30] sm:$0xff]
        %v1712 = vld [vmem:[#allocation2 + $0x38] sm:$0xff]
        %v1713 = vld [vmem:[#allocation2 + $0x40] sm:$0xff]
        %v1714 = vld [vmem:[#allocation2 + $0x48] sm:$0xff]
        %v1715 = vld [vmem:[#allocation2 + $0x50] sm:$0xff]
        %v1716 = vld [vmem:[#allocation2 + $0x58] sm:$0xff]
        %v1718 = vlaneseq
        %v1719 = vshrl.u32 %v1718, 7
        %v1720 = vsub.s32 0, %v1719
        %v1721 = vrot.slane %v1664, %v1720
        %v1722 = vlaneseq
        %v1723 = vshrl.u32 %v1722, 7
        %v1724 = vsub.s32 1, %v1723
        %v1725 = vrot.slane %v1664, %v1724
        %1728 = vmatprep.subr.mxu0 %v1502
        %1729 = vmatpush1.msra.mxu0 %v1501
        %1730 = vmatprep.subr.mxu0 %v1500
        %1731 = vmatpush1.msra.mxu0 %v1499
        %1732 = vmatprep.subr.mxu0 %v1498
        %1733 = vmatpush1.msra.mxu0 %v1497
        %1734 = vmatprep.subr.mxu0 %v1496
        %1735 = vmatpush1.msra.mxu0 %v1495
        %1736 = vmatprep.subr.mxu0 %v1494
        %1737 = vmatpush1.msra.mxu0 %v1493
        %1738 = vmatprep.subr.mxu0 %v1492
        %1739 = vmatpush1.msra.mxu0 %v1491
        %1740 = vmatprep.subr.mxu0 %v1490
        %1741 = vmatpush1.msra.mxu0 %v1489
        %1742 = vmatprep.subr.mxu0 %v1488
        %1743 = vmatpush1.msra.mxu0 %v1487
        %1744 = vmatprep.subr.mxu0 %v1486
        %1745 = vmatpush1.msra.mxu0 %v1485
        %1746 = vmatprep.subr.mxu0 %v1484
        %1747 = vmatpush1.msra.mxu0 %v1483
        %1748 = vmatprep.subr.mxu0 %v1482
        %1749 = vmatpush1.msra.mxu0 %v1481
        %1750 = vmatprep.subr.mxu0 %v1480
        %1751 = vmatpush1.msra.mxu0 %v1479
        %1752 = vmatprep.subr.mxu0 %v1478
        %1753 = vmatpush1.msra.mxu0 %v1477
        %1754 = vmatprep.subr.mxu0 %v1476
        %1755 = vmatpush1.msra.mxu0 %v1475
        %1756 = vmatprep.subr.mxu0 %v1474
        %1757 = vmatpush1.msra.mxu0 %v1473
        %1758 = vmatprep.subr.mxu0 %v1472
        %1759 = vmatpush1.msra.mxu0 %v1471
        %1760 = vmatprep.subr.mxu0 %v1534
        %1761 = vmatpush2.msra.mxu0 %v1533
        %1762 = vmatprep.subr.mxu0 %v1532
        %1763 = vmatpush2.msra.mxu0 %v1531
        %1764 = vmatprep.subr.mxu0 %v1530
        %1765 = vmatpush2.msra.mxu0 %v1529
        %1766 = vmatprep.subr.mxu0 %v1528
        %1767 = vmatpush2.msra.mxu0 %v1527
        %1768 = vmatprep.subr.mxu0 %v1526
        %1769 = vmatpush2.msra.mxu0 %v1525
        %1770 = vmatprep.subr.mxu0 %v1524
        %1771 = vmatpush2.msra.mxu0 %v1523
        %1772 = vmatprep.subr.mxu0 %v1522
        %1773 = vmatpush2.msra.mxu0 %v1521
        %1774 = vmatprep.subr.mxu0 %v1520
        %1775 = vmatpush2.msra.mxu0 %v1519
        %1776 = vmatprep.subr.mxu0 %v1518
        %1777 = vmatpush2.msra.mxu0 %v1517
        %1778 = vmatprep.subr.mxu0 %v1516
        %1779 = vmatpush2.msra.mxu0 %v1515
        %1780 = vmatprep.subr.mxu0 %v1514
        %1781 = vmatpush2.msra.mxu0 %v1513
        %1782 = vmatprep.subr.mxu0 %v1512
        %1783 = vmatpush2.msra.mxu0 %v1511
        %1784 = vmatprep.subr.mxu0 %v1510
        %1785 = vmatpush2.msra.mxu0 %v1509
        %1786 = vmatprep.subr.mxu0 %v1508
        %1787 = vmatpush2.msra.mxu0 %v1507
        %1788 = vmatprep.subr.mxu0 %v1506
        %1789 = vmatpush2.msra.mxu0 %v1505
        %1790 = vmatprep.subr.mxu0 %v1504
        %1791 = vmatpush2.msra.mxu0 %v1503
        %1792 = vmatprep.mubr.f32.mxu0 %v1706
        %1793 = vmatmul.mubr.f32.gmra.mxu0 %v1705
        %v1794 = vpop.f32.mrf.mxu0
        %v1795 = vadd.f32 %v1721, %v1794
        %v1796 = vpop.f32.mrf.mxu0
        %v1797 = vadd.f32 %v1725, %v1796
        %1798 = vmatprep.mubr.f32.mxu0 %v1712
        %1799 = vmatmul.mubr.f32.gmra.mxu0 %v1711
        %v1800 = vpop.f32.mrf.mxu0
        %v1801 = vadd.f32 %v1721, %v1800
        %v1802 = vpop.f32.mrf.mxu0
        %v1803 = vadd.f32 %v1725, %v1802
        %1804 = vdwg.mxu0
        %1805 = vmatprep.subr.mxu0 %v1566
        %1806 = vmatpush1.msra.mxu0 %v1565
        %1807 = vmatprep.subr.mxu0 %v1564
        %1808 = vmatpush1.msra.mxu0 %v1563
        %1809 = vmatprep.subr.mxu0 %v1562
        %1810 = vmatpush1.msra.mxu0 %v1561
        %1811 = vmatprep.subr.mxu0 %v1560
        %1812 = vmatpush1.msra.mxu0 %v1559
        %1813 = vmatprep.subr.mxu0 %v1558
        %1814 = vmatpush1.msra.mxu0 %v1557
        %1815 = vmatprep.subr.mxu0 %v1556
        %1816 = vmatpush1.msra.mxu0 %v1555
        %1817 = vmatprep.subr.mxu0 %v1554
        %1818 = vmatpush1.msra.mxu0 %v1553
        %1819 = vmatprep.subr.mxu0 %v1552
        %1820 = vmatpush1.msra.mxu0 %v1551
        %1821 = vmatprep.subr.mxu0 %v1550
        %1822 = vmatpush1.msra.mxu0 %v1549
        %1823 = vmatprep.subr.mxu0 %v1548
        %1824 = vmatpush1.msra.mxu0 %v1547
        %1825 = vmatprep.subr.mxu0 %v1546
        %1826 = vmatpush1.msra.mxu0 %v1545
        %1827 = vmatprep.subr.mxu0 %v1544
        %1828 = vmatpush1.msra.mxu0 %v1543
        %1829 = vmatprep.subr.mxu0 %v1542
        %1830 = vmatpush1.msra.mxu0 %v1541
        %1831 = vmatprep.subr.mxu0 %v1540
        %1832 = vmatpush1.msra.mxu0 %v1539
        %1833 = vmatprep.subr.mxu0 %v1538
        %1834 = vmatpush1.msra.mxu0 %v1537
        %1835 = vmatprep.subr.mxu0 %v1536
        %1836 = vmatpush1.msra.mxu0 %v1535
        %1837 = vmatprep.subr.mxu0 %v1598
        %1838 = vmatpush2.msra.mxu0 %v1597
        %1839 = vmatprep.subr.mxu0 %v1596
        %1840 = vmatpush2.msra.mxu0 %v1595
        %1841 = vmatprep.subr.mxu0 %v1594
        %1842 = vmatpush2.msra.mxu0 %v1593
        %1843 = vmatprep.subr.mxu0 %v1592
        %1844 = vmatpush2.msra.mxu0 %v1591
        %1845 = vmatprep.subr.mxu0 %v1590
        %1846 = vmatpush2.msra.mxu0 %v1589
        %1847 = vmatprep.subr.mxu0 %v1588
        %1848 = vmatpush2.msra.mxu0 %v1587
        %1849 = vmatprep.subr.mxu0 %v1586
        %1850 = vmatpush2.msra.mxu0 %v1585
        %1851 = vmatprep.subr.mxu0 %v1584
        %1852 = vmatpush2.msra.mxu0 %v1583
        %1853 = vmatprep.subr.mxu0 %v1582
        %1854 = vmatpush2.msra.mxu0 %v1581
        %1855 = vmatprep.subr.mxu0 %v1580
        %1856 = vmatpush2.msra.mxu0 %v1579
        %1857 = vmatprep.subr.mxu0 %v1578
        %1858 = vmatpush2.msra.mxu0 %v1577
        %1859 = vmatprep.subr.mxu0 %v1576
        %1860 = vmatpush2.msra.mxu0 %v1575
        %1861 = vmatprep.subr.mxu0 %v1574
        %1862 = vmatpush2.msra.mxu0 %v1573
        %1863 = vmatprep.subr.mxu0 %v1572
        %1864 = vmatpush2.msra.mxu0 %v1571
        %1865 = vmatprep.subr.mxu0 %v1570
        %1866 = vmatpush2.msra.mxu0 %v1569
        %1867 = vmatprep.subr.mxu0 %v1568
        %1868 = vmatpush2.msra.mxu0 %v1567
        %1869 = vmatprep.mubr.f32.mxu0 %v1708
        %1870 = vmatmul.mubr.f32.gmra.mxu0 %v1707
        %v1871 = vpop.f32.mrf.mxu0
        %v1872 = vadd.f32 %v1795, %v1871
        %v1873 = vpop.f32.mrf.mxu0
        %v1874 = vadd.f32 %v1797, %v1873
        %1875 = vmatprep.mubr.f32.mxu0 %v1714
        %1876 = vmatmul.mubr.f32.gmra.mxu0 %v1713
        %v1877 = vpop.f32.mrf.mxu0
        %v1878 = vadd.f32 %v1801, %v1877
        %v1879 = vpop.f32.mrf.mxu0
        %v1880 = vadd.f32 %v1803, %v1879
        %1881 = vdwg.mxu0
        %1882 = vmatprep.subr.mxu0 %v1630
        %1883 = vmatpush1.msra.mxu0 %v1629
        %1884 = vmatprep.subr.mxu0 %v1628
        %1885 = vmatpush1.msra.mxu0 %v1627
        %1886 = vmatprep.subr.mxu0 %v1626
        %1887 = vmatpush1.msra.mxu0 %v1625
        %1888 = vmatprep.subr.mxu0 %v1624
        %1889 = vmatpush1.msra.mxu0 %v1623
        %1890 = vmatprep.subr.mxu0 %v1622
        %1891 = vmatpush1.msra.mxu0 %v1621
        %1892 = vmatprep.subr.mxu0 %v1620
        %1893 = vmatpush1.msra.mxu0 %v1619
        %1894 = vmatprep.subr.mxu0 %v1618
        %1895 = vmatpush1.msra.mxu0 %v1617
        %1896 = vmatprep.subr.mxu0 %v1616
        %1897 = vmatpush1.msra.mxu0 %v1615
        %1898 = vmatprep.subr.mxu0 %v1614
        %1899 = vmatpush1.msra.mxu0 %v1613
        %1900 = vmatprep.subr.mxu0 %v1612
        %1901 = vmatpush1.msra.mxu0 %v1611
        %1902 = vmatprep.subr.mxu0 %v1610
        %1903 = vmatpush1.msra.mxu0 %v1609
        %1904 = vmatprep.subr.mxu0 %v1608
        %1905 = vmatpush1.msra.mxu0 %v1607
        %1906 = vmatprep.subr.mxu0 %v1606
        %1907 = vmatpush1.msra.mxu0 %v1605
        %1908 = vmatprep.subr.mxu0 %v1604
        %1909 = vmatpush1.msra.mxu0 %v1603
        %1910 = vmatprep.subr.mxu0 %v1602
        %1911 = vmatpush1.msra.mxu0 %v1601
        %1912 = vmatprep.subr.mxu0 %v1600
        %1913 = vmatpush1.msra.mxu0 %v1599
        %1914 = vmatprep.subr.mxu0 %v1662
        %1915 = vmatpush2.msra.mxu0 %v1661
        %1916 = vmatprep.subr.mxu0 %v1660
        %1917 = vmatpush2.msra.mxu0 %v1659
        %1918 = vmatprep.subr.mxu0 %v1658
        %1919 = vmatpush2.msra.mxu0 %v1657
        %1920 = vmatprep.subr.mxu0 %v1656
        %1921 = vmatpush2.msra.mxu0 %v1655
        %1922 = vmatprep.subr.mxu0 %v1654
        %1923 = vmatpush2.msra.mxu0 %v1653
        %1924 = vmatprep.subr.mxu0 %v1652
        %1925 = vmatpush2.msra.mxu0 %v1651
        %1926 = vmatprep.subr.mxu0 %v1650
        %1927 = vmatpush2.msra.mxu0 %v1649
        %1928 = vmatprep.subr.mxu0 %v1648
        %1929 = vmatpush2.msra.mxu0 %v1647
        %1930 = vmatprep.subr.mxu0 %v1646
        %1931 = vmatpush2.msra.mxu0 %v1645
        %1932 = vmatprep.subr.mxu0 %v1644
        %1933 = vmatpush2.msra.mxu0 %v1643
        %1934 = vmatprep.subr.mxu0 %v1642
        %1935 = vmatpush2.msra.mxu0 %v1641
        %1936 = vmatprep.subr.mxu0 %v1640
        %1937 = vmatpush2.msra.mxu0 %v1639
        %1938 = vmatprep.subr.mxu0 %v1638
        %1939 = vmatpush2.msra.mxu0 %v1637
        %1940 = vmatprep.subr.mxu0 %v1636
        %1941 = vmatpush2.msra.mxu0 %v1635
        %1942 = vmatprep.subr.mxu0 %v1634
        %1943 = vmatpush2.msra.mxu0 %v1633
        %1944 = vmatprep.subr.mxu0 %v1632
        %1945 = vmatpush2.msra.mxu0 %v1631
        %1946 = vmatprep.mubr.f32.mxu0 %v1710
        %1947 = vmatmul.mubr.f32.gmra.mxu0 %v1709
        %v1948 = vpop.f32.mrf.mxu0
        %v1949 = vadd.f32 %v1872, %v1948
        %v1950 = vpop.f32.mrf.mxu0
        %v1951 = vadd.f32 %v1874, %v1950
        %1952 = vmatprep.mubr.f32.mxu0 %v1716
        %1953 = vmatmul.mubr.f32.gmra.mxu0 %v1715
        %v1954 = vpop.f32.mrf.mxu0
        %v1955 = vadd.f32 %v1878, %v1954
        %v1956 = vpop.f32.mrf.mxu0
        %v1957 = vadd.f32 %v1880, %v1956
        %1958 = vdwg.mxu0
        %v1959 = vadd.f32 %v962, %v1949
        %v1960 = vadd.f32 %v964, %v1951
        %v1961 = vadd.f32 %v968, %v1955
        %v1962 = vadd.f32 %v970, %v1957
        %s1963 = scalar_lea.vmem [#allocation9], 3072
        %v1964 = vld [vmem:[%s1963] sm:$0xff]
        %v1965 = vld [vmem:[%s1963 + $0x8] sm:$0xff]
        %v1966 = vld [vmem:[%s1963 + $0x10] sm:$0xff]
        %v1967 = vld [vmem:[%s1963 + $0x18] sm:$0xff]
        %v1968 = vld [vmem:[%s1963 + $0x20] sm:$0xff]
        %v1969 = vld [vmem:[%s1963 + $0x28] sm:$0xff]
        %v1970 = vld [vmem:[%s1963 + $0x30] sm:$0xff]
        %v1971 = vld [vmem:[%s1963 + $0x38] sm:$0xff]
        %v1972 = vld [vmem:[%s1963 + $0x40] sm:$0xff]
        %v1973 = vld [vmem:[%s1963 + $0x48] sm:$0xff]
        %v1974 = vld [vmem:[%s1963 + $0x50] sm:$0xff]
        %v1975 = vld [vmem:[%s1963 + $0x58] sm:$0xff]
        %v1976 = vld [vmem:[%s1963 + $0x60] sm:$0xff]
        %v1977 = vld [vmem:[%s1963 + $0x68] sm:$0xff]
        %v1978 = vld [vmem:[%s1963 + $0x70] sm:$0xff]
        %v1979 = vld [vmem:[%s1963 + $0x78] sm:$0xff]
        %v1980 = vld [vmem:[%s1963 + $0x80] sm:$0xff]
        %v1981 = vld [vmem:[%s1963 + $0x88] sm:$0xff]
        %v1982 = vld [vmem:[%s1963 + $0x90] sm:$0xff]
        %v1983 = vld [vmem:[%s1963 + $0x98] sm:$0xff]
        %v1984 = vld [vmem:[%s1963 + $0xa0] sm:$0xff]
        %v1985 = vld [vmem:[%s1963 + $0xa8] sm:$0xff]
        %v1986 = vld [vmem:[%s1963 + $0xb0] sm:$0xff]
        %v1987 = vld [vmem:[%s1963 + $0xb8] sm:$0xff]
        %v1988 = vld [vmem:[%s1963 + $0xc0] sm:$0xff]
        %v1989 = vld [vmem:[%s1963 + $0xc8] sm:$0xff]
        %v1990 = vld [vmem:[%s1963 + $0xd0] sm:$0xff]
        %v1991 = vld [vmem:[%s1963 + $0xd8] sm:$0xff]
        %v1992 = vld [vmem:[%s1963 + $0xe0] sm:$0xff]
        %v1993 = vld [vmem:[%s1963 + $0xe8] sm:$0xff]
        %v1994 = vld [vmem:[%s1963 + $0xf0] sm:$0xff]
        %v1995 = vld [vmem:[%s1963 + $0xf8] sm:$0xff]
        %v1996 = vld [vmem:[%s1963 + $0x100] sm:$0xff]
        %v1997 = vld [vmem:[%s1963 + $0x108] sm:$0xff]
        %v1998 = vld [vmem:[%s1963 + $0x110] sm:$0xff]
        %v1999 = vld [vmem:[%s1963 + $0x118] sm:$0xff]
        %v2000 = vld [vmem:[%s1963 + $0x120] sm:$0xff]
        %v2001 = vld [vmem:[%s1963 + $0x128] sm:$0xff]
        %v2002 = vld [vmem:[%s1963 + $0x130] sm:$0xff]
        %v2003 = vld [vmem:[%s1963 + $0x138] sm:$0xff]
        %v2004 = vld [vmem:[%s1963 + $0x140] sm:$0xff]
        %v2005 = vld [vmem:[%s1963 + $0x148] sm:$0xff]
        %v2006 = vld [vmem:[%s1963 + $0x150] sm:$0xff]
        %v2007 = vld [vmem:[%s1963 + $0x158] sm:$0xff]
        %v2008 = vld [vmem:[%s1963 + $0x160] sm:$0xff]
        %v2009 = vld [vmem:[%s1963 + $0x168] sm:$0xff]
        %v2010 = vld [vmem:[%s1963 + $0x170] sm:$0xff]
        %v2011 = vld [vmem:[%s1963 + $0x178] sm:$0xff]
        %v2012 = vld [vmem:[%s1963 + $0x180] sm:$0xff]
        %v2013 = vld [vmem:[%s1963 + $0x188] sm:$0xff]
        %v2014 = vld [vmem:[%s1963 + $0x190] sm:$0xff]
        %v2015 = vld [vmem:[%s1963 + $0x198] sm:$0xff]
        %v2016 = vld [vmem:[%s1963 + $0x1a0] sm:$0xff]
        %v2017 = vld [vmem:[%s1963 + $0x1a8] sm:$0xff]
        %v2018 = vld [vmem:[%s1963 + $0x1b0] sm:$0xff]
        %v2019 = vld [vmem:[%s1963 + $0x1b8] sm:$0xff]
        %v2020 = vld [vmem:[%s1963 + $0x1c0] sm:$0xff]
        %v2021 = vld [vmem:[%s1963 + $0x1c8] sm:$0xff]
        %v2022 = vld [vmem:[%s1963 + $0x1d0] sm:$0xff]
        %v2023 = vld [vmem:[%s1963 + $0x1d8] sm:$0xff]
        %v2024 = vld [vmem:[%s1963 + $0x1e0] sm:$0xff]
        %v2025 = vld [vmem:[%s1963 + $0x1e8] sm:$0xff]
        %v2026 = vld [vmem:[%s1963 + $0x1f0] sm:$0xff]
        %v2027 = vld [vmem:[%s1963 + $0x1f8] sm:$0xff]
        %v2028 = vld [vmem:[%s1963 + $0x200] sm:$0xff]
        %v2029 = vld [vmem:[%s1963 + $0x208] sm:$0xff]
        %v2030 = vld [vmem:[%s1963 + $0x210] sm:$0xff]
        %v2031 = vld [vmem:[%s1963 + $0x218] sm:$0xff]
        %v2032 = vld [vmem:[%s1963 + $0x220] sm:$0xff]
        %v2033 = vld [vmem:[%s1963 + $0x228] sm:$0xff]
        %v2034 = vld [vmem:[%s1963 + $0x230] sm:$0xff]
        %v2035 = vld [vmem:[%s1963 + $0x238] sm:$0xff]
        %v2036 = vld [vmem:[%s1963 + $0x240] sm:$0xff]
        %v2037 = vld [vmem:[%s1963 + $0x248] sm:$0xff]
        %v2038 = vld [vmem:[%s1963 + $0x250] sm:$0xff]
        %v2039 = vld [vmem:[%s1963 + $0x258] sm:$0xff]
        %v2040 = vld [vmem:[%s1963 + $0x260] sm:$0xff]
        %v2041 = vld [vmem:[%s1963 + $0x268] sm:$0xff]
        %v2042 = vld [vmem:[%s1963 + $0x270] sm:$0xff]
        %v2043 = vld [vmem:[%s1963 + $0x278] sm:$0xff]
        %v2044 = vld [vmem:[%s1963 + $0x280] sm:$0xff]
        %v2045 = vld [vmem:[%s1963 + $0x288] sm:$0xff]
        %v2046 = vld [vmem:[%s1963 + $0x290] sm:$0xff]
        %v2047 = vld [vmem:[%s1963 + $0x298] sm:$0xff]
        %v2048 = vld [vmem:[%s1963 + $0x2a0] sm:$0xff]
        %v2049 = vld [vmem:[%s1963 + $0x2a8] sm:$0xff]
        %v2050 = vld [vmem:[%s1963 + $0x2b0] sm:$0xff]
        %v2051 = vld [vmem:[%s1963 + $0x2b8] sm:$0xff]
        %v2052 = vld [vmem:[%s1963 + $0x2c0] sm:$0xff]
        %v2053 = vld [vmem:[%s1963 + $0x2c8] sm:$0xff]
        %v2054 = vld [vmem:[%s1963 + $0x2d0] sm:$0xff]
        %v2055 = vld [vmem:[%s1963 + $0x2d8] sm:$0xff]
        %v2056 = vld [vmem:[%s1963 + $0x2e0] sm:$0xff]
        %v2057 = vld [vmem:[%s1963 + $0x2e8] sm:$0xff]
        %v2058 = vld [vmem:[%s1963 + $0x2f0] sm:$0xff]
        %v2059 = vld [vmem:[%s1963 + $0x2f8] sm:$0xff]
        %v2060 = vld [vmem:[%s1963 + $0x300] sm:$0xff]
        %v2061 = vld [vmem:[%s1963 + $0x308] sm:$0xff]
        %v2062 = vld [vmem:[%s1963 + $0x310] sm:$0xff]
        %v2063 = vld [vmem:[%s1963 + $0x318] sm:$0xff]
        %v2064 = vld [vmem:[%s1963 + $0x320] sm:$0xff]
        %v2065 = vld [vmem:[%s1963 + $0x328] sm:$0xff]
        %v2066 = vld [vmem:[%s1963 + $0x330] sm:$0xff]
        %v2067 = vld [vmem:[%s1963 + $0x338] sm:$0xff]
        %v2068 = vld [vmem:[%s1963 + $0x340] sm:$0xff]
        %v2069 = vld [vmem:[%s1963 + $0x348] sm:$0xff]
        %v2070 = vld [vmem:[%s1963 + $0x350] sm:$0xff]
        %v2071 = vld [vmem:[%s1963 + $0x358] sm:$0xff]
        %v2072 = vld [vmem:[%s1963 + $0x360] sm:$0xff]
        %v2073 = vld [vmem:[%s1963 + $0x368] sm:$0xff]
        %v2074 = vld [vmem:[%s1963 + $0x370] sm:$0xff]
        %v2075 = vld [vmem:[%s1963 + $0x378] sm:$0xff]
        %v2076 = vld [vmem:[%s1963 + $0x380] sm:$0xff]
        %v2077 = vld [vmem:[%s1963 + $0x388] sm:$0xff]
        %v2078 = vld [vmem:[%s1963 + $0x390] sm:$0xff]
        %v2079 = vld [vmem:[%s1963 + $0x398] sm:$0xff]
        %v2080 = vld [vmem:[%s1963 + $0x3a0] sm:$0xff]
        %v2081 = vld [vmem:[%s1963 + $0x3a8] sm:$0xff]
        %v2082 = vld [vmem:[%s1963 + $0x3b0] sm:$0xff]
        %v2083 = vld [vmem:[%s1963 + $0x3b8] sm:$0xff]
        %v2084 = vld [vmem:[%s1963 + $0x3c0] sm:$0xff]
        %v2085 = vld [vmem:[%s1963 + $0x3c8] sm:$0xff]
        %v2086 = vld [vmem:[%s1963 + $0x3d0] sm:$0xff]
        %v2087 = vld [vmem:[%s1963 + $0x3d8] sm:$0xff]
        %v2088 = vld [vmem:[%s1963 + $0x3e0] sm:$0xff]
        %v2089 = vld [vmem:[%s1963 + $0x3e8] sm:$0xff]
        %v2090 = vld [vmem:[%s1963 + $0x3f0] sm:$0xff]
        %v2091 = vld [vmem:[%s1963 + $0x3f8] sm:$0xff]
        %v2092 = vld [vmem:[%s1963 + $0x400] sm:$0xff]
        %v2093 = vld [vmem:[%s1963 + $0x408] sm:$0xff]
        %v2094 = vld [vmem:[%s1963 + $0x410] sm:$0xff]
        %v2095 = vld [vmem:[%s1963 + $0x418] sm:$0xff]
        %v2096 = vld [vmem:[%s1963 + $0x420] sm:$0xff]
        %v2097 = vld [vmem:[%s1963 + $0x428] sm:$0xff]
        %v2098 = vld [vmem:[%s1963 + $0x430] sm:$0xff]
        %v2099 = vld [vmem:[%s1963 + $0x438] sm:$0xff]
        %v2100 = vld [vmem:[%s1963 + $0x440] sm:$0xff]
        %v2101 = vld [vmem:[%s1963 + $0x448] sm:$0xff]
        %v2102 = vld [vmem:[%s1963 + $0x450] sm:$0xff]
        %v2103 = vld [vmem:[%s1963 + $0x458] sm:$0xff]
        %v2104 = vld [vmem:[%s1963 + $0x460] sm:$0xff]
        %v2105 = vld [vmem:[%s1963 + $0x468] sm:$0xff]
        %v2106 = vld [vmem:[%s1963 + $0x470] sm:$0xff]
        %v2107 = vld [vmem:[%s1963 + $0x478] sm:$0xff]
        %v2108 = vld [vmem:[%s1963 + $0x480] sm:$0xff]
        %v2109 = vld [vmem:[%s1963 + $0x488] sm:$0xff]
        %v2110 = vld [vmem:[%s1963 + $0x490] sm:$0xff]
        %v2111 = vld [vmem:[%s1963 + $0x498] sm:$0xff]
        %v2112 = vld [vmem:[%s1963 + $0x4a0] sm:$0xff]
        %v2113 = vld [vmem:[%s1963 + $0x4a8] sm:$0xff]
        %v2114 = vld [vmem:[%s1963 + $0x4b0] sm:$0xff]
        %v2115 = vld [vmem:[%s1963 + $0x4b8] sm:$0xff]
        %v2116 = vld [vmem:[%s1963 + $0x4c0] sm:$0xff]
        %v2117 = vld [vmem:[%s1963 + $0x4c8] sm:$0xff]
        %v2118 = vld [vmem:[%s1963 + $0x4d0] sm:$0xff]
        %v2119 = vld [vmem:[%s1963 + $0x4d8] sm:$0xff]
        %v2120 = vld [vmem:[%s1963 + $0x4e0] sm:$0xff]
        %v2121 = vld [vmem:[%s1963 + $0x4e8] sm:$0xff]
        %v2122 = vld [vmem:[%s1963 + $0x4f0] sm:$0xff]
        %v2123 = vld [vmem:[%s1963 + $0x4f8] sm:$0xff]
        %v2124 = vld [vmem:[%s1963 + $0x500] sm:$0xff]
        %v2125 = vld [vmem:[%s1963 + $0x508] sm:$0xff]
        %v2126 = vld [vmem:[%s1963 + $0x510] sm:$0xff]
        %v2127 = vld [vmem:[%s1963 + $0x518] sm:$0xff]
        %v2128 = vld [vmem:[%s1963 + $0x520] sm:$0xff]
        %v2129 = vld [vmem:[%s1963 + $0x528] sm:$0xff]
        %v2130 = vld [vmem:[%s1963 + $0x530] sm:$0xff]
        %v2131 = vld [vmem:[%s1963 + $0x538] sm:$0xff]
        %v2132 = vld [vmem:[%s1963 + $0x540] sm:$0xff]
        %v2133 = vld [vmem:[%s1963 + $0x548] sm:$0xff]
        %v2134 = vld [vmem:[%s1963 + $0x550] sm:$0xff]
        %v2135 = vld [vmem:[%s1963 + $0x558] sm:$0xff]
        %v2136 = vld [vmem:[%s1963 + $0x560] sm:$0xff]
        %v2137 = vld [vmem:[%s1963 + $0x568] sm:$0xff]
        %v2138 = vld [vmem:[%s1963 + $0x570] sm:$0xff]
        %v2139 = vld [vmem:[%s1963 + $0x578] sm:$0xff]
        %v2140 = vld [vmem:[%s1963 + $0x580] sm:$0xff]
        %v2141 = vld [vmem:[%s1963 + $0x588] sm:$0xff]
        %v2142 = vld [vmem:[%s1963 + $0x590] sm:$0xff]
        %v2143 = vld [vmem:[%s1963 + $0x598] sm:$0xff]
        %v2144 = vld [vmem:[%s1963 + $0x5a0] sm:$0xff]
        %v2145 = vld [vmem:[%s1963 + $0x5a8] sm:$0xff]
        %v2146 = vld [vmem:[%s1963 + $0x5b0] sm:$0xff]
        %v2147 = vld [vmem:[%s1963 + $0x5b8] sm:$0xff]
        %v2148 = vld [vmem:[%s1963 + $0x5c0] sm:$0xff]
        %v2149 = vld [vmem:[%s1963 + $0x5c8] sm:$0xff]
        %v2150 = vld [vmem:[%s1963 + $0x5d0] sm:$0xff]
        %v2151 = vld [vmem:[%s1963 + $0x5d8] sm:$0xff]
        %v2152 = vld [vmem:[%s1963 + $0x5e0] sm:$0xff]
        %v2153 = vld [vmem:[%s1963 + $0x5e8] sm:$0xff]
        %v2154 = vld [vmem:[%s1963 + $0x5f0] sm:$0xff]
        %v2155 = vld [vmem:[%s1963 + $0x5f8] sm:$0xff]
        %s2156 = scalar_lea.vmem [#allocation11], 4
        %v2157 = vld [vmem:[%s2156] sm:$0x3]
        %2158 = vst.msk [vmem:[#allocation2] ss:$8 sm:$0x3] %vm1168, 0.0
        %2159 = vst.msk [vmem:[#allocation2] ss:$8 sm:$0x0] %vm1168, 0.0
        %2160 = vst.msk [vmem:[%s1171] ss:$8 sm:$0x3] %vm1168, 0.0
        %2161 = vst.msk [vmem:[%s1171] ss:$8 sm:$0x0] %vm1168, 0.0
        %v2166 = vrot.slane %v1959, 7
        %v2167 = vrot.slane %v1960, 7
        %v2168 = vrot.slane %v1961, 7
        %v2169 = vsel %vm1178, %v2166, %v2168
        %v2170 = vrot.slane %v1962, 7
        %v2171 = vsel %vm1178, %v2167, %v2170
        %2176 = vst [vmem:[#allocation2] sm:$0xfe] %v2166
        %2177 = vst [vmem:[#allocation2 + $0x8] sm:$0xfe] %v2167
        %2178 = vst [vmem:[#allocation2 + $0x30] sm:$0xff] %v2169
        %2179 = vst [vmem:[#allocation2 + $0x38] sm:$0xff] %v2171
        %v2180 = vrot.slane %v1959, 1
        %v2181 = vrot.slane %v1961, 1
        %v2182 = vsel %vm1193, %v2180, %v2181
        %v2183 = vrot.slane %v1960, 1
        %v2184 = vrot.slane %v1962, 1
        %v2185 = vsel %vm1193, %v2183, %v2184
        %2190 = vst [vmem:[#allocation2 + $0x20] sm:$0xff] %v2182
        %2191 = vst [vmem:[#allocation2 + $0x28] sm:$0xff] %v2185
        %2192 = vst [vmem:[#allocation2 + $0x50] sm:$0x7f] %v2181
        %2193 = vst [vmem:[#allocation2 + $0x58] sm:$0x7f] %v2184
        %2194 = vst [vmem:[#allocation2 + $0x10] sm:$0xff] %v1959
        %2195 = vst [vmem:[#allocation2 + $0x18] sm:$0xff] %v1960
        %2196 = vst [vmem:[#allocation2 + $0x40] sm:$0xff] %v1961
        %2197 = vst [vmem:[#allocation2 + $0x48] sm:$0xff] %v1962
        %v2198 = vld [vmem:[#allocation2] sm:$0xff]
        %v2199 = vld [vmem:[#allocation2 + $0x8] sm:$0xff]
        %v2200 = vld [vmem:[#allocation2 + $0x10] sm:$0xff]
        %v2201 = vld [vmem:[#allocation2 + $0x18] sm:$0xff]
        %v2202 = vld [vmem:[#allocation2 + $0x20] sm:$0xff]
        %v2203 = vld [vmem:[#allocation2 + $0x28] sm:$0xff]
        %v2204 = vld [vmem:[#allocation2 + $0x30] sm:$0xff]
        %v2205 = vld [vmem:[#allocation2 + $0x38] sm:$0xff]
        %v2206 = vld [vmem:[#allocation2 + $0x40] sm:$0xff]
        %v2207 = vld [vmem:[#allocation2 + $0x48] sm:$0xff]
        %v2208 = vld [vmem:[#allocation2 + $0x50] sm:$0xff]
        %v2209 = vld [vmem:[#allocation2 + $0x58] sm:$0xff]
        %v2211 = vlaneseq
        %v2212 = vshrl.u32 %v2211, 7
        %v2213 = vsub.s32 0, %v2212
        %v2214 = vrot.slane %v2157, %v2213
        %v2215 = vlaneseq
        %v2216 = vshrl.u32 %v2215, 7
        %v2217 = vsub.s32 1, %v2216
        %v2218 = vrot.slane %v2157, %v2217
        %2221 = vmatprep.subr.mxu0 %v1995
        %2222 = vmatpush1.msra.mxu0 %v1994
        %2223 = vmatprep.subr.mxu0 %v1993
        %2224 = vmatpush1.msra.mxu0 %v1992
        %2225 = vmatprep.subr.mxu0 %v1991
        %2226 = vmatpush1.msra.mxu0 %v1990
        %2227 = vmatprep.subr.mxu0 %v1989
        %2228 = vmatpush1.msra.mxu0 %v1988
        %2229 = vmatprep.subr.mxu0 %v1987
        %2230 = vmatpush1.msra.mxu0 %v1986
        %2231 = vmatprep.subr.mxu0 %v1985
        %2232 = vmatpush1.msra.mxu0 %v1984
        %2233 = vmatprep.subr.mxu0 %v1983
        %2234 = vmatpush1.msra.mxu0 %v1982
        %2235 = vmatprep.subr.mxu0 %v1981
        %2236 = vmatpush1.msra.mxu0 %v1980
        %2237 = vmatprep.subr.mxu0 %v1979
        %2238 = vmatpush1.msra.mxu0 %v1978
        %2239 = vmatprep.subr.mxu0 %v1977
        %2240 = vmatpush1.msra.mxu0 %v1976
        %2241 = vmatprep.subr.mxu0 %v1975
        %2242 = vmatpush1.msra.mxu0 %v1974
        %2243 = vmatprep.subr.mxu0 %v1973
        %2244 = vmatpush1.msra.mxu0 %v1972
        %2245 = vmatprep.subr.mxu0 %v1971
        %2246 = vmatpush1.msra.mxu0 %v1970
        %2247 = vmatprep.subr.mxu0 %v1969
        %2248 = vmatpush1.msra.mxu0 %v1968
        %2249 = vmatprep.subr.mxu0 %v1967
        %2250 = vmatpush1.msra.mxu0 %v1966
        %2251 = vmatprep.subr.mxu0 %v1965
        %2252 = vmatpush1.msra.mxu0 %v1964
        %2253 = vmatprep.subr.mxu0 %v2027
        %2254 = vmatpush2.msra.mxu0 %v2026
        %2255 = vmatprep.subr.mxu0 %v2025
        %2256 = vmatpush2.msra.mxu0 %v2024
        %2257 = vmatprep.subr.mxu0 %v2023
        %2258 = vmatpush2.msra.mxu0 %v2022
        %2259 = vmatprep.subr.mxu0 %v2021
        %2260 = vmatpush2.msra.mxu0 %v2020
        %2261 = vmatprep.subr.mxu0 %v2019
        %2262 = vmatpush2.msra.mxu0 %v2018
        %2263 = vmatprep.subr.mxu0 %v2017
        %2264 = vmatpush2.msra.mxu0 %v2016
        %2265 = vmatprep.subr.mxu0 %v2015
        %2266 = vmatpush2.msra.mxu0 %v2014
        %2267 = vmatprep.subr.mxu0 %v2013
        %2268 = vmatpush2.msra.mxu0 %v2012
        %2269 = vmatprep.subr.mxu0 %v2011
        %2270 = vmatpush2.msra.mxu0 %v2010
        %2271 = vmatprep.subr.mxu0 %v2009
        %2272 = vmatpush2.msra.mxu0 %v2008
        %2273 = vmatprep.subr.mxu0 %v2007
        %2274 = vmatpush2.msra.mxu0 %v2006
        %2275 = vmatprep.subr.mxu0 %v2005
        %2276 = vmatpush2.msra.mxu0 %v2004
        %2277 = vmatprep.subr.mxu0 %v2003
        %2278 = vmatpush2.msra.mxu0 %v2002
        %2279 = vmatprep.subr.mxu0 %v2001
        %2280 = vmatpush2.msra.mxu0 %v2000
        %2281 = vmatprep.subr.mxu0 %v1999
        %2282 = vmatpush2.msra.mxu0 %v1998
        %2283 = vmatprep.subr.mxu0 %v1997
        %2284 = vmatpush2.msra.mxu0 %v1996
        %2285 = vmatprep.mubr.f32.mxu0 %v2199
        %2286 = vmatmul.mubr.f32.gmra.mxu0 %v2198
        %v2287 = vpop.f32.mrf.mxu0
        %v2288 = vadd.f32 %v2214, %v2287
        %v2289 = vpop.f32.mrf.mxu0
        %v2290 = vadd.f32 %v2218, %v2289
        %2291 = vmatprep.mubr.f32.mxu0 %v2205
        %2292 = vmatmul.mubr.f32.gmra.mxu0 %v2204
        %v2293 = vpop.f32.mrf.mxu0
        %v2294 = vadd.f32 %v2214, %v2293
        %v2295 = vpop.f32.mrf.mxu0
        %v2296 = vadd.f32 %v2218, %v2295
        %2297 = vdwg.mxu0
        %2298 = vmatprep.subr.mxu0 %v2059
        %2299 = vmatpush1.msra.mxu0 %v2058
        %2300 = vmatprep.subr.mxu0 %v2057
        %2301 = vmatpush1.msra.mxu0 %v2056
        %2302 = vmatprep.subr.mxu0 %v2055
        %2303 = vmatpush1.msra.mxu0 %v2054
        %2304 = vmatprep.subr.mxu0 %v2053
        %2305 = vmatpush1.msra.mxu0 %v2052
        %2306 = vmatprep.subr.mxu0 %v2051
        %2307 = vmatpush1.msra.mxu0 %v2050
        %2308 = vmatprep.subr.mxu0 %v2049
        %2309 = vmatpush1.msra.mxu0 %v2048
        %2310 = vmatprep.subr.mxu0 %v2047
        %2311 = vmatpush1.msra.mxu0 %v2046
        %2312 = vmatprep.subr.mxu0 %v2045
        %2313 = vmatpush1.msra.mxu0 %v2044
        %2314 = vmatprep.subr.mxu0 %v2043
        %2315 = vmatpush1.msra.mxu0 %v2042
        %2316 = vmatprep.subr.mxu0 %v2041
        %2317 = vmatpush1.msra.mxu0 %v2040
        %2318 = vmatprep.subr.mxu0 %v2039
        %2319 = vmatpush1.msra.mxu0 %v2038
        %2320 = vmatprep.subr.mxu0 %v2037
        %2321 = vmatpush1.msra.mxu0 %v2036
        %2322 = vmatprep.subr.mxu0 %v2035
        %2323 = vmatpush1.msra.mxu0 %v2034
        %2324 = vmatprep.subr.mxu0 %v2033
        %2325 = vmatpush1.msra.mxu0 %v2032
        %2326 = vmatprep.subr.mxu0 %v2031
        %2327 = vmatpush1.msra.mxu0 %v2030
        %2328 = vmatprep.subr.mxu0 %v2029
        %2329 = vmatpush1.msra.mxu0 %v2028
        %2330 = vmatprep.subr.mxu0 %v2091
        %2331 = vmatpush2.msra.mxu0 %v2090
        %2332 = vmatprep.subr.mxu0 %v2089
        %2333 = vmatpush2.msra.mxu0 %v2088
        %2334 = vmatprep.subr.mxu0 %v2087
        %2335 = vmatpush2.msra.mxu0 %v2086
        %2336 = vmatprep.subr.mxu0 %v2085
        %2337 = vmatpush2.msra.mxu0 %v2084
        %2338 = vmatprep.subr.mxu0 %v2083
        %2339 = vmatpush2.msra.mxu0 %v2082
        %2340 = vmatprep.subr.mxu0 %v2081
        %2341 = vmatpush2.msra.mxu0 %v2080
        %2342 = vmatprep.subr.mxu0 %v2079
        %2343 = vmatpush2.msra.mxu0 %v2078
        %2344 = vmatprep.subr.mxu0 %v2077
        %2345 = vmatpush2.msra.mxu0 %v2076
        %2346 = vmatprep.subr.mxu0 %v2075
        %2347 = vmatpush2.msra.mxu0 %v2074
        %2348 = vmatprep.subr.mxu0 %v2073
        %2349 = vmatpush2.msra.mxu0 %v2072
        %2350 = vmatprep.subr.mxu0 %v2071
        %2351 = vmatpush2.msra.mxu0 %v2070
        %2352 = vmatprep.subr.mxu0 %v2069
        %2353 = vmatpush2.msra.mxu0 %v2068
        %2354 = vmatprep.subr.mxu0 %v2067
        %2355 = vmatpush2.msra.mxu0 %v2066
        %2356 = vmatprep.subr.mxu0 %v2065
        %2357 = vmatpush2.msra.mxu0 %v2064
        %2358 = vmatprep.subr.mxu0 %v2063
        %2359 = vmatpush2.msra.mxu0 %v2062
        %2360 = vmatprep.subr.mxu0 %v2061
        %2361 = vmatpush2.msra.mxu0 %v2060
        %2362 = vmatprep.mubr.f32.mxu0 %v2201
        %2363 = vmatmul.mubr.f32.gmra.mxu0 %v2200
        %v2364 = vpop.f32.mrf.mxu0
        %v2365 = vadd.f32 %v2288, %v2364
        %v2366 = vpop.f32.mrf.mxu0
        %v2367 = vadd.f32 %v2290, %v2366
        %2368 = vmatprep.mubr.f32.mxu0 %v2207
        %2369 = vmatmul.mubr.f32.gmra.mxu0 %v2206
        %v2370 = vpop.f32.mrf.mxu0
        %v2371 = vadd.f32 %v2294, %v2370
        %v2372 = vpop.f32.mrf.mxu0
        %v2373 = vadd.f32 %v2296, %v2372
        %2374 = vdwg.mxu0
        %2375 = vmatprep.subr.mxu0 %v2123
        %2376 = vmatpush1.msra.mxu0 %v2122
        %2377 = vmatprep.subr.mxu0 %v2121
        %2378 = vmatpush1.msra.mxu0 %v2120
        %2379 = vmatprep.subr.mxu0 %v2119
        %2380 = vmatpush1.msra.mxu0 %v2118
        %2381 = vmatprep.subr.mxu0 %v2117
        %2382 = vmatpush1.msra.mxu0 %v2116
        %2383 = vmatprep.subr.mxu0 %v2115
        %2384 = vmatpush1.msra.mxu0 %v2114
        %2385 = vmatprep.subr.mxu0 %v2113
        %2386 = vmatpush1.msra.mxu0 %v2112
        %2387 = vmatprep.subr.mxu0 %v2111
        %2388 = vmatpush1.msra.mxu0 %v2110
        %2389 = vmatprep.subr.mxu0 %v2109
        %2390 = vmatpush1.msra.mxu0 %v2108
        %2391 = vmatprep.subr.mxu0 %v2107
        %2392 = vmatpush1.msra.mxu0 %v2106
        %2393 = vmatprep.subr.mxu0 %v2105
        %2394 = vmatpush1.msra.mxu0 %v2104
        %2395 = vmatprep.subr.mxu0 %v2103
        %2396 = vmatpush1.msra.mxu0 %v2102
        %2397 = vmatprep.subr.mxu0 %v2101
        %2398 = vmatpush1.msra.mxu0 %v2100
        %2399 = vmatprep.subr.mxu0 %v2099
        %2400 = vmatpush1.msra.mxu0 %v2098
        %2401 = vmatprep.subr.mxu0 %v2097
        %2402 = vmatpush1.msra.mxu0 %v2096
        %2403 = vmatprep.subr.mxu0 %v2095
        %2404 = vmatpush1.msra.mxu0 %v2094
        %2405 = vmatprep.subr.mxu0 %v2093
        %2406 = vmatpush1.msra.mxu0 %v2092
        %2407 = vmatprep.subr.mxu0 %v2155
        %2408 = vmatpush2.msra.mxu0 %v2154
        %2409 = vmatprep.subr.mxu0 %v2153
        %2410 = vmatpush2.msra.mxu0 %v2152
        %2411 = vmatprep.subr.mxu0 %v2151
        %2412 = vmatpush2.msra.mxu0 %v2150
        %2413 = vmatprep.subr.mxu0 %v2149
        %2414 = vmatpush2.msra.mxu0 %v2148
        %2415 = vmatprep.subr.mxu0 %v2147
        %2416 = vmatpush2.msra.mxu0 %v2146
        %2417 = vmatprep.subr.mxu0 %v2145
        %2418 = vmatpush2.msra.mxu0 %v2144
        %2419 = vmatprep.subr.mxu0 %v2143
        %2420 = vmatpush2.msra.mxu0 %v2142
        %2421 = vmatprep.subr.mxu0 %v2141
        %2422 = vmatpush2.msra.mxu0 %v2140
        %2423 = vmatprep.subr.mxu0 %v2139
        %2424 = vmatpush2.msra.mxu0 %v2138
        %2425 = vmatprep.subr.mxu0 %v2137
        %2426 = vmatpush2.msra.mxu0 %v2136
        %2427 = vmatprep.subr.mxu0 %v2135
        %2428 = vmatpush2.msra.mxu0 %v2134
        %2429 = vmatprep.subr.mxu0 %v2133
        %2430 = vmatpush2.msra.mxu0 %v2132
        %2431 = vmatprep.subr.mxu0 %v2131
        %2432 = vmatpush2.msra.mxu0 %v2130
        %2433 = vmatprep.subr.mxu0 %v2129
        %2434 = vmatpush2.msra.mxu0 %v2128
        %2435 = vmatprep.subr.mxu0 %v2127
        %2436 = vmatpush2.msra.mxu0 %v2126
        %2437 = vmatprep.subr.mxu0 %v2125
        %2438 = vmatpush2.msra.mxu0 %v2124
        %2439 = vmatprep.mubr.f32.mxu0 %v2203
        %2440 = vmatmul.mubr.f32.gmra.mxu0 %v2202
        %v2441 = vpop.f32.mrf.mxu0
        %v2442 = vadd.f32 %v2365, %v2441
        %v2443 = vpop.f32.mrf.mxu0
        %v2444 = vadd.f32 %v2367, %v2443
        %2445 = vmatprep.mubr.f32.mxu0 %v2209
        %2446 = vmatmul.mubr.f32.gmra.mxu0 %v2208
        %v2447 = vpop.f32.mrf.mxu0
        %v2448 = vadd.f32 %v2371, %v2447
        %v2449 = vpop.f32.mrf.mxu0
        %v2450 = vadd.f32 %v2373, %v2449
        %2451 = vdwg.mxu0
        %v2452 = vmax.f32 %v2442, 0.0
        %v2453 = vmax.f32 %v2444, 0.0
        %v2454 = vmax.f32 %v2448, 0.0
        %v2455 = vmax.f32 %v2450, 0.0
        %s2456 = scalar_lea.vmem [#allocation9], 4608
        %v2457 = vld [vmem:[%s2456] sm:$0xff]
        %v2458 = vld [vmem:[%s2456 + $0x8] sm:$0xff]
        %v2459 = vld [vmem:[%s2456 + $0x10] sm:$0xff]
        %v2460 = vld [vmem:[%s2456 + $0x18] sm:$0xff]
        %v2461 = vld [vmem:[%s2456 + $0x20] sm:$0xff]
        %v2462 = vld [vmem:[%s2456 + $0x28] sm:$0xff]
        %v2463 = vld [vmem:[%s2456 + $0x30] sm:$0xff]
        %v2464 = vld [vmem:[%s2456 + $0x38] sm:$0xff]
        %v2465 = vld [vmem:[%s2456 + $0x40] sm:$0xff]
        %v2466 = vld [vmem:[%s2456 + $0x48] sm:$0xff]
        %v2467 = vld [vmem:[%s2456 + $0x50] sm:$0xff]
        %v2468 = vld [vmem:[%s2456 + $0x58] sm:$0xff]
        %v2469 = vld [vmem:[%s2456 + $0x60] sm:$0xff]
        %v2470 = vld [vmem:[%s2456 + $0x68] sm:$0xff]
        %v2471 = vld [vmem:[%s2456 + $0x70] sm:$0xff]
        %v2472 = vld [vmem:[%s2456 + $0x78] sm:$0xff]
        %v2473 = vld [vmem:[%s2456 + $0x80] sm:$0xff]
        %v2474 = vld [vmem:[%s2456 + $0x88] sm:$0xff]
        %v2475 = vld [vmem:[%s2456 + $0x90] sm:$0xff]
        %v2476 = vld [vmem:[%s2456 + $0x98] sm:$0xff]
        %v2477 = vld [vmem:[%s2456 + $0xa0] sm:$0xff]
        %v2478 = vld [vmem:[%s2456 + $0xa8] sm:$0xff]
        %v2479 = vld [vmem:[%s2456 + $0xb0] sm:$0xff]
        %v2480 = vld [vmem:[%s2456 + $0xb8] sm:$0xff]
        %v2481 = vld [vmem:[%s2456 + $0xc0] sm:$0xff]
        %v2482 = vld [vmem:[%s2456 + $0xc8] sm:$0xff]
        %v2483 = vld [vmem:[%s2456 + $0xd0] sm:$0xff]
        %v2484 = vld [vmem:[%s2456 + $0xd8] sm:$0xff]
        %v2485 = vld [vmem:[%s2456 + $0xe0] sm:$0xff]
        %v2486 = vld [vmem:[%s2456 + $0xe8] sm:$0xff]
        %v2487 = vld [vmem:[%s2456 + $0xf0] sm:$0xff]
        %v2488 = vld [vmem:[%s2456 + $0xf8] sm:$0xff]
        %v2489 = vld [vmem:[%s2456 + $0x100] sm:$0xff]
        %v2490 = vld [vmem:[%s2456 + $0x108] sm:$0xff]
        %v2491 = vld [vmem:[%s2456 + $0x110] sm:$0xff]
        %v2492 = vld [vmem:[%s2456 + $0x118] sm:$0xff]
        %v2493 = vld [vmem:[%s2456 + $0x120] sm:$0xff]
        %v2494 = vld [vmem:[%s2456 + $0x128] sm:$0xff]
        %v2495 = vld [vmem:[%s2456 + $0x130] sm:$0xff]
        %v2496 = vld [vmem:[%s2456 + $0x138] sm:$0xff]
        %v2497 = vld [vmem:[%s2456 + $0x140] sm:$0xff]
        %v2498 = vld [vmem:[%s2456 + $0x148] sm:$0xff]
        %v2499 = vld [vmem:[%s2456 + $0x150] sm:$0xff]
        %v2500 = vld [vmem:[%s2456 + $0x158] sm:$0xff]
        %v2501 = vld [vmem:[%s2456 + $0x160] sm:$0xff]
        %v2502 = vld [vmem:[%s2456 + $0x168] sm:$0xff]
        %v2503 = vld [vmem:[%s2456 + $0x170] sm:$0xff]
        %v2504 = vld [vmem:[%s2456 + $0x178] sm:$0xff]
        %v2505 = vld [vmem:[%s2456 + $0x180] sm:$0xff]
        %v2506 = vld [vmem:[%s2456 + $0x188] sm:$0xff]
        %v2507 = vld [vmem:[%s2456 + $0x190] sm:$0xff]
        %v2508 = vld [vmem:[%s2456 + $0x198] sm:$0xff]
        %v2509 = vld [vmem:[%s2456 + $0x1a0] sm:$0xff]
        %v2510 = vld [vmem:[%s2456 + $0x1a8] sm:$0xff]
        %v2511 = vld [vmem:[%s2456 + $0x1b0] sm:$0xff]
        %v2512 = vld [vmem:[%s2456 + $0x1b8] sm:$0xff]
        %v2513 = vld [vmem:[%s2456 + $0x1c0] sm:$0xff]
        %v2514 = vld [vmem:[%s2456 + $0x1c8] sm:$0xff]
        %v2515 = vld [vmem:[%s2456 + $0x1d0] sm:$0xff]
        %v2516 = vld [vmem:[%s2456 + $0x1d8] sm:$0xff]
        %v2517 = vld [vmem:[%s2456 + $0x1e0] sm:$0xff]
        %v2518 = vld [vmem:[%s2456 + $0x1e8] sm:$0xff]
        %v2519 = vld [vmem:[%s2456 + $0x1f0] sm:$0xff]
        %v2520 = vld [vmem:[%s2456 + $0x1f8] sm:$0xff]
        %v2521 = vld [vmem:[%s2456 + $0x200] sm:$0xff]
        %v2522 = vld [vmem:[%s2456 + $0x208] sm:$0xff]
        %v2523 = vld [vmem:[%s2456 + $0x210] sm:$0xff]
        %v2524 = vld [vmem:[%s2456 + $0x218] sm:$0xff]
        %v2525 = vld [vmem:[%s2456 + $0x220] sm:$0xff]
        %v2526 = vld [vmem:[%s2456 + $0x228] sm:$0xff]
        %v2527 = vld [vmem:[%s2456 + $0x230] sm:$0xff]
        %v2528 = vld [vmem:[%s2456 + $0x238] sm:$0xff]
        %v2529 = vld [vmem:[%s2456 + $0x240] sm:$0xff]
        %v2530 = vld [vmem:[%s2456 + $0x248] sm:$0xff]
        %v2531 = vld [vmem:[%s2456 + $0x250] sm:$0xff]
        %v2532 = vld [vmem:[%s2456 + $0x258] sm:$0xff]
        %v2533 = vld [vmem:[%s2456 + $0x260] sm:$0xff]
        %v2534 = vld [vmem:[%s2456 + $0x268] sm:$0xff]
        %v2535 = vld [vmem:[%s2456 + $0x270] sm:$0xff]
        %v2536 = vld [vmem:[%s2456 + $0x278] sm:$0xff]
        %v2537 = vld [vmem:[%s2456 + $0x280] sm:$0xff]
        %v2538 = vld [vmem:[%s2456 + $0x288] sm:$0xff]
        %v2539 = vld [vmem:[%s2456 + $0x290] sm:$0xff]
        %v2540 = vld [vmem:[%s2456 + $0x298] sm:$0xff]
        %v2541 = vld [vmem:[%s2456 + $0x2a0] sm:$0xff]
        %v2542 = vld [vmem:[%s2456 + $0x2a8] sm:$0xff]
        %v2543 = vld [vmem:[%s2456 + $0x2b0] sm:$0xff]
        %v2544 = vld [vmem:[%s2456 + $0x2b8] sm:$0xff]
        %v2545 = vld [vmem:[%s2456 + $0x2c0] sm:$0xff]
        %v2546 = vld [vmem:[%s2456 + $0x2c8] sm:$0xff]
        %v2547 = vld [vmem:[%s2456 + $0x2d0] sm:$0xff]
        %v2548 = vld [vmem:[%s2456 + $0x2d8] sm:$0xff]
        %v2549 = vld [vmem:[%s2456 + $0x2e0] sm:$0xff]
        %v2550 = vld [vmem:[%s2456 + $0x2e8] sm:$0xff]
        %v2551 = vld [vmem:[%s2456 + $0x2f0] sm:$0xff]
        %v2552 = vld [vmem:[%s2456 + $0x2f8] sm:$0xff]
        %v2553 = vld [vmem:[%s2456 + $0x300] sm:$0xff]
        %v2554 = vld [vmem:[%s2456 + $0x308] sm:$0xff]
        %v2555 = vld [vmem:[%s2456 + $0x310] sm:$0xff]
        %v2556 = vld [vmem:[%s2456 + $0x318] sm:$0xff]
        %v2557 = vld [vmem:[%s2456 + $0x320] sm:$0xff]
        %v2558 = vld [vmem:[%s2456 + $0x328] sm:$0xff]
        %v2559 = vld [vmem:[%s2456 + $0x330] sm:$0xff]
        %v2560 = vld [vmem:[%s2456 + $0x338] sm:$0xff]
        %v2561 = vld [vmem:[%s2456 + $0x340] sm:$0xff]
        %v2562 = vld [vmem:[%s2456 + $0x348] sm:$0xff]
        %v2563 = vld [vmem:[%s2456 + $0x350] sm:$0xff]
        %v2564 = vld [vmem:[%s2456 + $0x358] sm:$0xff]
        %v2565 = vld [vmem:[%s2456 + $0x360] sm:$0xff]
        %v2566 = vld [vmem:[%s2456 + $0x368] sm:$0xff]
        %v2567 = vld [vmem:[%s2456 + $0x370] sm:$0xff]
        %v2568 = vld [vmem:[%s2456 + $0x378] sm:$0xff]
        %v2569 = vld [vmem:[%s2456 + $0x380] sm:$0xff]
        %v2570 = vld [vmem:[%s2456 + $0x388] sm:$0xff]
        %v2571 = vld [vmem:[%s2456 + $0x390] sm:$0xff]
        %v2572 = vld [vmem:[%s2456 + $0x398] sm:$0xff]
        %v2573 = vld [vmem:[%s2456 + $0x3a0] sm:$0xff]
        %v2574 = vld [vmem:[%s2456 + $0x3a8] sm:$0xff]
        %v2575 = vld [vmem:[%s2456 + $0x3b0] sm:$0xff]
        %v2576 = vld [vmem:[%s2456 + $0x3b8] sm:$0xff]
        %v2577 = vld [vmem:[%s2456 + $0x3c0] sm:$0xff]
        %v2578 = vld [vmem:[%s2456 + $0x3c8] sm:$0xff]
        %v2579 = vld [vmem:[%s2456 + $0x3d0] sm:$0xff]
        %v2580 = vld [vmem:[%s2456 + $0x3d8] sm:$0xff]
        %v2581 = vld [vmem:[%s2456 + $0x3e0] sm:$0xff]
        %v2582 = vld [vmem:[%s2456 + $0x3e8] sm:$0xff]
        %v2583 = vld [vmem:[%s2456 + $0x3f0] sm:$0xff]
        %v2584 = vld [vmem:[%s2456 + $0x3f8] sm:$0xff]
        %v2585 = vld [vmem:[%s2456 + $0x400] sm:$0xff]
        %v2586 = vld [vmem:[%s2456 + $0x408] sm:$0xff]
        %v2587 = vld [vmem:[%s2456 + $0x410] sm:$0xff]
        %v2588 = vld [vmem:[%s2456 + $0x418] sm:$0xff]
        %v2589 = vld [vmem:[%s2456 + $0x420] sm:$0xff]
        %v2590 = vld [vmem:[%s2456 + $0x428] sm:$0xff]
        %v2591 = vld [vmem:[%s2456 + $0x430] sm:$0xff]
        %v2592 = vld [vmem:[%s2456 + $0x438] sm:$0xff]
        %v2593 = vld [vmem:[%s2456 + $0x440] sm:$0xff]
        %v2594 = vld [vmem:[%s2456 + $0x448] sm:$0xff]
        %v2595 = vld [vmem:[%s2456 + $0x450] sm:$0xff]
        %v2596 = vld [vmem:[%s2456 + $0x458] sm:$0xff]
        %v2597 = vld [vmem:[%s2456 + $0x460] sm:$0xff]
        %v2598 = vld [vmem:[%s2456 + $0x468] sm:$0xff]
        %v2599 = vld [vmem:[%s2456 + $0x470] sm:$0xff]
        %v2600 = vld [vmem:[%s2456 + $0x478] sm:$0xff]
        %v2601 = vld [vmem:[%s2456 + $0x480] sm:$0xff]
        %v2602 = vld [vmem:[%s2456 + $0x488] sm:$0xff]
        %v2603 = vld [vmem:[%s2456 + $0x490] sm:$0xff]
        %v2604 = vld [vmem:[%s2456 + $0x498] sm:$0xff]
        %v2605 = vld [vmem:[%s2456 + $0x4a0] sm:$0xff]
        %v2606 = vld [vmem:[%s2456 + $0x4a8] sm:$0xff]
        %v2607 = vld [vmem:[%s2456 + $0x4b0] sm:$0xff]
        %v2608 = vld [vmem:[%s2456 + $0x4b8] sm:$0xff]
        %v2609 = vld [vmem:[%s2456 + $0x4c0] sm:$0xff]
        %v2610 = vld [vmem:[%s2456 + $0x4c8] sm:$0xff]
        %v2611 = vld [vmem:[%s2456 + $0x4d0] sm:$0xff]
        %v2612 = vld [vmem:[%s2456 + $0x4d8] sm:$0xff]
        %v2613 = vld [vmem:[%s2456 + $0x4e0] sm:$0xff]
        %v2614 = vld [vmem:[%s2456 + $0x4e8] sm:$0xff]
        %v2615 = vld [vmem:[%s2456 + $0x4f0] sm:$0xff]
        %v2616 = vld [vmem:[%s2456 + $0x4f8] sm:$0xff]
        %v2617 = vld [vmem:[%s2456 + $0x500] sm:$0xff]
        %v2618 = vld [vmem:[%s2456 + $0x508] sm:$0xff]
        %v2619 = vld [vmem:[%s2456 + $0x510] sm:$0xff]
        %v2620 = vld [vmem:[%s2456 + $0x518] sm:$0xff]
        %v2621 = vld [vmem:[%s2456 + $0x520] sm:$0xff]
        %v2622 = vld [vmem:[%s2456 + $0x528] sm:$0xff]
        %v2623 = vld [vmem:[%s2456 + $0x530] sm:$0xff]
        %v2624 = vld [vmem:[%s2456 + $0x538] sm:$0xff]
        %v2625 = vld [vmem:[%s2456 + $0x540] sm:$0xff]
        %v2626 = vld [vmem:[%s2456 + $0x548] sm:$0xff]
        %v2627 = vld [vmem:[%s2456 + $0x550] sm:$0xff]
        %v2628 = vld [vmem:[%s2456 + $0x558] sm:$0xff]
        %v2629 = vld [vmem:[%s2456 + $0x560] sm:$0xff]
        %v2630 = vld [vmem:[%s2456 + $0x568] sm:$0xff]
        %v2631 = vld [vmem:[%s2456 + $0x570] sm:$0xff]
        %v2632 = vld [vmem:[%s2456 + $0x578] sm:$0xff]
        %v2633 = vld [vmem:[%s2456 + $0x580] sm:$0xff]
        %v2634 = vld [vmem:[%s2456 + $0x588] sm:$0xff]
        %v2635 = vld [vmem:[%s2456 + $0x590] sm:$0xff]
        %v2636 = vld [vmem:[%s2456 + $0x598] sm:$0xff]
        %v2637 = vld [vmem:[%s2456 + $0x5a0] sm:$0xff]
        %v2638 = vld [vmem:[%s2456 + $0x5a8] sm:$0xff]
        %v2639 = vld [vmem:[%s2456 + $0x5b0] sm:$0xff]
        %v2640 = vld [vmem:[%s2456 + $0x5b8] sm:$0xff]
        %v2641 = vld [vmem:[%s2456 + $0x5c0] sm:$0xff]
        %v2642 = vld [vmem:[%s2456 + $0x5c8] sm:$0xff]
        %v2643 = vld [vmem:[%s2456 + $0x5d0] sm:$0xff]
        %v2644 = vld [vmem:[%s2456 + $0x5d8] sm:$0xff]
        %v2645 = vld [vmem:[%s2456 + $0x5e0] sm:$0xff]
        %v2646 = vld [vmem:[%s2456 + $0x5e8] sm:$0xff]
        %v2647 = vld [vmem:[%s2456 + $0x5f0] sm:$0xff]
        %v2648 = vld [vmem:[%s2456 + $0x5f8] sm:$0xff]
        %s2649 = scalar_lea.vmem [#allocation11], 6
        %v2650 = vld [vmem:[%s2649] sm:$0x3]
        %2651 = vst.msk [vmem:[#allocation2] ss:$8 sm:$0x3] %vm1168, 0.0
        %2652 = vst.msk [vmem:[#allocation2] ss:$8 sm:$0x0] %vm1168, 0.0
        %2653 = vst.msk [vmem:[%s1171] ss:$8 sm:$0x3] %vm1168, 0.0
        %2654 = vst.msk [vmem:[%s1171] ss:$8 sm:$0x0] %vm1168, 0.0
        %v2659 = vrot.slane %v2452, 7
        %v2660 = vrot.slane %v2453, 7
        %v2661 = vrot.slane %v2454, 7
        %v2662 = vsel %vm1178, %v2659, %v2661
        %v2663 = vrot.slane %v2455, 7
        %v2664 = vsel %vm1178, %v2660, %v2663
        %2669 = vst [vmem:[#allocation2] sm:$0xfe] %v2659
        %2670 = vst [vmem:[#allocation2 + $0x8] sm:$0xfe] %v2660
        %2671 = vst [vmem:[#allocation2 + $0x30] sm:$0xff] %v2662
        %2672 = vst [vmem:[#allocation2 + $0x38] sm:$0xff] %v2664
        %v2673 = vrot.slane %v2452, 1
        %v2674 = vrot.slane %v2454, 1
        %v2675 = vsel %vm1193, %v2673, %v2674
        %v2676 = vrot.slane %v2453, 1
        %v2677 = vrot.slane %v2455, 1
        %v2678 = vsel %vm1193, %v2676, %v2677
        %2683 = vst [vmem:[#allocation2 + $0x20] sm:$0xff] %v2675
        %2684 = vst [vmem:[#allocation2 + $0x28] sm:$0xff] %v2678
        %2685 = vst [vmem:[#allocation2 + $0x50] sm:$0x7f] %v2674
        %2686 = vst [vmem:[#allocation2 + $0x58] sm:$0x7f] %v2677
        %2687 = vst [vmem:[#allocation2 + $0x10] sm:$0xff] %v2452
        %2688 = vst [vmem:[#allocation2 + $0x18] sm:$0xff] %v2453
        %2689 = vst [vmem:[#allocation2 + $0x40] sm:$0xff] %v2454
        %2690 = vst [vmem:[#allocation2 + $0x48] sm:$0xff] %v2455
        %v2691 = vld [vmem:[#allocation2] sm:$0xff]
        %v2692 = vld [vmem:[#allocation2 + $0x8] sm:$0xff]
        %v2693 = vld [vmem:[#allocation2 + $0x10] sm:$0xff]
        %v2694 = vld [vmem:[#allocation2 + $0x18] sm:$0xff]
        %v2695 = vld [vmem:[#allocation2 + $0x20] sm:$0xff]
        %v2696 = vld [vmem:[#allocation2 + $0x28] sm:$0xff]
        %v2697 = vld [vmem:[#allocation2 + $0x30] sm:$0xff]
        %v2698 = vld [vmem:[#allocation2 + $0x38] sm:$0xff]
        %v2699 = vld [vmem:[#allocation2 + $0x40] sm:$0xff]
        %v2700 = vld [vmem:[#allocation2 + $0x48] sm:$0xff]
        %v2701 = vld [vmem:[#allocation2 + $0x50] sm:$0xff]
        %v2702 = vld [vmem:[#allocation2 + $0x58] sm:$0xff]
        %v2704 = vlaneseq
        %v2705 = vshrl.u32 %v2704, 7
        %v2706 = vsub.s32 0, %v2705
        %v2707 = vrot.slane %v2650, %v2706
        %v2708 = vlaneseq
        %v2709 = vshrl.u32 %v2708, 7
        %v2710 = vsub.s32 1, %v2709
        %v2711 = vrot.slane %v2650, %v2710
        %2714 = vmatprep.subr.mxu0 %v2488
        %2715 = vmatpush1.msra.mxu0 %v2487
        %2716 = vmatprep.subr.mxu0 %v2486
        %2717 = vmatpush1.msra.mxu0 %v2485
        %2718 = vmatprep.subr.mxu0 %v2484
        %2719 = vmatpush1.msra.mxu0 %v2483
        %2720 = vmatprep.subr.mxu0 %v2482
        %2721 = vmatpush1.msra.mxu0 %v2481
        %2722 = vmatprep.subr.mxu0 %v2480
        %2723 = vmatpush1.msra.mxu0 %v2479
        %2724 = vmatprep.subr.mxu0 %v2478
        %2725 = vmatpush1.msra.mxu0 %v2477
        %2726 = vmatprep.subr.mxu0 %v2476
        %2727 = vmatpush1.msra.mxu0 %v2475
        %2728 = vmatprep.subr.mxu0 %v2474
        %2729 = vmatpush1.msra.mxu0 %v2473
        %2730 = vmatprep.subr.mxu0 %v2472
        %2731 = vmatpush1.msra.mxu0 %v2471
        %2732 = vmatprep.subr.mxu0 %v2470
        %2733 = vmatpush1.msra.mxu0 %v2469
        %2734 = vmatprep.subr.mxu0 %v2468
        %2735 = vmatpush1.msra.mxu0 %v2467
        %2736 = vmatprep.subr.mxu0 %v2466
        %2737 = vmatpush1.msra.mxu0 %v2465
        %2738 = vmatprep.subr.mxu0 %v2464
        %2739 = vmatpush1.msra.mxu0 %v2463
        %2740 = vmatprep.subr.mxu0 %v2462
        %2741 = vmatpush1.msra.mxu0 %v2461
        %2742 = vmatprep.subr.mxu0 %v2460
        %2743 = vmatpush1.msra.mxu0 %v2459
        %2744 = vmatprep.subr.mxu0 %v2458
        %2745 = vmatpush1.msra.mxu0 %v2457
        %2746 = vmatprep.subr.mxu0 %v2520
        %2747 = vmatpush2.msra.mxu0 %v2519
        %2748 = vmatprep.subr.mxu0 %v2518
        %2749 = vmatpush2.msra.mxu0 %v2517
        %2750 = vmatprep.subr.mxu0 %v2516
        %2751 = vmatpush2.msra.mxu0 %v2515
        %2752 = vmatprep.subr.mxu0 %v2514
        %2753 = vmatpush2.msra.mxu0 %v2513
        %2754 = vmatprep.subr.mxu0 %v2512
        %2755 = vmatpush2.msra.mxu0 %v2511
        %2756 = vmatprep.subr.mxu0 %v2510
        %2757 = vmatpush2.msra.mxu0 %v2509
        %2758 = vmatprep.subr.mxu0 %v2508
        %2759 = vmatpush2.msra.mxu0 %v2507
        %2760 = vmatprep.subr.mxu0 %v2506
        %2761 = vmatpush2.msra.mxu0 %v2505
        %2762 = vmatprep.subr.mxu0 %v2504
        %2763 = vmatpush2.msra.mxu0 %v2503
        %2764 = vmatprep.subr.mxu0 %v2502
        %2765 = vmatpush2.msra.mxu0 %v2501
        %2766 = vmatprep.subr.mxu0 %v2500
        %2767 = vmatpush2.msra.mxu0 %v2499
        %2768 = vmatprep.subr.mxu0 %v2498
        %2769 = vmatpush2.msra.mxu0 %v2497
        %2770 = vmatprep.subr.mxu0 %v2496
        %2771 = vmatpush2.msra.mxu0 %v2495
        %2772 = vmatprep.subr.mxu0 %v2494
        %2773 = vmatpush2.msra.mxu0 %v2493
        %2774 = vmatprep.subr.mxu0 %v2492
        %2775 = vmatpush2.msra.mxu0 %v2491
        %2776 = vmatprep.subr.mxu0 %v2490
        %2777 = vmatpush2.msra.mxu0 %v2489
        %2778 = vmatprep.mubr.f32.mxu0 %v2692
        %2779 = vmatmul.mubr.f32.gmra.mxu0 %v2691
        %v2780 = vpop.f32.mrf.mxu0
        %v2781 = vadd.f32 %v2707, %v2780
        %v2782 = vpop.f32.mrf.mxu0
        %v2783 = vadd.f32 %v2711, %v2782
        %2784 = vmatprep.mubr.f32.mxu0 %v2698
        %2785 = vmatmul.mubr.f32.gmra.mxu0 %v2697
        %v2786 = vpop.f32.mrf.mxu0
        %v2787 = vadd.f32 %v2707, %v2786
        %v2788 = vpop.f32.mrf.mxu0
        %v2789 = vadd.f32 %v2711, %v2788
        %2790 = vdwg.mxu0
        %2791 = vmatprep.subr.mxu0 %v2552
        %2792 = vmatpush1.msra.mxu0 %v2551
        %2793 = vmatprep.subr.mxu0 %v2550
        %2794 = vmatpush1.msra.mxu0 %v2549
        %2795 = vmatprep.subr.mxu0 %v2548
        %2796 = vmatpush1.msra.mxu0 %v2547
        %2797 = vmatprep.subr.mxu0 %v2546
        %2798 = vmatpush1.msra.mxu0 %v2545
        %2799 = vmatprep.subr.mxu0 %v2544
        %2800 = vmatpush1.msra.mxu0 %v2543
        %2801 = vmatprep.subr.mxu0 %v2542
        %2802 = vmatpush1.msra.mxu0 %v2541
        %2803 = vmatprep.subr.mxu0 %v2540
        %2804 = vmatpush1.msra.mxu0 %v2539
        %2805 = vmatprep.subr.mxu0 %v2538
        %2806 = vmatpush1.msra.mxu0 %v2537
        %2807 = vmatprep.subr.mxu0 %v2536
        %2808 = vmatpush1.msra.mxu0 %v2535
        %2809 = vmatprep.subr.mxu0 %v2534
        %2810 = vmatpush1.msra.mxu0 %v2533
        %2811 = vmatprep.subr.mxu0 %v2532
        %2812 = vmatpush1.msra.mxu0 %v2531
        %2813 = vmatprep.subr.mxu0 %v2530
        %2814 = vmatpush1.msra.mxu0 %v2529
        %2815 = vmatprep.subr.mxu0 %v2528
        %2816 = vmatpush1.msra.mxu0 %v2527
        %2817 = vmatprep.subr.mxu0 %v2526
        %2818 = vmatpush1.msra.mxu0 %v2525
        %2819 = vmatprep.subr.mxu0 %v2524
        %2820 = vmatpush1.msra.mxu0 %v2523
        %2821 = vmatprep.subr.mxu0 %v2522
        %2822 = vmatpush1.msra.mxu0 %v2521
        %2823 = vmatprep.subr.mxu0 %v2584
        %2824 = vmatpush2.msra.mxu0 %v2583
        %2825 = vmatprep.subr.mxu0 %v2582
        %2826 = vmatpush2.msra.mxu0 %v2581
        %2827 = vmatprep.subr.mxu0 %v2580
        %2828 = vmatpush2.msra.mxu0 %v2579
        %2829 = vmatprep.subr.mxu0 %v2578
        %2830 = vmatpush2.msra.mxu0 %v2577
        %2831 = vmatprep.subr.mxu0 %v2576
        %2832 = vmatpush2.msra.mxu0 %v2575
        %2833 = vmatprep.subr.mxu0 %v2574
        %2834 = vmatpush2.msra.mxu0 %v2573
        %2835 = vmatprep.subr.mxu0 %v2572
        %2836 = vmatpush2.msra.mxu0 %v2571
        %2837 = vmatprep.subr.mxu0 %v2570
        %2838 = vmatpush2.msra.mxu0 %v2569
        %2839 = vmatprep.subr.mxu0 %v2568
        %2840 = vmatpush2.msra.mxu0 %v2567
        %2841 = vmatprep.subr.mxu0 %v2566
        %2842 = vmatpush2.msra.mxu0 %v2565
        %2843 = vmatprep.subr.mxu0 %v2564
        %2844 = vmatpush2.msra.mxu0 %v2563
        %2845 = vmatprep.subr.mxu0 %v2562
        %2846 = vmatpush2.msra.mxu0 %v2561
        %2847 = vmatprep.subr.mxu0 %v2560
        %2848 = vmatpush2.msra.mxu0 %v2559
        %2849 = vmatprep.subr.mxu0 %v2558
        %2850 = vmatpush2.msra.mxu0 %v2557
        %2851 = vmatprep.subr.mxu0 %v2556
        %2852 = vmatpush2.msra.mxu0 %v2555
        %2853 = vmatprep.subr.mxu0 %v2554
        %2854 = vmatpush2.msra.mxu0 %v2553
        %2855 = vmatprep.mubr.f32.mxu0 %v2694
        %2856 = vmatmul.mubr.f32.gmra.mxu0 %v2693
        %v2857 = vpop.f32.mrf.mxu0
        %v2858 = vadd.f32 %v2781, %v2857
        %v2859 = vpop.f32.mrf.mxu0
        %v2860 = vadd.f32 %v2783, %v2859
        %2861 = vmatprep.mubr.f32.mxu0 %v2700
        %2862 = vmatmul.mubr.f32.gmra.mxu0 %v2699
        %v2863 = vpop.f32.mrf.mxu0
        %v2864 = vadd.f32 %v2787, %v2863
        %v2865 = vpop.f32.mrf.mxu0
        %v2866 = vadd.f32 %v2789, %v2865
        %2867 = vdwg.mxu0
        %2868 = vmatprep.subr.mxu0 %v2616
        %2869 = vmatpush1.msra.mxu0 %v2615
        %2870 = vmatprep.subr.mxu0 %v2614
        %2871 = vmatpush1.msra.mxu0 %v2613
        %2872 = vmatprep.subr.mxu0 %v2612
        %2873 = vmatpush1.msra.mxu0 %v2611
        %2874 = vmatprep.subr.mxu0 %v2610
        %2875 = vmatpush1.msra.mxu0 %v2609
        %2876 = vmatprep.subr.mxu0 %v2608
        %2877 = vmatpush1.msra.mxu0 %v2607
        %2878 = vmatprep.subr.mxu0 %v2606
        %2879 = vmatpush1.msra.mxu0 %v2605
        %2880 = vmatprep.subr.mxu0 %v2604
        %2881 = vmatpush1.msra.mxu0 %v2603
        %2882 = vmatprep.subr.mxu0 %v2602
        %2883 = vmatpush1.msra.mxu0 %v2601
        %2884 = vmatprep.subr.mxu0 %v2600
        %2885 = vmatpush1.msra.mxu0 %v2599
        %2886 = vmatprep.subr.mxu0 %v2598
        %2887 = vmatpush1.msra.mxu0 %v2597
        %2888 = vmatprep.subr.mxu0 %v2596
        %2889 = vmatpush1.msra.mxu0 %v2595
        %2890 = vmatprep.subr.mxu0 %v2594
        %2891 = vmatpush1.msra.mxu0 %v2593
        %2892 = vmatprep.subr.mxu0 %v2592
        %2893 = vmatpush1.msra.mxu0 %v2591
        %2894 = vmatprep.subr.mxu0 %v2590
        %2895 = vmatpush1.msra.mxu0 %v2589
        %2896 = vmatprep.subr.mxu0 %v2588
        %2897 = vmatpush1.msra.mxu0 %v2587
        %2898 = vmatprep.subr.mxu0 %v2586
        %2899 = vmatpush1.msra.mxu0 %v2585
        %2900 = vmatprep.subr.mxu0 %v2648
        %2901 = vmatpush2.msra.mxu0 %v2647
        %2902 = vmatprep.subr.mxu0 %v2646
        %2903 = vmatpush2.msra.mxu0 %v2645
        %2904 = vmatprep.subr.mxu0 %v2644
        %2905 = vmatpush2.msra.mxu0 %v2643
        %2906 = vmatprep.subr.mxu0 %v2642
        %2907 = vmatpush2.msra.mxu0 %v2641
        %2908 = vmatprep.subr.mxu0 %v2640
        %2909 = vmatpush2.msra.mxu0 %v2639
        %2910 = vmatprep.subr.mxu0 %v2638
        %2911 = vmatpush2.msra.mxu0 %v2637
        %2912 = vmatprep.subr.mxu0 %v2636
        %2913 = vmatpush2.msra.mxu0 %v2635
        %2914 = vmatprep.subr.mxu0 %v2634
        %2915 = vmatpush2.msra.mxu0 %v2633
        %2916 = vmatprep.subr.mxu0 %v2632
        %2917 = vmatpush2.msra.mxu0 %v2631
        %2918 = vmatprep.subr.mxu0 %v2630
        %2919 = vmatpush2.msra.mxu0 %v2629
        %2920 = vmatprep.subr.mxu0 %v2628
        %2921 = vmatpush2.msra.mxu0 %v2627
        %2922 = vmatprep.subr.mxu0 %v2626
        %2923 = vmatpush2.msra.mxu0 %v2625
        %2924 = vmatprep.subr.mxu0 %v2624
        %2925 = vmatpush2.msra.mxu0 %v2623
        %2926 = vmatprep.subr.mxu0 %v2622
        %2927 = vmatpush2.msra.mxu0 %v2621
        %2928 = vmatprep.subr.mxu0 %v2620
        %2929 = vmatpush2.msra.mxu0 %v2619
        %2930 = vmatprep.subr.mxu0 %v2618
        %2931 = vmatpush2.msra.mxu0 %v2617
        %2932 = vmatprep.mubr.f32.mxu0 %v2696
        %2933 = vmatmul.mubr.f32.gmra.mxu0 %v2695
        %v2934 = vpop.f32.mrf.mxu0
        %v2935 = vadd.f32 %v2858, %v2934
        %v2936 = vpop.f32.mrf.mxu0
        %v2937 = vadd.f32 %v2860, %v2936
        %2938 = vmatprep.mubr.f32.mxu0 %v2702
        %2939 = vmatmul.mubr.f32.gmra.mxu0 %v2701
        %v2940 = vpop.f32.mrf.mxu0
        %v2941 = vadd.f32 %v2864, %v2940
        %v2942 = vpop.f32.mrf.mxu0
        %v2943 = vadd.f32 %v2866, %v2942
        %2944 = vdwg.mxu0
        %v2945 = vadd.f32 %v1959, %v2935
        %v2946 = vadd.f32 %v1960, %v2937
        %v2947 = vadd.f32 %v1961, %v2941
        %v2948 = vadd.f32 %v1962, %v2943
        %v2949 = vld [vmem:[#allocation12] sm:$0xff]
        %v2950 = vld [vmem:[#allocation12 + $0x8] sm:$0xff]
        %v2951 = vld [vmem:[#allocation12 + $0x10] sm:$0xff]
        %v2952 = vld [vmem:[#allocation12 + $0x18] sm:$0xff]
        %v2953 = vld [vmem:[#allocation12 + $0x20] sm:$0xff]
        %v2954 = vld [vmem:[#allocation12 + $0x28] sm:$0xff]
        %v2955 = vld [vmem:[#allocation12 + $0x30] sm:$0xff]
        %v2956 = vld [vmem:[#allocation12 + $0x38] sm:$0xff]
        %v2957 = vld [vmem:[#allocation12 + $0x40] sm:$0xff]
        %v2958 = vld [vmem:[#allocation12 + $0x48] sm:$0xff]
        %v2959 = vld [vmem:[#allocation12 + $0x50] sm:$0xff]
        %v2960 = vld [vmem:[#allocation12 + $0x58] sm:$0xff]
        %v2961 = vld [vmem:[#allocation12 + $0x60] sm:$0xff]
        %v2962 = vld [vmem:[#allocation12 + $0x68] sm:$0xff]
        %v2963 = vld [vmem:[#allocation12 + $0x70] sm:$0xff]
        %v2964 = vld [vmem:[#allocation12 + $0x78] sm:$0xff]
        %v2965 = vld [vmem:[#allocation12 + $0x80] sm:$0xff]
        %v2966 = vld [vmem:[#allocation12 + $0x88] sm:$0xff]
        %v2967 = vld [vmem:[#allocation12 + $0x90] sm:$0xff]
        %v2968 = vld [vmem:[#allocation12 + $0x98] sm:$0xff]
        %v2969 = vld [vmem:[#allocation12 + $0xa0] sm:$0xff]
        %v2970 = vld [vmem:[#allocation12 + $0xa8] sm:$0xff]
        %v2971 = vld [vmem:[#allocation12 + $0xb0] sm:$0xff]
        %v2972 = vld [vmem:[#allocation12 + $0xb8] sm:$0xff]
        %v2973 = vld [vmem:[#allocation12 + $0xc0] sm:$0xff]
        %v2974 = vld [vmem:[#allocation12 + $0xc8] sm:$0xff]
        %v2975 = vld [vmem:[#allocation12 + $0xd0] sm:$0xff]
        %v2976 = vld [vmem:[#allocation12 + $0xd8] sm:$0xff]
        %v2977 = vld [vmem:[#allocation12 + $0xe0] sm:$0xff]
        %v2978 = vld [vmem:[#allocation12 + $0xe8] sm:$0xff]
        %v2979 = vld [vmem:[#allocation12 + $0xf0] sm:$0xff]
        %v2980 = vld [vmem:[#allocation12 + $0xf8] sm:$0xff]
        %v2981 = vld [vmem:[#allocation12 + $0x100] sm:$0xff]
        %v2982 = vld [vmem:[#allocation12 + $0x108] sm:$0xff]
        %v2983 = vld [vmem:[#allocation12 + $0x110] sm:$0xff]
        %v2984 = vld [vmem:[#allocation12 + $0x118] sm:$0xff]
        %v2985 = vld [vmem:[#allocation12 + $0x120] sm:$0xff]
        %v2986 = vld [vmem:[#allocation12 + $0x128] sm:$0xff]
        %v2987 = vld [vmem:[#allocation12 + $0x130] sm:$0xff]
        %v2988 = vld [vmem:[#allocation12 + $0x138] sm:$0xff]
        %v2989 = vld [vmem:[#allocation12 + $0x140] sm:$0xff]
        %v2990 = vld [vmem:[#allocation12 + $0x148] sm:$0xff]
        %v2991 = vld [vmem:[#allocation12 + $0x150] sm:$0xff]
        %v2992 = vld [vmem:[#allocation12 + $0x158] sm:$0xff]
        %v2993 = vld [vmem:[#allocation12 + $0x160] sm:$0xff]
        %v2994 = vld [vmem:[#allocation12 + $0x168] sm:$0xff]
        %v2995 = vld [vmem:[#allocation12 + $0x170] sm:$0xff]
        %v2996 = vld [vmem:[#allocation12 + $0x178] sm:$0xff]
        %v2997 = vld [vmem:[#allocation12 + $0x180] sm:$0xff]
        %v2998 = vld [vmem:[#allocation12 + $0x188] sm:$0xff]
        %v2999 = vld [vmem:[#allocation12 + $0x190] sm:$0xff]
        %v3000 = vld [vmem:[#allocation12 + $0x198] sm:$0xff]
        %v3001 = vld [vmem:[#allocation12 + $0x1a0] sm:$0xff]
        %v3002 = vld [vmem:[#allocation12 + $0x1a8] sm:$0xff]
        %v3003 = vld [vmem:[#allocation12 + $0x1b0] sm:$0xff]
        %v3004 = vld [vmem:[#allocation12 + $0x1b8] sm:$0xff]
        %v3005 = vld [vmem:[#allocation12 + $0x1c0] sm:$0xff]
        %v3006 = vld [vmem:[#allocation12 + $0x1c8] sm:$0xff]
        %v3007 = vld [vmem:[#allocation12 + $0x1d0] sm:$0xff]
        %v3008 = vld [vmem:[#allocation12 + $0x1d8] sm:$0xff]
        %v3009 = vld [vmem:[#allocation12 + $0x1e0] sm:$0xff]
        %v3010 = vld [vmem:[#allocation12 + $0x1e8] sm:$0xff]
        %v3011 = vld [vmem:[#allocation12 + $0x1f0] sm:$0xff]
        %v3012 = vld [vmem:[#allocation12 + $0x1f8] sm:$0xff]
        %v3013 = vld [vmem:[#allocation12 + $0x200] sm:$0xff]
        %v3014 = vld [vmem:[#allocation12 + $0x208] sm:$0xff]
        %v3015 = vld [vmem:[#allocation12 + $0x210] sm:$0xff]
        %v3016 = vld [vmem:[#allocation12 + $0x218] sm:$0xff]
        %v3017 = vld [vmem:[#allocation12 + $0x220] sm:$0xff]
        %v3018 = vld [vmem:[#allocation12 + $0x228] sm:$0xff]
        %v3019 = vld [vmem:[#allocation12 + $0x230] sm:$0xff]
        %v3020 = vld [vmem:[#allocation12 + $0x238] sm:$0xff]
        %v3021 = vld [vmem:[#allocation12 + $0x240] sm:$0xff]
        %v3022 = vld [vmem:[#allocation12 + $0x248] sm:$0xff]
        %v3023 = vld [vmem:[#allocation12 + $0x250] sm:$0xff]
        %v3024 = vld [vmem:[#allocation12 + $0x258] sm:$0xff]
        %v3025 = vld [vmem:[#allocation12 + $0x260] sm:$0xff]
        %v3026 = vld [vmem:[#allocation12 + $0x268] sm:$0xff]
        %v3027 = vld [vmem:[#allocation12 + $0x270] sm:$0xff]
        %v3028 = vld [vmem:[#allocation12 + $0x278] sm:$0xff]
        %v3029 = vld [vmem:[#allocation12 + $0x280] sm:$0xff]
        %v3030 = vld [vmem:[#allocation12 + $0x288] sm:$0xff]
        %v3031 = vld [vmem:[#allocation12 + $0x290] sm:$0xff]
        %v3032 = vld [vmem:[#allocation12 + $0x298] sm:$0xff]
        %v3033 = vld [vmem:[#allocation12 + $0x2a0] sm:$0xff]
        %v3034 = vld [vmem:[#allocation12 + $0x2a8] sm:$0xff]
        %v3035 = vld [vmem:[#allocation12 + $0x2b0] sm:$0xff]
        %v3036 = vld [vmem:[#allocation12 + $0x2b8] sm:$0xff]
        %v3037 = vld [vmem:[#allocation12 + $0x2c0] sm:$0xff]
        %v3038 = vld [vmem:[#allocation12 + $0x2c8] sm:$0xff]
        %v3039 = vld [vmem:[#allocation12 + $0x2d0] sm:$0xff]
        %v3040 = vld [vmem:[#allocation12 + $0x2d8] sm:$0xff]
        %v3041 = vld [vmem:[#allocation12 + $0x2e0] sm:$0xff]
        %v3042 = vld [vmem:[#allocation12 + $0x2e8] sm:$0xff]
        %v3043 = vld [vmem:[#allocation12 + $0x2f0] sm:$0xff]
        %v3044 = vld [vmem:[#allocation12 + $0x2f8] sm:$0xff]
        %v3045 = vld [vmem:[#allocation12 + $0x300] sm:$0xff]
        %v3046 = vld [vmem:[#allocation12 + $0x308] sm:$0xff]
        %v3047 = vld [vmem:[#allocation12 + $0x310] sm:$0xff]
        %v3048 = vld [vmem:[#allocation12 + $0x318] sm:$0xff]
        %v3049 = vld [vmem:[#allocation12 + $0x320] sm:$0xff]
        %v3050 = vld [vmem:[#allocation12 + $0x328] sm:$0xff]
        %v3051 = vld [vmem:[#allocation12 + $0x330] sm:$0xff]
        %v3052 = vld [vmem:[#allocation12 + $0x338] sm:$0xff]
        %v3053 = vld [vmem:[#allocation12 + $0x340] sm:$0xff]
        %v3054 = vld [vmem:[#allocation12 + $0x348] sm:$0xff]
        %v3055 = vld [vmem:[#allocation12 + $0x350] sm:$0xff]
        %v3056 = vld [vmem:[#allocation12 + $0x358] sm:$0xff]
        %v3057 = vld [vmem:[#allocation12 + $0x360] sm:$0xff]
        %v3058 = vld [vmem:[#allocation12 + $0x368] sm:$0xff]
        %v3059 = vld [vmem:[#allocation12 + $0x370] sm:$0xff]
        %v3060 = vld [vmem:[#allocation12 + $0x378] sm:$0xff]
        %v3061 = vld [vmem:[#allocation12 + $0x380] sm:$0xff]
        %v3062 = vld [vmem:[#allocation12 + $0x388] sm:$0xff]
        %v3063 = vld [vmem:[#allocation12 + $0x390] sm:$0xff]
        %v3064 = vld [vmem:[#allocation12 + $0x398] sm:$0xff]
        %v3065 = vld [vmem:[#allocation12 + $0x3a0] sm:$0xff]
        %v3066 = vld [vmem:[#allocation12 + $0x3a8] sm:$0xff]
        %v3067 = vld [vmem:[#allocation12 + $0x3b0] sm:$0xff]
        %v3068 = vld [vmem:[#allocation12 + $0x3b8] sm:$0xff]
        %v3069 = vld [vmem:[#allocation12 + $0x3c0] sm:$0xff]
        %v3070 = vld [vmem:[#allocation12 + $0x3c8] sm:$0xff]
        %v3071 = vld [vmem:[#allocation12 + $0x3d0] sm:$0xff]
        %v3072 = vld [vmem:[#allocation12 + $0x3d8] sm:$0xff]
        %v3073 = vld [vmem:[#allocation12 + $0x3e0] sm:$0xff]
        %v3074 = vld [vmem:[#allocation12 + $0x3e8] sm:$0xff]
        %v3075 = vld [vmem:[#allocation12 + $0x3f0] sm:$0xff]
        %v3076 = vld [vmem:[#allocation12 + $0x3f8] sm:$0xff]
        %v3077 = vld [vmem:[#allocation12 + $0x400] sm:$0xff]
        %v3078 = vld [vmem:[#allocation12 + $0x408] sm:$0xff]
        %v3079 = vld [vmem:[#allocation12 + $0x410] sm:$0xff]
        %v3080 = vld [vmem:[#allocation12 + $0x418] sm:$0xff]
        %v3081 = vld [vmem:[#allocation12 + $0x420] sm:$0xff]
        %v3082 = vld [vmem:[#allocation12 + $0x428] sm:$0xff]
        %v3083 = vld [vmem:[#allocation12 + $0x430] sm:$0xff]
        %v3084 = vld [vmem:[#allocation12 + $0x438] sm:$0xff]
        %v3085 = vld [vmem:[#allocation12 + $0x440] sm:$0xff]
        %v3086 = vld [vmem:[#allocation12 + $0x448] sm:$0xff]
        %v3087 = vld [vmem:[#allocation12 + $0x450] sm:$0xff]
        %v3088 = vld [vmem:[#allocation12 + $0x458] sm:$0xff]
        %v3089 = vld [vmem:[#allocation12 + $0x460] sm:$0xff]
        %v3090 = vld [vmem:[#allocation12 + $0x468] sm:$0xff]
        %v3091 = vld [vmem:[#allocation12 + $0x470] sm:$0xff]
        %v3092 = vld [vmem:[#allocation12 + $0x478] sm:$0xff]
        %v3093 = vld [vmem:[#allocation12 + $0x480] sm:$0xff]
        %v3094 = vld [vmem:[#allocation12 + $0x488] sm:$0xff]
        %v3095 = vld [vmem:[#allocation12 + $0x490] sm:$0xff]
        %v3096 = vld [vmem:[#allocation12 + $0x498] sm:$0xff]
        %v3097 = vld [vmem:[#allocation12 + $0x4a0] sm:$0xff]
        %v3098 = vld [vmem:[#allocation12 + $0x4a8] sm:$0xff]
        %v3099 = vld [vmem:[#allocation12 + $0x4b0] sm:$0xff]
        %v3100 = vld [vmem:[#allocation12 + $0x4b8] sm:$0xff]
        %v3101 = vld [vmem:[#allocation12 + $0x4c0] sm:$0xff]
        %v3102 = vld [vmem:[#allocation12 + $0x4c8] sm:$0xff]
        %v3103 = vld [vmem:[#allocation12 + $0x4d0] sm:$0xff]
        %v3104 = vld [vmem:[#allocation12 + $0x4d8] sm:$0xff]
        %v3105 = vld [vmem:[#allocation12 + $0x4e0] sm:$0xff]
        %v3106 = vld [vmem:[#allocation12 + $0x4e8] sm:$0xff]
        %v3107 = vld [vmem:[#allocation12 + $0x4f0] sm:$0xff]
        %v3108 = vld [vmem:[#allocation12 + $0x4f8] sm:$0xff]
        %v3109 = vld [vmem:[#allocation12 + $0x500] sm:$0xff]
        %v3110 = vld [vmem:[#allocation12 + $0x508] sm:$0xff]
        %v3111 = vld [vmem:[#allocation12 + $0x510] sm:$0xff]
        %v3112 = vld [vmem:[#allocation12 + $0x518] sm:$0xff]
        %v3113 = vld [vmem:[#allocation12 + $0x520] sm:$0xff]
        %v3114 = vld [vmem:[#allocation12 + $0x528] sm:$0xff]
        %v3115 = vld [vmem:[#allocation12 + $0x530] sm:$0xff]
        %v3116 = vld [vmem:[#allocation12 + $0x538] sm:$0xff]
        %v3117 = vld [vmem:[#allocation12 + $0x540] sm:$0xff]
        %v3118 = vld [vmem:[#allocation12 + $0x548] sm:$0xff]
        %v3119 = vld [vmem:[#allocation12 + $0x550] sm:$0xff]
        %v3120 = vld [vmem:[#allocation12 + $0x558] sm:$0xff]
        %v3121 = vld [vmem:[#allocation12 + $0x560] sm:$0xff]
        %v3122 = vld [vmem:[#allocation12 + $0x568] sm:$0xff]
        %v3123 = vld [vmem:[#allocation12 + $0x570] sm:$0xff]
        %v3124 = vld [vmem:[#allocation12 + $0x578] sm:$0xff]
        %v3125 = vld [vmem:[#allocation12 + $0x580] sm:$0xff]
        %v3126 = vld [vmem:[#allocation12 + $0x588] sm:$0xff]
        %v3127 = vld [vmem:[#allocation12 + $0x590] sm:$0xff]
        %v3128 = vld [vmem:[#allocation12 + $0x598] sm:$0xff]
        %v3129 = vld [vmem:[#allocation12 + $0x5a0] sm:$0xff]
        %v3130 = vld [vmem:[#allocation12 + $0x5a8] sm:$0xff]
        %v3131 = vld [vmem:[#allocation12 + $0x5b0] sm:$0xff]
        %v3132 = vld [vmem:[#allocation12 + $0x5b8] sm:$0xff]
        %v3133 = vld [vmem:[#allocation12 + $0x5c0] sm:$0xff]
        %v3134 = vld [vmem:[#allocation12 + $0x5c8] sm:$0xff]
        %v3135 = vld [vmem:[#allocation12 + $0x5d0] sm:$0xff]
        %v3136 = vld [vmem:[#allocation12 + $0x5d8] sm:$0xff]
        %v3137 = vld [vmem:[#allocation12 + $0x5e0] sm:$0xff]
        %v3138 = vld [vmem:[#allocation12 + $0x5e8] sm:$0xff]
        %v3139 = vld [vmem:[#allocation12 + $0x5f0] sm:$0xff]
        %v3140 = vld [vmem:[#allocation12 + $0x5f8] sm:$0xff]
        %v3141 = vld [vmem:[#allocation12 + $0x600] sm:$0xff]
        %v3142 = vld [vmem:[#allocation12 + $0x608] sm:$0xff]
        %v3143 = vld [vmem:[#allocation12 + $0x610] sm:$0xff]
        %v3144 = vld [vmem:[#allocation12 + $0x618] sm:$0xff]
        %v3145 = vld [vmem:[#allocation12 + $0x620] sm:$0xff]
        %v3146 = vld [vmem:[#allocation12 + $0x628] sm:$0xff]
        %v3147 = vld [vmem:[#allocation12 + $0x630] sm:$0xff]
        %v3148 = vld [vmem:[#allocation12 + $0x638] sm:$0xff]
        %v3149 = vld [vmem:[#allocation12 + $0x640] sm:$0xff]
        %v3150 = vld [vmem:[#allocation12 + $0x648] sm:$0xff]
        %v3151 = vld [vmem:[#allocation12 + $0x650] sm:$0xff]
        %v3152 = vld [vmem:[#allocation12 + $0x658] sm:$0xff]
        %v3153 = vld [vmem:[#allocation12 + $0x660] sm:$0xff]
        %v3154 = vld [vmem:[#allocation12 + $0x668] sm:$0xff]
        %v3155 = vld [vmem:[#allocation12 + $0x670] sm:$0xff]
        %v3156 = vld [vmem:[#allocation12 + $0x678] sm:$0xff]
        %v3157 = vld [vmem:[#allocation12 + $0x680] sm:$0xff]
        %v3158 = vld [vmem:[#allocation12 + $0x688] sm:$0xff]
        %v3159 = vld [vmem:[#allocation12 + $0x690] sm:$0xff]
        %v3160 = vld [vmem:[#allocation12 + $0x698] sm:$0xff]
        %v3161 = vld [vmem:[#allocation12 + $0x6a0] sm:$0xff]
        %v3162 = vld [vmem:[#allocation12 + $0x6a8] sm:$0xff]
        %v3163 = vld [vmem:[#allocation12 + $0x6b0] sm:$0xff]
        %v3164 = vld [vmem:[#allocation12 + $0x6b8] sm:$0xff]
        %v3165 = vld [vmem:[#allocation12 + $0x6c0] sm:$0xff]
        %v3166 = vld [vmem:[#allocation12 + $0x6c8] sm:$0xff]
        %v3167 = vld [vmem:[#allocation12 + $0x6d0] sm:$0xff]
        %v3168 = vld [vmem:[#allocation12 + $0x6d8] sm:$0xff]
        %v3169 = vld [vmem:[#allocation12 + $0x6e0] sm:$0xff]
        %v3170 = vld [vmem:[#allocation12 + $0x6e8] sm:$0xff]
        %v3171 = vld [vmem:[#allocation12 + $0x6f0] sm:$0xff]
        %v3172 = vld [vmem:[#allocation12 + $0x6f8] sm:$0xff]
        %v3173 = vld [vmem:[#allocation12 + $0x700] sm:$0xff]
        %v3174 = vld [vmem:[#allocation12 + $0x708] sm:$0xff]
        %v3175 = vld [vmem:[#allocation12 + $0x710] sm:$0xff]
        %v3176 = vld [vmem:[#allocation12 + $0x718] sm:$0xff]
        %v3177 = vld [vmem:[#allocation12 + $0x720] sm:$0xff]
        %v3178 = vld [vmem:[#allocation12 + $0x728] sm:$0xff]
        %v3179 = vld [vmem:[#allocation12 + $0x730] sm:$0xff]
        %v3180 = vld [vmem:[#allocation12 + $0x738] sm:$0xff]
        %v3181 = vld [vmem:[#allocation12 + $0x740] sm:$0xff]
        %v3182 = vld [vmem:[#allocation12 + $0x748] sm:$0xff]
        %v3183 = vld [vmem:[#allocation12 + $0x750] sm:$0xff]
        %v3184 = vld [vmem:[#allocation12 + $0x758] sm:$0xff]
        %v3185 = vld [vmem:[#allocation12 + $0x760] sm:$0xff]
        %v3186 = vld [vmem:[#allocation12 + $0x768] sm:$0xff]
        %v3187 = vld [vmem:[#allocation12 + $0x770] sm:$0xff]
        %v3188 = vld [vmem:[#allocation12 + $0x778] sm:$0xff]
        %v3189 = vld [vmem:[#allocation12 + $0x780] sm:$0xff]
        %v3190 = vld [vmem:[#allocation12 + $0x788] sm:$0xff]
        %v3191 = vld [vmem:[#allocation12 + $0x790] sm:$0xff]
        %v3192 = vld [vmem:[#allocation12 + $0x798] sm:$0xff]
        %v3193 = vld [vmem:[#allocation12 + $0x7a0] sm:$0xff]
        %v3194 = vld [vmem:[#allocation12 + $0x7a8] sm:$0xff]
        %v3195 = vld [vmem:[#allocation12 + $0x7b0] sm:$0xff]
        %v3196 = vld [vmem:[#allocation12 + $0x7b8] sm:$0xff]
        %v3197 = vld [vmem:[#allocation12 + $0x7c0] sm:$0xff]
        %v3198 = vld [vmem:[#allocation12 + $0x7c8] sm:$0xff]
        %v3199 = vld [vmem:[#allocation12 + $0x7d0] sm:$0xff]
        %v3200 = vld [vmem:[#allocation12 + $0x7d8] sm:$0xff]
        %v3201 = vld [vmem:[#allocation12 + $0x7e0] sm:$0xff]
        %v3202 = vld [vmem:[#allocation12 + $0x7e8] sm:$0xff]
        %v3203 = vld [vmem:[#allocation12 + $0x7f0] sm:$0xff]
        %v3204 = vld [vmem:[#allocation12 + $0x7f8] sm:$0xff]
        %v3205 = vld [vmem:[#allocation14] sm:$0xff]
        %v3207 = vlaneseq
        %v3208 = vshrl.u32 %v3207, 7
        %v3209 = vsub.s32 0, %v3208
        %v3210 = vrot.slane %v3205, %v3209
        %v3211 = vlaneseq
        %v3212 = vshrl.u32 %v3211, 7
        %v3213 = vsub.s32 1, %v3212
        %v3214 = vrot.slane %v3205, %v3213
        %v3215 = vlaneseq
        %v3216 = vshrl.u32 %v3215, 7
        %v3217 = vsub.s32 2, %v3216
        %v3218 = vrot.slane %v3205, %v3217
        %v3219 = vlaneseq
        %v3220 = vshrl.u32 %v3219, 7
        %v3221 = vsub.s32 3, %v3220
        %v3222 = vrot.slane %v3205, %v3221
        %v3223 = vlaneseq
        %v3224 = vshrl.u32 %v3223, 7
        %v3225 = vsub.s32 4, %v3224
        %v3226 = vrot.slane %v3205, %v3225
        %v3227 = vlaneseq
        %v3228 = vshrl.u32 %v3227, 7
        %v3229 = vsub.s32 5, %v3228
        %v3230 = vrot.slane %v3205, %v3229
        %v3231 = vlaneseq
        %v3232 = vshrl.u32 %v3231, 7
        %v3233 = vsub.s32 6, %v3232
        %v3234 = vrot.slane %v3205, %v3233
        %v3235 = vlaneseq
        %v3236 = vshrl.u32 %v3235, 7
        %v3237 = vsub.s32 7, %v3236
        %v3238 = vrot.slane %v3205, %v3237
        %3247 = vmatprep.subr.mxu0 %v3070
        %3248 = vmatpush1.msra.mxu0 %v3069
        %3249 = vmatprep.subr.mxu0 %v3062
        %3250 = vmatpush1.msra.mxu0 %v3061
        %3251 = vmatprep.subr.mxu0 %v3054
        %3252 = vmatpush1.msra.mxu0 %v3053
        %3253 = vmatprep.subr.mxu0 %v3046
        %3254 = vmatpush1.msra.mxu0 %v3045
        %3255 = vmatprep.subr.mxu0 %v3038
        %3256 = vmatpush1.msra.mxu0 %v3037
        %3257 = vmatprep.subr.mxu0 %v3030
        %3258 = vmatpush1.msra.mxu0 %v3029
        %3259 = vmatprep.subr.mxu0 %v3022
        %3260 = vmatpush1.msra.mxu0 %v3021
        %3261 = vmatprep.subr.mxu0 %v3014
        %3262 = vmatpush1.msra.mxu0 %v3013
        %3263 = vmatprep.subr.mxu0 %v3006
        %3264 = vmatpush1.msra.mxu0 %v3005
        %3265 = vmatprep.subr.mxu0 %v2998
        %3266 = vmatpush1.msra.mxu0 %v2997
        %3267 = vmatprep.subr.mxu0 %v2990
        %3268 = vmatpush1.msra.mxu0 %v2989
        %3269 = vmatprep.subr.mxu0 %v2982
        %3270 = vmatpush1.msra.mxu0 %v2981
        %3271 = vmatprep.subr.mxu0 %v2974
        %3272 = vmatpush1.msra.mxu0 %v2973
        %3273 = vmatprep.subr.mxu0 %v2966
        %3274 = vmatpush1.msra.mxu0 %v2965
        %3275 = vmatprep.subr.mxu0 %v2958
        %3276 = vmatpush1.msra.mxu0 %v2957
        %3277 = vmatprep.subr.mxu0 %v2950
        %3278 = vmatpush1.msra.mxu0 %v2949
        %3279 = vmatprep.subr.mxu0 %v3198
        %3280 = vmatpush2.msra.mxu0 %v3197
        %3281 = vmatprep.subr.mxu0 %v3190
        %3282 = vmatpush2.msra.mxu0 %v3189
        %3283 = vmatprep.subr.mxu0 %v3182
        %3284 = vmatpush2.msra.mxu0 %v3181
        %3285 = vmatprep.subr.mxu0 %v3174
        %3286 = vmatpush2.msra.mxu0 %v3173
        %3287 = vmatprep.subr.mxu0 %v3166
        %3288 = vmatpush2.msra.mxu0 %v3165
        %3289 = vmatprep.subr.mxu0 %v3158
        %3290 = vmatpush2.msra.mxu0 %v3157
        %3291 = vmatprep.subr.mxu0 %v3150
        %3292 = vmatpush2.msra.mxu0 %v3149
        %3293 = vmatprep.subr.mxu0 %v3142
        %3294 = vmatpush2.msra.mxu0 %v3141
        %3295 = vmatprep.subr.mxu0 %v3134
        %3296 = vmatpush2.msra.mxu0 %v3133
        %3297 = vmatprep.subr.mxu0 %v3126
        %3298 = vmatpush2.msra.mxu0 %v3125
        %3299 = vmatprep.subr.mxu0 %v3118
        %3300 = vmatpush2.msra.mxu0 %v3117
        %3301 = vmatprep.subr.mxu0 %v3110
        %3302 = vmatpush2.msra.mxu0 %v3109
        %3303 = vmatprep.subr.mxu0 %v3102
        %3304 = vmatpush2.msra.mxu0 %v3101
        %3305 = vmatprep.subr.mxu0 %v3094
        %3306 = vmatpush2.msra.mxu0 %v3093
        %3307 = vmatprep.subr.mxu0 %v3086
        %3308 = vmatpush2.msra.mxu0 %v3085
        %3309 = vmatprep.subr.mxu0 %v3078
        %3310 = vmatpush2.msra.mxu0 %v3077
        %3311 = vmatprep.mubr.f32.mxu0 %v2946
        %3312 = vmatmul.mubr.f32.gmra.mxu0 %v2945
        %v3313 = vpop.f32.mrf.mxu0
        %v3314 = vadd.f32 %v3210, %v3313
        %v3315 = vpop.f32.mrf.mxu0
        %v3316 = vadd.f32 %v3214, %v3315
        %3317 = vmatprep.mubr.f32.mxu0 %v2948
        %3318 = vmatmul.mubr.f32.gmra.mxu0 %v2947
        %v3319 = vpop.f32.mrf.mxu0
        %v3320 = vadd.f32 %v3210, %v3319
        %v3321 = vpop.f32.mrf.mxu0
        %v3322 = vadd.f32 %v3214, %v3321
        %3323 = vdwg.mxu0
        %3324 = vmatprep.subr.mxu0 %v3072
        %3325 = vmatpush1.msra.mxu0 %v3071
        %3326 = vmatprep.subr.mxu0 %v3064
        %3327 = vmatpush1.msra.mxu0 %v3063
        %3328 = vmatprep.subr.mxu0 %v3056
        %3329 = vmatpush1.msra.mxu0 %v3055
        %3330 = vmatprep.subr.mxu0 %v3048
        %3331 = vmatpush1.msra.mxu0 %v3047
        %3332 = vmatprep.subr.mxu0 %v3040
        %3333 = vmatpush1.msra.mxu0 %v3039
        %3334 = vmatprep.subr.mxu0 %v3032
        %3335 = vmatpush1.msra.mxu0 %v3031
        %3336 = vmatprep.subr.mxu0 %v3024
        %3337 = vmatpush1.msra.mxu0 %v3023
        %3338 = vmatprep.subr.mxu0 %v3016
        %3339 = vmatpush1.msra.mxu0 %v3015
        %3340 = vmatprep.subr.mxu0 %v3008
        %3341 = vmatpush1.msra.mxu0 %v3007
        %3342 = vmatprep.subr.mxu0 %v3000
        %3343 = vmatpush1.msra.mxu0 %v2999
        %3344 = vmatprep.subr.mxu0 %v2992
        %3345 = vmatpush1.msra.mxu0 %v2991
        %3346 = vmatprep.subr.mxu0 %v2984
        %3347 = vmatpush1.msra.mxu0 %v2983
        %3348 = vmatprep.subr.mxu0 %v2976
        %3349 = vmatpush1.msra.mxu0 %v2975
        %3350 = vmatprep.subr.mxu0 %v2968
        %3351 = vmatpush1.msra.mxu0 %v2967
        %3352 = vmatprep.subr.mxu0 %v2960
        %3353 = vmatpush1.msra.mxu0 %v2959
        %3354 = vmatprep.subr.mxu0 %v2952
        %3355 = vmatpush1.msra.mxu0 %v2951
        %3356 = vmatprep.subr.mxu0 %v3200
        %3357 = vmatpush2.msra.mxu0 %v3199
        %3358 = vmatprep.subr.mxu0 %v3192
        %3359 = vmatpush2.msra.mxu0 %v3191
        %3360 = vmatprep.subr.mxu0 %v3184
        %3361 = vmatpush2.msra.mxu0 %v3183
        %3362 = vmatprep.subr.mxu0 %v3176
        %3363 = vmatpush2.msra.mxu0 %v3175
        %3364 = vmatprep.subr.mxu0 %v3168
        %3365 = vmatpush2.msra.mxu0 %v3167
        %3366 = vmatprep.subr.mxu0 %v3160
        %3367 = vmatpush2.msra.mxu0 %v3159
        %3368 = vmatprep.subr.mxu0 %v3152
        %3369 = vmatpush2.msra.mxu0 %v3151
        %3370 = vmatprep.subr.mxu0 %v3144
        %3371 = vmatpush2.msra.mxu0 %v3143
        %3372 = vmatprep.subr.mxu0 %v3136
        %3373 = vmatpush2.msra.mxu0 %v3135
        %3374 = vmatprep.subr.mxu0 %v3128
        %3375 = vmatpush2.msra.mxu0 %v3127
        %3376 = vmatprep.subr.mxu0 %v3120
        %3377 = vmatpush2.msra.mxu0 %v3119
        %3378 = vmatprep.subr.mxu0 %v3112
        %3379 = vmatpush2.msra.mxu0 %v3111
        %3380 = vmatprep.subr.mxu0 %v3104
        %3381 = vmatpush2.msra.mxu0 %v3103
        %3382 = vmatprep.subr.mxu0 %v3096
        %3383 = vmatpush2.msra.mxu0 %v3095
        %3384 = vmatprep.subr.mxu0 %v3088
        %3385 = vmatpush2.msra.mxu0 %v3087
        %3386 = vmatprep.subr.mxu0 %v3080
        %3387 = vmatpush2.msra.mxu0 %v3079
        %3388 = vmatprep.mubr.f32.mxu0 %v2946
        %3389 = vmatmul.mubr.f32.gmra.mxu0 %v2945
        %v3390 = vpop.f32.mrf.mxu0
        %v3391 = vadd.f32 %v3218, %v3390
        %v3392 = vpop.f32.mrf.mxu0
        %v3393 = vadd.f32 %v3222, %v3392
        %3394 = vmatprep.mubr.f32.mxu0 %v2948
        %3395 = vmatmul.mubr.f32.gmra.mxu0 %v2947
        %v3396 = vpop.f32.mrf.mxu0
        %v3397 = vadd.f32 %v3218, %v3396
        %v3398 = vpop.f32.mrf.mxu0
        %v3399 = vadd.f32 %v3222, %v3398
        %3400 = vdwg.mxu0
        %3401 = vmatprep.subr.mxu0 %v3074
        %3402 = vmatpush1.msra.mxu0 %v3073
        %3403 = vmatprep.subr.mxu0 %v3066
        %3404 = vmatpush1.msra.mxu0 %v3065
        %3405 = vmatprep.subr.mxu0 %v3058
        %3406 = vmatpush1.msra.mxu0 %v3057
        %3407 = vmatprep.subr.mxu0 %v3050
        %3408 = vmatpush1.msra.mxu0 %v3049
        %3409 = vmatprep.subr.mxu0 %v3042
        %3410 = vmatpush1.msra.mxu0 %v3041
        %3411 = vmatprep.subr.mxu0 %v3034
        %3412 = vmatpush1.msra.mxu0 %v3033
        %3413 = vmatprep.subr.mxu0 %v3026
        %3414 = vmatpush1.msra.mxu0 %v3025
        %3415 = vmatprep.subr.mxu0 %v3018
        %3416 = vmatpush1.msra.mxu0 %v3017
        %3417 = vmatprep.subr.mxu0 %v3010
        %3418 = vmatpush1.msra.mxu0 %v3009
        %3419 = vmatprep.subr.mxu0 %v3002
        %3420 = vmatpush1.msra.mxu0 %v3001
        %3421 = vmatprep.subr.mxu0 %v2994
        %3422 = vmatpush1.msra.mxu0 %v2993
        %3423 = vmatprep.subr.mxu0 %v2986
        %3424 = vmatpush1.msra.mxu0 %v2985
        %3425 = vmatprep.subr.mxu0 %v2978
        %3426 = vmatpush1.msra.mxu0 %v2977
        %3427 = vmatprep.subr.mxu0 %v2970
        %3428 = vmatpush1.msra.mxu0 %v2969
        %3429 = vmatprep.subr.mxu0 %v2962
        %3430 = vmatpush1.msra.mxu0 %v2961
        %3431 = vmatprep.subr.mxu0 %v2954
        %3432 = vmatpush1.msra.mxu0 %v2953
        %3433 = vmatprep.subr.mxu0 %v3202
        %3434 = vmatpush2.msra.mxu0 %v3201
        %3435 = vmatprep.subr.mxu0 %v3194
        %3436 = vmatpush2.msra.mxu0 %v3193
        %3437 = vmatprep.subr.mxu0 %v3186
        %3438 = vmatpush2.msra.mxu0 %v3185
        %3439 = vmatprep.subr.mxu0 %v3178
        %3440 = vmatpush2.msra.mxu0 %v3177
        %3441 = vmatprep.subr.mxu0 %v3170
        %3442 = vmatpush2.msra.mxu0 %v3169
        %3443 = vmatprep.subr.mxu0 %v3162
        %3444 = vmatpush2.msra.mxu0 %v3161
        %3445 = vmatprep.subr.mxu0 %v3154
        %3446 = vmatpush2.msra.mxu0 %v3153
        %3447 = vmatprep.subr.mxu0 %v3146
        %3448 = vmatpush2.msra.mxu0 %v3145
        %3449 = vmatprep.subr.mxu0 %v3138
        %3450 = vmatpush2.msra.mxu0 %v3137
        %3451 = vmatprep.subr.mxu0 %v3130
        %3452 = vmatpush2.msra.mxu0 %v3129
        %3453 = vmatprep.subr.mxu0 %v3122
        %3454 = vmatpush2.msra.mxu0 %v3121
        %3455 = vmatprep.subr.mxu0 %v3114
        %3456 = vmatpush2.msra.mxu0 %v3113
        %3457 = vmatprep.subr.mxu0 %v3106
        %3458 = vmatpush2.msra.mxu0 %v3105
        %3459 = vmatprep.subr.mxu0 %v3098
        %3460 = vmatpush2.msra.mxu0 %v3097
        %3461 = vmatprep.subr.mxu0 %v3090
        %3462 = vmatpush2.msra.mxu0 %v3089
        %3463 = vmatprep.subr.mxu0 %v3082
        %3464 = vmatpush2.msra.mxu0 %v3081
        %3465 = vmatprep.mubr.f32.mxu0 %v2946
        %3466 = vmatmul.mubr.f32.gmra.mxu0 %v2945
        %v3467 = vpop.f32.mrf.mxu0
        %v3468 = vadd.f32 %v3226, %v3467
        %v3469 = vpop.f32.mrf.mxu0
        %v3470 = vadd.f32 %v3230, %v3469
        %3471 = vmatprep.mubr.f32.mxu0 %v2948
        %3472 = vmatmul.mubr.f32.gmra.mxu0 %v2947
        %v3473 = vpop.f32.mrf.mxu0
        %v3474 = vadd.f32 %v3226, %v3473
        %v3475 = vpop.f32.mrf.mxu0
        %v3476 = vadd.f32 %v3230, %v3475
        %3477 = vdwg.mxu0
        %3478 = vmatprep.subr.mxu0 %v3076
        %3479 = vmatpush1.msra.mxu0 %v3075
        %3480 = vmatprep.subr.mxu0 %v3068
        %3481 = vmatpush1.msra.mxu0 %v3067
        %3482 = vmatprep.subr.mxu0 %v3060
        %3483 = vmatpush1.msra.mxu0 %v3059
        %3484 = vmatprep.subr.mxu0 %v3052
        %3485 = vmatpush1.msra.mxu0 %v3051
        %3486 = vmatprep.subr.mxu0 %v3044
        %3487 = vmatpush1.msra.mxu0 %v3043
        %3488 = vmatprep.subr.mxu0 %v3036
        %3489 = vmatpush1.msra.mxu0 %v3035
        %3490 = vmatprep.subr.mxu0 %v3028
        %3491 = vmatpush1.msra.mxu0 %v3027
        %3492 = vmatprep.subr.mxu0 %v3020
        %3493 = vmatpush1.msra.mxu0 %v3019
        %3494 = vmatprep.subr.mxu0 %v3012
        %3495 = vmatpush1.msra.mxu0 %v3011
        %3496 = vmatprep.subr.mxu0 %v3004
        %3497 = vmatpush1.msra.mxu0 %v3003
        %3498 = vmatprep.subr.mxu0 %v2996
        %3499 = vmatpush1.msra.mxu0 %v2995
        %3500 = vmatprep.subr.mxu0 %v2988
        %3501 = vmatpush1.msra.mxu0 %v2987
        %3502 = vmatprep.subr.mxu0 %v2980
        %3503 = vmatpush1.msra.mxu0 %v2979
        %3504 = vmatprep.subr.mxu0 %v2972
        %3505 = vmatpush1.msra.mxu0 %v2971
        %3506 = vmatprep.subr.mxu0 %v2964
        %3507 = vmatpush1.msra.mxu0 %v2963
        %3508 = vmatprep.subr.mxu0 %v2956
        %3509 = vmatpush1.msra.mxu0 %v2955
        %3510 = vmatprep.subr.mxu0 %v3204
        %3511 = vmatpush2.msra.mxu0 %v3203
        %3512 = vmatprep.subr.mxu0 %v3196
        %3513 = vmatpush2.msra.mxu0 %v3195
        %3514 = vmatprep.subr.mxu0 %v3188
        %3515 = vmatpush2.msra.mxu0 %v3187
        %3516 = vmatprep.subr.mxu0 %v3180
        %3517 = vmatpush2.msra.mxu0 %v3179
        %3518 = vmatprep.subr.mxu0 %v3172
        %3519 = vmatpush2.msra.mxu0 %v3171
        %3520 = vmatprep.subr.mxu0 %v3164
        %3521 = vmatpush2.msra.mxu0 %v3163
        %3522 = vmatprep.subr.mxu0 %v3156
        %3523 = vmatpush2.msra.mxu0 %v3155
        %3524 = vmatprep.subr.mxu0 %v3148
        %3525 = vmatpush2.msra.mxu0 %v3147
        %3526 = vmatprep.subr.mxu0 %v3140
        %3527 = vmatpush2.msra.mxu0 %v3139
        %3528 = vmatprep.subr.mxu0 %v3132
        %3529 = vmatpush2.msra.mxu0 %v3131
        %3530 = vmatprep.subr.mxu0 %v3124
        %3531 = vmatpush2.msra.mxu0 %v3123
        %3532 = vmatprep.subr.mxu0 %v3116
        %3533 = vmatpush2.msra.mxu0 %v3115
        %3534 = vmatprep.subr.mxu0 %v3108
        %3535 = vmatpush2.msra.mxu0 %v3107
        %3536 = vmatprep.subr.mxu0 %v3100
        %3537 = vmatpush2.msra.mxu0 %v3099
        %3538 = vmatprep.subr.mxu0 %v3092
        %3539 = vmatpush2.msra.mxu0 %v3091
        %3540 = vmatprep.subr.mxu0 %v3084
        %3541 = vmatpush2.msra.mxu0 %v3083
        %3542 = vmatprep.mubr.f32.mxu0 %v2946
        %3543 = vmatmul.mubr.f32.gmra.mxu0 %v2945
        %v3544 = vpop.f32.mrf.mxu0
        %v3545 = vadd.f32 %v3234, %v3544
        %v3546 = vpop.f32.mrf.mxu0
        %v3547 = vadd.f32 %v3238, %v3546
        %3548 = vmatprep.mubr.f32.mxu0 %v2948
        %3549 = vmatmul.mubr.f32.gmra.mxu0 %v2947
        %v3550 = vpop.f32.mrf.mxu0
        %v3551 = vadd.f32 %v3234, %v3550
        %v3552 = vpop.f32.mrf.mxu0
        %v3553 = vadd.f32 %v3238, %v3552
        %3554 = vdwg.mxu0
        %3555 = vst [vmem:[%s379] sm:$0xff] %v3314
        %3556 = vst [vmem:[%s379 + $0x8] sm:$0xff] %v3316
        %3557 = vst [vmem:[%s379 + $0x10] sm:$0xff] %v3391
        %3558 = vst [vmem:[%s379 + $0x18] sm:$0xff] %v3393
        %3559 = vst [vmem:[%s379 + $0x20] sm:$0xff] %v3468
        %3560 = vst [vmem:[%s379 + $0x28] sm:$0xff] %v3470
        %3561 = vst [vmem:[%s379 + $0x30] sm:$0xff] %v3545
        %3562 = vst [vmem:[%s379 + $0x38] sm:$0xff] %v3547
        %3563 = vst [vmem:[%s379 + $0x40] sm:$0xff] %v3320
        %3564 = vst [vmem:[%s379 + $0x48] sm:$0xff] %v3322
        %3565 = vst [vmem:[%s379 + $0x50] sm:$0xff] %v3397
        %3566 = vst [vmem:[%s379 + $0x58] sm:$0xff] %v3399
        %3567 = vst [vmem:[%s379 + $0x60] sm:$0xff] %v3474
        %3568 = vst [vmem:[%s379 + $0x68] sm:$0xff] %v3476
        %3569 = vst [vmem:[%s379 + $0x70] sm:$0xff] %v3551
        %3570 = vst [vmem:[%s379 + $0x78] sm:$0xff] %v3553
        %s3571 = sand.u32 %s187, 1
        %s3572 = scalar_lea.sflag [#allocation5], %s3571
        %s3573 = sand.u32 %s187, 1
        %s3574 = smul.addr %s3573, 128
        %s3575 = scalar_lea.vmem [#allocation15], %s3574
        // Predicated region
        $region77: #{tpu_custom_call.1} parent=47 // pred_check
          %p3576 = pneg %p197
        $region78: #{tpu_custom_call.1} parent=47 // pred_check_branch
          %3578 = sbr.rel (%p3576) target = $region80
        $region79: #{tpu_custom_call.1} parent=47 // pred_region
          %s3580 = ssub.s32 2048, 2048
          %3581 = vsyncadd %s3572, %s3580
          %s3582 = smul.addr %s27, 16
          %s3583 = smul.addr %s3582, 128
          %s3584 = scalar_lea.hbm %s7, %s3583
          %s3585 = sshll.u32 %s3575, 4
          %s3586 = int_to_ptr.vmem [resolvable:$true] %s3585
          %3591 = dma.vmem_to_hbm [thread:$0]  %s3586, 2048, %s3584, %s3572, 1024, 1024, 64
        $region80: #{tpu_custom_call.1} parent=47 // pred_fallthru
          _
      $region48: #{tpu_custom_call.1} parent=5 // pred_fallthru
        _
      %p3592 = scmp.le.s32.totalorder 2, %s22
      // Predicated region
      $region81: #{tpu_custom_call.1} parent=5 // pred_check
        %p3593 = pneg %p3592
      $region82: #{tpu_custom_call.1} parent=5 // pred_check_branch
        %3595 = sbr.rel (%p3593) target = $region84
      $region83: #{tpu_custom_call.1} parent=5 // pred_region
        %s3596 = ssub.s32 %s22, 2
        // Predicated region
        $region85: #{tpu_custom_call.1} parent=83 // pred_check
          %p3597 = pneg %p203
        $region86: #{tpu_custom_call.1} parent=83 // pred_check_branch
          %3599 = sbr.rel (%p3597) target = $region88
        $region87: #{tpu_custom_call.1} parent=83 // pred_region
          %s3600 = sand.u32 %s188, 1
          %s3601 = scalar_lea.sflag [#allocation5], %s3600
          %s3602 = sand.u32 %s188, 1
          %s3603 = smul.addr %s3602, 128
          %s3604 = scalar_lea.vmem [#allocation15], %s3603
          %3605 = dma.done %s3601, 2048
        $region88: #{tpu_custom_call.1} parent=83 // pred_fallthru
          _
      $region84: #{tpu_custom_call.1} parent=5 // pred_fallthru
        _
    $region6: #{tpu_custom_call.1} parent=1 // loop_footer
      %s26 = sadd.s32 1, %s22
    $region7: #{tpu_custom_call.1} parent=1 // loop_footer_branch
      %21 = sbr.rel target = $region3
    $region8: #{tpu_custom_call.1} parent=1 // loop_exit
      _
    %3606 = vsyncpa [#allocation4], 1
    %s3607 = scalar_lea.sflag [#allocation4], 1
    %3608 = vsyncpa %s3607, 1
    %3609 = vsyncpa [#allocation7], 1
    %3610 = vsyncpa [#allocation10], 1
    %3611 = vsyncpa [#allocation13], 1
    %3612 = vsyncpa [#allocation5], 1
    %s3613 = scalar_lea.sflag [#allocation5], 1
    %3614 = vsyncpa %s3613, 1

</llo_original>
